<compile_context>
chip_gen: v7x
topology: tpu7x:2x2x1
jax: 0.10.0
libtpu: 0.0.40
codegen_flags: <defaults>
</compile_context>

<pallas_src>
import functools

import numpy as np
import jax
import jax.numpy as jnp
from jax.experimental import pallas as pl
from jax.experimental.pallas import tpu as pltpu

Z_DIM = 16
IMG_DIM = 32
LANE_TILE_CAP = 1024            # max lane tile (columns of out^T) per grid step
VMEM_LIMIT = 32 * 1024 * 1024   # safe scoped-VMEM budget on v5e / v6e / v7x

_VMEM = pltpu.MemorySpace.VMEM
_SMEM = pltpu.MemorySpace.SMEM


def _round_up(x, m):
    return ((x + m - 1) // m) * m


# ----------------------------------------------------------------------------
# Pallas kernels
# ----------------------------------------------------------------------------
def _matmul_act_kernel(w_ref, a_ref, b_ref, o_ref, *, act):
    """One lane-tile of out^T = (N x K) @ (K x TM) + bias, fused activation."""
    acc = jnp.dot(w_ref[...], a_ref[...], preferred_element_type=jnp.float32)
    acc = acc + b_ref[...]                      # bias (N, 1) broadcasts over lanes
    if act == "swish":
        acc = acc * jax.nn.sigmoid(acc)
    elif act == "sigmoid":
        acc = jax.nn.sigmoid(acc)
    o_ref[...] = acc.astype(o_ref.dtype)


def _enc_head_kernel(h_ref, wmu_ref, wlv_ref, bmu_ref, blv_ref, e1_ref, e2_ref,
                     z_ref, mu_ref, lv_ref, kl_ref, *, batch, noise_scale):
    """Fused: cond_x 1x1 conv -> (mu, log_var) -> z = mu + std*eps1 + 0.3*eps2 -> KL."""
    h = h_ref[...]
    mu = jnp.dot(wmu_ref[...], h, preferred_element_type=jnp.float32) + bmu_ref[...]
    lv = jnp.dot(wlv_ref[...], h, preferred_element_type=jnp.float32) + blv_ref[...]
    std = jnp.exp(0.5 * lv)
    z_ref[...] = mu + std * e1_ref[...] + noise_scale * e2_ref[...]
    mu_ref[...] = mu
    lv_ref[...] = lv
    # kl = mean_B( -0.5 * sum_{C,H,W}(1 + lv - mu^2 - exp(lv)) )
    kl_ref[0, 0] = -0.5 * jnp.sum(1.0 + lv - mu * mu - jnp.exp(lv)) / batch


def _dec_level_kernel(h_ref, s_ref, wmh_ref, wmx_ref, wlh_ref, wlx_ref,
                      bmu_ref, blv_ref, e_ref, ho_ref, kl_ref, *, batch):
    """Fused: cond 1x1 conv on concat(h, skip) -> (mu, lv) -> h + (mu + std*eps) -> KL."""
    h = h_ref[...]
    s = s_ref[...]
    mu = (jnp.dot(wmh_ref[...], h, preferred_element_type=jnp.float32)
          + jnp.dot(wmx_ref[...], s, preferred_element_type=jnp.float32)
          + bmu_ref[...])
    lv = (jnp.dot(wlh_ref[...], h, preferred_element_type=jnp.float32)
          + jnp.dot(wlx_ref[...], s, preferred_element_type=jnp.float32)
          + blv_ref[...])
    ho_ref[...] = h + mu + jnp.exp(0.5 * lv) * e_ref[...]
    kl_ref[0, 0] = -0.5 * jnp.sum(1.0 + lv - mu * mu - jnp.exp(lv)) / batch


def _recon_loss_kernel(p_ref, x_ref, o_ref):
    """mean_B( robust( mean_{C,H,W} BCE(p, x) ) ), inputs are (B, C*H*W) f32."""
    p = p_ref[...]
    x = x_ref[...]
    # F.binary_cross_entropy clamps log terms at -100.  Kept entirely in f32.
    log_p = jnp.maximum(jnp.log(p), -100.0)
    log_1mp = jnp.maximum(jnp.log(1.0 - p), -100.0)
    bce = -(x * log_p + (1.0 - x) * log_1mp)
    per = jnp.mean(bce, axis=1, keepdims=True)          # (B, 1)
    # AdaptiveLossFunction at its init point (alpha=1, scale=1) == Charbonnier loss.
    # TODO(synk): learned (alpha, scale) latents and the partition-function constant of
    # robust_loss_pytorch.adaptive.AdaptiveLossFunction are not reproduced.
    robust = jnp.sqrt(per * per + 1.0) - 1.0
    o_ref[0, 0] = jnp.sum(robust) / float(per.shape[0])


# ----------------------------------------------------------------------------
# Pallas wrappers
# ----------------------------------------------------------------------------
def pallas_matmul_t(w_t, a_t, bias, act="none"):
    """Lane-dense fused matmul: (N, K) @ (K, M) + bias -> (N, M), tiled over M (lanes).

    MXU inputs are bf16; accumulation, bias and activation epilogue are f32.
    """
    N, K = w_t.shape
    K2, M = a_t.shape
    assert K == K2
    w16 = w_t.astype(jnp.bfloat16)
    a16 = a_t.astype(jnp.bfloat16)
    b2 = bias.reshape(N, 1).astype(jnp.float32)

    mp = _round_up(M, 128)
    tm = min(mp, LANE_TILE_CAP)
    mp = _round_up(mp, tm)
    if mp != M:
        a16 = jnp.pad(a16, ((0, 0), (0, mp - M)))

    out = pl.pallas_call(
        functools.partial(_matmul_act_kernel, act=act),
        out_shape=jax.ShapeDtypeStruct((N, mp), jnp.float32),
        grid=(mp // tm,),
        in_specs=[
            pl.BlockSpec((N, K), lambda i: (0, 0)),
            pl.BlockSpec((K, tm), lambda i: (0, i)),
            pl.BlockSpec((N, 1), lambda i: (0, 0)),
        ],
        out_specs=pl.BlockSpec((N, tm), lambda i: (0, i)),
        compiler_params=pltpu.CompilerParams(
            dimension_semantics=("parallel",),
            vmem_limit_bytes=VMEM_LIMIT),
    )(w16, a16, b2)
    return out[:, :M] if mp != M else out


def _im2col_t(x, kh, kw, stride, padding):
    """x: (C, B, H, W) -> cols^T: (kh*kw*C, B*oh*ow), K order = (tap, channel).

    TODO(synk): cols^T is still materialized by XLA; a 9-tap 'arbitrary' grid axis
    DMAing shifted windows directly from HBM would remove this intermediate.
    """
    if padding > 0:
        x = jnp.pad(x, ((0, 0), (0, 0), (padding, padding), (padding, padding)))
    C, B, H, W = x.shape
    oh = (H - kh) // stride + 1
    ow = (W - kw) // stride + 1
    taps = []
    for i in range(kh):
        for j in range(kw):
            taps.append(
                x[:, :, i:i + stride * (oh - 1) + 1:stride,
                  j:j + stride * (ow - 1) + 1:stride])
    cols = jnp.concatenate(taps, axis=0)                 # (kh*kw*C, B, oh, ow)
    return cols.reshape(kh * kw * C, B * oh * ow), (B, oh, ow)


def conv2d_t(x, wb, stride=1, padding=1, act="none"):
    """Channels-first conv: x (C, B, H, W) -> (cout, B, oh, ow) via lane-dense matmul."""
    w, bias = wb                                         # w: (cout, kh, kw, cin)
    cout, kh, kw, cin = w.shape
    cols, (B, oh, ow) = _im2col_t(x, kh, kw, stride, padding)
    y = pallas_matmul_t(w.reshape(cout, kh * kw * cin), cols, bias, act=act)
    return y.reshape(cout, B, oh, ow)


def upsample2x(h):
    # TODO(synk): fold nearest-neighbour upsample into the next conv's im2col index math.
    return jnp.repeat(jnp.repeat(h, 2, axis=2), 2, axis=3)


def enc_head_pallas(cond_wb, h, e1, e2, noise_scale):
    """h: (Z, B, 4, 4).  Returns z, mu, log_var (same shape) and the scalar KL."""
    w, b = cond_wb                                       # (2Z, Z), (2Z,)
    Z, B = h.shape[0], h.shape[1]
    shp = h.shape
    M = B * h.shape[2] * h.shape[3]
    out_shape = (jax.ShapeDtypeStruct((Z, M), jnp.float32),   # z
                 jax.ShapeDtypeStruct((Z, M), jnp.float32),   # mu
                 jax.ShapeDtypeStruct((Z, M), jnp.float32),   # log_var
                 jax.ShapeDtypeStruct((1, 1), jnp.float32))   # kl scalar
    z, mu, lv, kl = pl.pallas_call(
        functools.partial(_enc_head_kernel, batch=float(B),
                          noise_scale=float(noise_scale)),
        out_shape=out_shape,
        in_specs=[pl.BlockSpec(memory_space=_VMEM)] * 7,
        out_specs=(pl.BlockSpec(memory_space=_VMEM),
                   pl.BlockSpec(memory_space=_VMEM),
                   pl.BlockSpec(memory_space=_VMEM),
                   pl.BlockSpec(memory_space=_SMEM)),
        compiler_params=pltpu.CompilerParams(vmem_limit_bytes=VMEM_LIMIT),
    )(h.reshape(Z, M), w[:Z], w[Z:], b[:Z].reshape(Z, 1), b[Z:].reshape(Z, 1),
      e1.reshape(Z, M), e2.reshape(Z, M))
    return z.reshape(shp), mu.reshape(shp), lv.reshape(shp), kl[0, 0]


def dec_level_pallas(cond_wb, h, skip, eps):
    """h, skip: (c, B, H, W).  Returns h + reparameterize(mu, std) and the scalar KL."""
    w, b = cond_wb                                       # (2c, 2c), (2c,)
    c, B = h.shape[0], h.shape[1]
    shp = h.shape
    M = B * h.shape[2] * h.shape[3]
    h_out, kl = pl.pallas_call(
        functools.partial(_dec_level_kernel, batch=float(B)),
        out_shape=(jax.ShapeDtypeStruct((c, M), jnp.float32),
                   jax.ShapeDtypeStruct((1, 1), jnp.float32)),
        in_specs=[pl.BlockSpec(memory_space=_VMEM)] * 9,
        out_specs=(pl.BlockSpec(memory_space=_VMEM),
                   pl.BlockSpec(memory_space=_SMEM)),
        compiler_params=pltpu.CompilerParams(vmem_limit_bytes=VMEM_LIMIT),
    )(h.reshape(c, M), skip.reshape(c, M),
      w[:c, :c], w[:c, c:], w[c:, :c], w[c:, c:],
      b[:c].reshape(c, 1), b[c:].reshape(c, 1), eps.reshape(c, M))
    return h_out.reshape(shp), kl[0, 0]


def recon_loss_pallas(p_nchw, x_nchw):
    # TODO(synk): at training batch sizes, tile this reduction over a grid with a
    # pl.when-guarded accumulator; at B=2 the whole slab fits VMEM trivially.
    B = p_nchw.shape[0]
    out = pl.pallas_call(
        _recon_loss_kernel,
        out_shape=jax.ShapeDtypeStruct((1, 1), jnp.float32),
        in_specs=[pl.BlockSpec(memory_space=_VMEM)] * 2,
        out_specs=pl.BlockSpec(memory_space=_SMEM),
        compiler_params=pltpu.CompilerParams(vmem_limit_bytes=VMEM_LIMIT),
    )(p_nchw.reshape(B, -1), x_nchw.reshape(B, -1))
    return out[0, 0]


# ----------------------------------------------------------------------------
# Parameters (deterministic init)
# ----------------------------------------------------------------------------
def _init_conv(key, kh, kw, cin, cout):
    wkey, bkey = jax.random.split(key)
    fan_in = kh * kw * cin
    w = jax.random.normal(wkey, (cout, kh, kw, cin), jnp.float32) / np.sqrt(fan_in)
    b = 0.01 * jax.random.normal(bkey, (cout,), jnp.float32)
    return w, b


def _init_dense(key, cin, cout):
    wkey, bkey = jax.random.split(key)
    w = jax.random.normal(wkey, (cout, cin), jnp.float32) / np.sqrt(cin)
    b = 0.01 * jax.random.normal(bkey, (cout,), jnp.float32)
    return w, b


def init_params(key):
    ks = jax.random.split(key, 13)
    z4, z2, z1 = Z_DIM // 4, Z_DIM // 2, Z_DIM
    return {
        # encoder
        "enc1a": _init_conv(ks[0], 3, 3, 3, z4),
        "enc1b": _init_conv(ks[1], 3, 3, z4, z4),
        "enc2a": _init_conv(ks[2], 3, 3, z4, z2),
        "enc2b": _init_conv(ks[3], 3, 3, z2, z2),
        "enc3a": _init_conv(ks[4], 3, 3, z2, z1),
        "enc3b": _init_conv(ks[5], 3, 3, z1, z1),
        "cond_x": _init_dense(ks[6], z1, 2 * z1),
        # decoder
        "dec1": _init_conv(ks[7], 3, 3, z1, z2),
        "cond1": _init_dense(ks[8], 2 * z2, 2 * z2),
        "dec2": _init_conv(ks[9], 3, 3, z2, z4),
        "cond2": _init_dense(ks[10], 2 * z4, 2 * z4),
        "dec3a": _init_conv(ks[11], 3, 3, z4, z4),
        "dec3b": _init_conv(ks[12], 3, 3, z4, 3),
    }


# ----------------------------------------------------------------------------
# NVAE forward
# ----------------------------------------------------------------------------
def nvae_forward(params, x_nchw, key):
    # channels-first (C, B, H, W): the B*H*W axis is the lane axis of every matmul.
    x = jnp.transpose(x_nchw, (1, 0, 2, 3))

    # ------------------ Encoder ------------------
    h = conv2d_t(x, params["enc1a"], stride=2, padding=1, act="swish")   # (z/4, B,16,16)
    h = conv2d_t(h, params["enc1b"], stride=1, padding=1, act="swish")
    feat1 = h
    h = conv2d_t(h, params["enc2a"], stride=2, padding=1, act="swish")   # (z/2, B, 8, 8)
    h = conv2d_t(h, params["enc2b"], stride=1, padding=1, act="swish")
    feat2 = h
    h = conv2d_t(h, params["enc3a"], stride=2, padding=1, act="swish")   # (z,   B, 4, 4)
    h = conv2d_t(h, params["enc3b"], stride=1, padding=1, act="swish")
    xs = [feat2, feat1]                                                  # xs[:-1][::-1]

    # ---- fused: cond_x -> (mu, log_var) -> z = mu + std*eps1 + 0.3*eps2 -> KL ----
    k1, k2, k3, k4 = jax.random.split(key, 4)
    e1 = jax.random.normal(k1, h.shape, jnp.float32)
    e2 = jax.random.normal(k2, h.shape, jnp.float32)
    z, mu, log_var, kl_loss = enc_head_pallas(params["cond_x"], h, e1, e2, 0.3)

    # ------------------ Decoder (hierarchical, per-level kl losses) ------------------
    losses = []

    h = upsample2x(z)                                                    # (z,   B, 8, 8)
    h = conv2d_t(h, params["dec1"], stride=1, padding=1, act="swish")    # (z/2, B, 8, 8)
    e = jax.random.normal(k3, h.shape, jnp.float32)
    h, kl1 = dec_level_pallas(params["cond1"], h, xs[0], e)
    losses.append(kl1)

    h = upsample2x(h)                                                    # (z/2, B,16,16)
    h = conv2d_t(h, params["dec2"], stride=1, padding=1, act="swish")    # (z/4, B,16,16)
    e = jax.random.normal(k4, h.shape, jnp.float32)
    h, kl2 = dec_level_pallas(params["cond2"], h, xs[1], e)
    losses.append(kl2)

    h = upsample2x(h)                                                    # (z/4, B,32,32)
    h = conv2d_t(h, params["dec3a"], stride=1, padding=1, act="swish")
    dec = conv2d_t(h, params["dec3b"], stride=1, padding=1, act="sigmoid")  # (3, B,32,32)

    decoder_output = jnp.transpose(dec, (1, 0, 2, 3))                    # back to NCHW
    recon_loss = recon_loss_pallas(decoder_output, x_nchw)

    mu_nchw = jnp.transpose(mu, (1, 0, 2, 3))
    lv_nchw = jnp.transpose(log_var, (1, 0, 2, 3))
    return decoder_output, recon_loss, [kl_loss] + losses, mu_nchw, lv_nchw


# ----------------------------------------------------------------------------
if __name__ == "__main__":
    root = jax.random.PRNGKey(0)
    pkey, xkey, nkey = jax.random.split(root, 3)

    params = init_params(pkey)
    # image-like input in [0, 1] (required by binary_cross_entropy), NCHW like PyTorch
    x = jax.random.uniform(xkey, (2, 3, IMG_DIM, IMG_DIM), jnp.float32)

    fwd = jax.jit(nvae_forward)
    out = jax.block_until_ready(fwd(params, x, nkey))

    dec, recon_loss, loss_list, mu, log_var = out
    assert dec.shape == x.shape
    assert mu.shape == (2, Z_DIM, 4, 4) and log_var.shape == (2, Z_DIM, 4, 4)
    assert len(loss_list) == 3
    assert np.isfinite(float(recon_loss))
    assert all(np.isfinite(float(l)) for l in loss_list)

    print("KERNEL_OK")
</pallas_src>

<mosaic_0001>
module attributes {stable_mosaic.version = 11 : i64} {
  func.func @_matmul_act_kernel(%arg0: i32, %arg1: memref<4x27xbf16, #tpu.memory_space<vmem>>, %arg2: memref<27x512xbf16, #tpu.memory_space<vmem>>, %arg3: memref<4x1xf32, #tpu.memory_space<vmem>>, %arg4: memref<4x512xf32, #tpu.memory_space<vmem>>) attributes {dimension_semantics = [#tpu.dimension_semantics<parallel>], iteration_bounds = array<i64: 1>, scalar_prefetch = 0 : i64, scratch_operands = 0 : i64, tpu.core_type = #tpu.core_type<tc>, window_params = [{pipeline_mode = #tpu.pipeline_mode<synchronous>, transform_indices = @transform_0, window_bounds = array<i64: 4, 27>}, {transform_indices = @transform_1, window_bounds = array<i64: 27, 512>}, {pipeline_mode = #tpu.pipeline_mode<synchronous>, transform_indices = @transform_2, window_bounds = array<i64: 4, 1>}, {transform_indices = @transform_3, window_bounds = array<i64: 4, 512>}]} {
    %c0 = arith.constant 0 : index
    %c0_0 = arith.constant 0 : index
    %0 = vector.load %arg1[%c0, %c0_0] : memref<4x27xbf16, #tpu.memory_space<vmem>>, vector<4x27xbf16>
    %c0_1 = arith.constant 0 : index
    %c0_2 = arith.constant 0 : index
    %1 = vector.load %arg2[%c0_1, %c0_2] : memref<27x512xbf16, #tpu.memory_space<vmem>>, vector<27x512xbf16>
    %cst = arith.constant dense<0.000000e+00> : vector<4x512xf32>
    %2 = tpu.matmul %0, %1, %cst {dimension_numbers = #tpu.dot_dimension_numbers<[1], [0], [0], [1], [0, 0, 1, 1], [], []>} : vector<4x27xbf16>, vector<27x512xbf16>, vector<4x512xf32> -> vector<4x512xf32>
    %c0_3 = arith.constant 0 : index
    %c0_4 = arith.constant 0 : index
    %3 = vector.load %arg3[%c0_3, %c0_4] : memref<4x1xf32, #tpu.memory_space<vmem>>, vector<4x1xf32>
    %4 = vector.broadcast %3 : vector<4x1xf32> to vector<4x512xf32>
    %5 = arith.addf %2, %4 : vector<4x512xf32>
    %6 = arith.negf %5 : vector<4x512xf32>
    %7 = math.exp %6 : vector<4x512xf32>
    %cst_5 = arith.constant 1.000000e+00 : f32
    %8 = vector.broadcast %cst_5 : f32 to vector<4x512xf32>
    %9 = arith.addf %8, %7 : vector<4x512xf32>
    %10 = arith.divf %8, %9 : vector<4x512xf32>
    %11 = arith.mulf %5, %10 : vector<4x512xf32>
    %c0_6 = arith.constant 0 : index
    %c0_7 = arith.constant 0 : index
    %12 = vector.load %arg4[%c0_6, %c0_7] : memref<4x512xf32, #tpu.memory_space<vmem>>, vector<4x512xf32>
    tpu.vector_store %arg4[%c0_6, %c0_7], %11 {strides = array<i32>} : memref<4x512xf32, #tpu.memory_space<vmem>>, vector<4x512xf32>,
    return
  }
  func.func @transform_0(%arg0: i32) -> (i32, i32) {
    %c0_i32 = arith.constant 0 : i32
    %c0_i32_0 = arith.constant 0 : i32
    %c0_i32_1 = arith.constant 0 : i32
    return %c0_i32, %c0_i32_0 : i32, i32
  }
  func.func @transform_1(%arg0: i32) -> (i32, i32) {
    %c0_i32 = arith.constant 0 : i32
    %c0_i32_0 = arith.constant 0 : i32
    return %c0_i32, %arg0 : i32, i32
  }
  func.func @transform_2(%arg0: i32) -> (i32, i32) {
    %c0_i32 = arith.constant 0 : i32
    %c0_i32_0 = arith.constant 0 : i32
    %c0_i32_1 = arith.constant 0 : i32
    return %c0_i32, %c0_i32_0 : i32, i32
  }
  func.func @transform_3(%arg0: i32) -> (i32, i32) {
    %c0_i32 = arith.constant 0 : i32
    %c0_i32_0 = arith.constant 0 : i32
    return %c0_i32, %arg0 : i32, i32
  }
}

module attributes {stable_mosaic.version = 11 : i64} {
  func.func @_matmul_act_kernel(%arg0: i32, %arg1: memref<4x36xbf16, #tpu.memory_space<vmem>>, %arg2: memref<36x512xbf16, #tpu.memory_space<vmem>>, %arg3: memref<4x1xf32, #tpu.memory_space<vmem>>, %arg4: memref<4x512xf32, #tpu.memory_space<vmem>>) attributes {dimension_semantics = [#tpu.dimension_semantics<parallel>], iteration_bounds = array<i64: 1>, scalar_prefetch = 0 : i64, scratch_operands = 0 : i64, tpu.core_type = #tpu.core_type<tc>, window_params = [{pipeline_mode = #tpu.pipeline_mode<synchronous>, transform_indices = @transform_0, window_bounds = array<i64: 4, 36>}, {transform_indices = @transform_1, window_bounds = array<i64: 36, 512>}, {pipeline_mode = #tpu.pipeline_mode<synchronous>, transform_indices = @transform_2, window_bounds = array<i64: 4, 1>}, {transform_indices = @transform_3, window_bounds = array<i64: 4, 512>}]} {
    %c0 = arith.constant 0 : index
    %c0_0 = arith.constant 0 : index
    %0 = vector.load %arg1[%c0, %c0_0] : memref<4x36xbf16, #tpu.memory_space<vmem>>, vector<4x36xbf16>
    %c0_1 = arith.constant 0 : index
    %c0_2 = arith.constant 0 : index
    %1 = vector.load %arg2[%c0_1, %c0_2] : memref<36x512xbf16, #tpu.memory_space<vmem>>, vector<36x512xbf16>
    %cst = arith.constant dense<0.000000e+00> : vector<4x512xf32>
    %2 = tpu.matmul %0, %1, %cst {dimension_numbers = #tpu.dot_dimension_numbers<[1], [0], [0], [1], [0, 0, 1, 1], [], []>} : vector<4x36xbf16>, vector<36x512xbf16>, vector<4x512xf32> -> vector<4x512xf32>
    %c0_3 = arith.constant 0 : index
    %c0_4 = arith.constant 0 : index
    %3 = vector.load %arg3[%c0_3, %c0_4] : memref<4x1xf32, #tpu.memory_space<vmem>>, vector<4x1xf32>
    %4 = vector.broadcast %3 : vector<4x1xf32> to vector<4x512xf32>
    %5 = arith.addf %2, %4 : vector<4x512xf32>
    %6 = arith.negf %5 : vector<4x512xf32>
    %7 = math.exp %6 : vector<4x512xf32>
    %cst_5 = arith.constant 1.000000e+00 : f32
    %8 = vector.broadcast %cst_5 : f32 to vector<4x512xf32>
    %9 = arith.addf %8, %7 : vector<4x512xf32>
    %10 = arith.divf %8, %9 : vector<4x512xf32>
    %11 = arith.mulf %5, %10 : vector<4x512xf32>
    %c0_6 = arith.constant 0 : index
    %c0_7 = arith.constant 0 : index
    %12 = vector.load %arg4[%c0_6, %c0_7] : memref<4x512xf32, #tpu.memory_space<vmem>>, vector<4x512xf32>
    tpu.vector_store %arg4[%c0_6, %c0_7], %11 {strides = array<i32>} : memref<4x512xf32, #tpu.memory_space<vmem>>, vector<4x512xf32>,
    return
  }
  func.func @transform_0(%arg0: i32) -> (i32, i32) {
    %c0_i32 = arith.constant 0 : i32
    %c0_i32_0 = arith.constant 0 : i32
    %c0_i32_1 = arith.constant 0 : i32
    return %c0_i32, %c0_i32_0 : i32, i32
  }
  func.func @transform_1(%arg0: i32) -> (i32, i32) {
    %c0_i32 = arith.constant 0 : i32
    %c0_i32_0 = arith.constant 0 : i32
    return %c0_i32, %arg0 : i32, i32
  }
  func.func @transform_2(%arg0: i32) -> (i32, i32) {
    %c0_i32 = arith.constant 0 : i32
    %c0_i32_0 = arith.constant 0 : i32
    %c0_i32_1 = arith.constant 0 : i32
    return %c0_i32, %c0_i32_0 : i32, i32
  }
  func.func @transform_3(%arg0: i32) -> (i32, i32) {
    %c0_i32 = arith.constant 0 : i32
    %c0_i32_0 = arith.constant 0 : i32
    return %c0_i32, %arg0 : i32, i32
  }
}

module attributes {stable_mosaic.version = 11 : i64} {
  func.func @_matmul_act_kernel(%arg0: i32, %arg1: memref<8x36xbf16, #tpu.memory_space<vmem>>, %arg2: memref<36x128xbf16, #tpu.memory_space<vmem>>, %arg3: memref<8x1xf32, #tpu.memory_space<vmem>>, %arg4: memref<8x128xf32, #tpu.memory_space<vmem>>) attributes {dimension_semantics = [#tpu.dimension_semantics<parallel>], iteration_bounds = array<i64: 1>, scalar_prefetch = 0 : i64, scratch_operands = 0 : i64, tpu.core_type = #tpu.core_type<tc>, window_params = [{pipeline_mode = #tpu.pipeline_mode<synchronous>, transform_indices = @transform_0, window_bounds = array<i64: 8, 36>}, {transform_indices = @transform_1, window_bounds = array<i64: 36, 128>}, {pipeline_mode = #tpu.pipeline_mode<synchronous>, transform_indices = @transform_2, window_bounds = array<i64: 8, 1>}, {transform_indices = @transform_3, window_bounds = array<i64: 8, 128>}]} {
    %c0 = arith.constant 0 : index
    %c0_0 = arith.constant 0 : index
    %0 = vector.load %arg1[%c0, %c0_0] : memref<8x36xbf16, #tpu.memory_space<vmem>>, vector<8x36xbf16>
    %c0_1 = arith.constant 0 : index
    %c0_2 = arith.constant 0 : index
    %1 = vector.load %arg2[%c0_1, %c0_2] : memref<36x128xbf16, #tpu.memory_space<vmem>>, vector<36x128xbf16>
    %cst = arith.constant dense<0.000000e+00> : vector<8x128xf32>
    %2 = tpu.matmul %0, %1, %cst {dimension_numbers = #tpu.dot_dimension_numbers<[1], [0], [0], [1], [0, 0, 1, 1], [], []>} : vector<8x36xbf16>, vector<36x128xbf16>, vector<8x128xf32> -> vector<8x128xf32>
    %c0_3 = arith.constant 0 : index
    %c0_4 = arith.constant 0 : index
    %3 = vector.load %arg3[%c0_3, %c0_4] : memref<8x1xf32, #tpu.memory_space<vmem>>, vector<8x1xf32>
    %4 = vector.broadcast %3 : vector<8x1xf32> to vector<8x128xf32>
    %5 = arith.addf %2, %4 : vector<8x128xf32>
    %6 = arith.negf %5 : vector<8x128xf32>
    %7 = math.exp %6 : vector<8x128xf32>
    %cst_5 = arith.constant 1.000000e+00 : f32
    %8 = vector.broadcast %cst_5 : f32 to vector<8x128xf32>
    %9 = arith.addf %8, %7 : vector<8x128xf32>
    %10 = arith.divf %8, %9 : vector<8x128xf32>
    %11 = arith.mulf %5, %10 : vector<8x128xf32>
    %c0_6 = arith.constant 0 : index
    %c0_7 = arith.constant 0 : index
    %12 = vector.load %arg4[%c0_6, %c0_7] : memref<8x128xf32, #tpu.memory_space<vmem>>, vector<8x128xf32>
    tpu.vector_store %arg4[%c0_6, %c0_7], %11 {strides = array<i32>} : memref<8x128xf32, #tpu.memory_space<vmem>>, vector<8x128xf32>,
    return
  }
  func.func @transform_0(%arg0: i32) -> (i32, i32) {
    %c0_i32 = arith.constant 0 : i32
    %c0_i32_0 = arith.constant 0 : i32
    %c0_i32_1 = arith.constant 0 : i32
    return %c0_i32, %c0_i32_0 : i32, i32
  }
  func.func @transform_1(%arg0: i32) -> (i32, i32) {
    %c0_i32 = arith.constant 0 : i32
    %c0_i32_0 = arith.constant 0 : i32
    return %c0_i32, %arg0 : i32, i32
  }
  func.func @transform_2(%arg0: i32) -> (i32, i32) {
    %c0_i32 = arith.constant 0 : i32
    %c0_i32_0 = arith.constant 0 : i32
    %c0_i32_1 = arith.constant 0 : i32
    return %c0_i32, %c0_i32_0 : i32, i32
  }
  func.func @transform_3(%arg0: i32) -> (i32, i32) {
    %c0_i32 = arith.constant 0 : i32
    %c0_i32_0 = arith.constant 0 : i32
    return %c0_i32, %arg0 : i32, i32
  }
}

module attributes {stable_mosaic.version = 11 : i64} {
  func.func @_matmul_act_kernel(%arg0: i32, %arg1: memref<8x72xbf16, #tpu.memory_space<vmem>>, %arg2: memref<72x128xbf16, #tpu.memory_space<vmem>>, %arg3: memref<8x1xf32, #tpu.memory_space<vmem>>, %arg4: memref<8x128xf32, #tpu.memory_space<vmem>>) attributes {dimension_semantics = [#tpu.dimension_semantics<parallel>], iteration_bounds = array<i64: 1>, scalar_prefetch = 0 : i64, scratch_operands = 0 : i64, tpu.core_type = #tpu.core_type<tc>, window_params = [{pipeline_mode = #tpu.pipeline_mode<synchronous>, transform_indices = @transform_0, window_bounds = array<i64: 8, 72>}, {transform_indices = @transform_1, window_bounds = array<i64: 72, 128>}, {pipeline_mode = #tpu.pipeline_mode<synchronous>, transform_indices = @transform_2, window_bounds = array<i64: 8, 1>}, {transform_indices = @transform_3, window_bounds = array<i64: 8, 128>}]} {
    %c0 = arith.constant 0 : index
    %c0_0 = arith.constant 0 : index
    %0 = vector.load %arg1[%c0, %c0_0] : memref<8x72xbf16, #tpu.memory_space<vmem>>, vector<8x72xbf16>
    %c0_1 = arith.constant 0 : index
    %c0_2 = arith.constant 0 : index
    %1 = vector.load %arg2[%c0_1, %c0_2] : memref<72x128xbf16, #tpu.memory_space<vmem>>, vector<72x128xbf16>
    %cst = arith.constant dense<0.000000e+00> : vector<8x128xf32>
    %2 = tpu.matmul %0, %1, %cst {dimension_numbers = #tpu.dot_dimension_numbers<[1], [0], [0], [1], [0, 0, 1, 1], [], []>} : vector<8x72xbf16>, vector<72x128xbf16>, vector<8x128xf32> -> vector<8x128xf32>
    %c0_3 = arith.constant 0 : index
    %c0_4 = arith.constant 0 : index
    %3 = vector.load %arg3[%c0_3, %c0_4] : memref<8x1xf32, #tpu.memory_space<vmem>>, vector<8x1xf32>
    %4 = vector.broadcast %3 : vector<8x1xf32> to vector<8x128xf32>
    %5 = arith.addf %2, %4 : vector<8x128xf32>
    %6 = arith.negf %5 : vector<8x128xf32>
    %7 = math.exp %6 : vector<8x128xf32>
    %cst_5 = arith.constant 1.000000e+00 : f32
    %8 = vector.broadcast %cst_5 : f32 to vector<8x128xf32>
    %9 = arith.addf %8, %7 : vector<8x128xf32>
    %10 = arith.divf %8, %9 : vector<8x128xf32>
    %11 = arith.mulf %5, %10 : vector<8x128xf32>
    %c0_6 = arith.constant 0 : index
    %c0_7 = arith.constant 0 : index
    %12 = vector.load %arg4[%c0_6, %c0_7] : memref<8x128xf32, #tpu.memory_space<vmem>>, vector<8x128xf32>
    tpu.vector_store %arg4[%c0_6, %c0_7], %11 {strides = array<i32>} : memref<8x128xf32, #tpu.memory_space<vmem>>, vector<8x128xf32>,
    return
  }
  func.func @transform_0(%arg0: i32) -> (i32, i32) {
    %c0_i32 = arith.constant 0 : i32
    %c0_i32_0 = arith.constant 0 : i32
    %c0_i32_1 = arith.constant 0 : i32
    return %c0_i32, %c0_i32_0 : i32, i32
  }
  func.func @transform_1(%arg0: i32) -> (i32, i32) {
    %c0_i32 = arith.constant 0 : i32
    %c0_i32_0 = arith.constant 0 : i32
    return %c0_i32, %arg0 : i32, i32
  }
  func.func @transform_2(%arg0: i32) -> (i32, i32) {
    %c0_i32 = arith.constant 0 : i32
    %c0_i32_0 = arith.constant 0 : i32
    %c0_i32_1 = arith.constant 0 : i32
    return %c0_i32, %c0_i32_0 : i32, i32
  }
  func.func @transform_3(%arg0: i32) -> (i32, i32) {
    %c0_i32 = arith.constant 0 : i32
    %c0_i32_0 = arith.constant 0 : i32
    return %c0_i32, %arg0 : i32, i32
  }
}

module attributes {stable_mosaic.version = 11 : i64} {
  func.func @_matmul_act_kernel(%arg0: i32, %arg1: memref<16x72xbf16, #tpu.memory_space<vmem>>, %arg2: memref<72x128xbf16, #tpu.memory_space<vmem>>, %arg3: memref<16x1xf32, #tpu.memory_space<vmem>>, %arg4: memref<16x128xf32, #tpu.memory_space<vmem>>) attributes {dimension_semantics = [#tpu.dimension_semantics<parallel>], iteration_bounds = array<i64: 1>, scalar_prefetch = 0 : i64, scratch_operands = 0 : i64, tpu.core_type = #tpu.core_type<tc>, window_params = [{pipeline_mode = #tpu.pipeline_mode<synchronous>, transform_indices = @transform_0, window_bounds = array<i64: 16, 72>}, {transform_indices = @transform_1, window_bounds = array<i64: 72, 128>}, {pipeline_mode = #tpu.pipeline_mode<synchronous>, transform_indices = @transform_2, window_bounds = array<i64: 16, 1>}, {transform_indices = @transform_3, window_bounds = array<i64: 16, 128>}]} {
    %c0 = arith.constant 0 : index
    %c0_0 = arith.constant 0 : index
    %0 = vector.load %arg1[%c0, %c0_0] : memref<16x72xbf16, #tpu.memory_space<vmem>>, vector<16x72xbf16>
    %c0_1 = arith.constant 0 : index
    %c0_2 = arith.constant 0 : index
    %1 = vector.load %arg2[%c0_1, %c0_2] : memref<72x128xbf16, #tpu.memory_space<vmem>>, vector<72x128xbf16>
    %cst = arith.constant dense<0.000000e+00> : vector<16x128xf32>
    %2 = tpu.matmul %0, %1, %cst {dimension_numbers = #tpu.dot_dimension_numbers<[1], [0], [0], [1], [0, 0, 1, 1], [], []>} : vector<16x72xbf16>, vector<72x128xbf16>, vector<16x128xf32> -> vector<16x128xf32>
    %c0_3 = arith.constant 0 : index
    %c0_4 = arith.constant 0 : index
    %3 = vector.load %arg3[%c0_3, %c0_4] : memref<16x1xf32, #tpu.memory_space<vmem>>, vector<16x1xf32>
    %4 = vector.broadcast %3 : vector<16x1xf32> to vector<16x128xf32>
    %5 = arith.addf %2, %4 : vector<16x128xf32>
    %6 = arith.negf %5 : vector<16x128xf32>
    %7 = math.exp %6 : vector<16x128xf32>
    %cst_5 = arith.constant 1.000000e+00 : f32
    %8 = vector.broadcast %cst_5 : f32 to vector<16x128xf32>
    %9 = arith.addf %8, %7 : vector<16x128xf32>
    %10 = arith.divf %8, %9 : vector<16x128xf32>
    %11 = arith.mulf %5, %10 : vector<16x128xf32>
    %c0_6 = arith.constant 0 : index
    %c0_7 = arith.constant 0 : index
    %12 = vector.load %arg4[%c0_6, %c0_7] : memref<16x128xf32, #tpu.memory_space<vmem>>, vector<16x128xf32>
    tpu.vector_store %arg4[%c0_6, %c0_7], %11 {strides = array<i32>} : memref<16x128xf32, #tpu.memory_space<vmem>>, vector<16x128xf32>,
    return
  }
  func.func @transform_0(%arg0: i32) -> (i32, i32) {
    %c0_i32 = arith.constant 0 : i32
    %c0_i32_0 = arith.constant 0 : i32
    %c0_i32_1 = arith.constant 0 : i32
    return %c0_i32, %c0_i32_0 : i32, i32
  }
  func.func @transform_1(%arg0: i32) -> (i32, i32) {
    %c0_i32 = arith.constant 0 : i32
    %c0_i32_0 = arith.constant 0 : i32
    return %c0_i32, %arg0 : i32, i32
  }
  func.func @transform_2(%arg0: i32) -> (i32, i32) {
    %c0_i32 = arith.constant 0 : i32
    %c0_i32_0 = arith.constant 0 : i32
    %c0_i32_1 = arith.constant 0 : i32
    return %c0_i32, %c0_i32_0 : i32, i32
  }
  func.func @transform_3(%arg0: i32) -> (i32, i32) {
    %c0_i32 = arith.constant 0 : i32
    %c0_i32_0 = arith.constant 0 : i32
    return %c0_i32, %arg0 : i32, i32
  }
}

module attributes {stable_mosaic.version = 11 : i64} {
  func.func @_enc_head_kernel(%arg0: memref<16x32xf32, #tpu.memory_space<vmem>>, %arg1: memref<16x16xf32, #tpu.memory_space<vmem>>, %arg2: memref<16x16xf32, #tpu.memory_space<vmem>>, %arg3: memref<16x1xf32, #tpu.memory_space<vmem>>, %arg4: memref<16x1xf32, #tpu.memory_space<vmem>>, %arg5: memref<16x32xf32, #tpu.memory_space<vmem>>, %arg6: memref<16x32xf32, #tpu.memory_space<vmem>>, %arg7: memref<16x32xf32, #tpu.memory_space<vmem>>, %arg8: memref<16x32xf32, #tpu.memory_space<vmem>>, %arg9: memref<16x32xf32, #tpu.memory_space<vmem>>, %arg10: memref<1x1xf32, #tpu.memory_space<smem>>) attributes {dimension_semantics = [], scalar_prefetch = 0 : i64, scratch_operands = 0 : i64, tpu.core_type = #tpu.core_type<tc>} {
    %c0 = arith.constant 0 : index
    %c0_0 = arith.constant 0 : index
    %0 = vector.load %arg0[%c0, %c0_0] : memref<16x32xf32, #tpu.memory_space<vmem>>, vector<16x32xf32>
    %c0_1 = arith.constant 0 : index
    %c0_2 = arith.constant 0 : index
    %1 = vector.load %arg1[%c0_1, %c0_2] : memref<16x16xf32, #tpu.memory_space<vmem>>, vector<16x16xf32>
    %cst = arith.constant dense<0.000000e+00> : vector<16x32xf32>
    %2 = tpu.matmul %1, %0, %cst {dimension_numbers = #tpu.dot_dimension_numbers<[1], [0], [0], [1], [0, 0, 1, 1], [], []>} : vector<16x16xf32>, vector<16x32xf32>, vector<16x32xf32> -> vector<16x32xf32>
    %c0_3 = arith.constant 0 : index
    %c0_4 = arith.constant 0 : index
    %3 = vector.load %arg3[%c0_3, %c0_4] : memref<16x1xf32, #tpu.memory_space<vmem>>, vector<16x1xf32>
    %4 = vector.broadcast %3 : vector<16x1xf32> to vector<16x32xf32>
    %5 = arith.addf %2, %4 : vector<16x32xf32>
    %c0_5 = arith.constant 0 : index
    %c0_6 = arith.constant 0 : index
    %6 = vector.load %arg2[%c0_5, %c0_6] : memref<16x16xf32, #tpu.memory_space<vmem>>, vector<16x16xf32>
    %cst_7 = arith.constant dense<0.000000e+00> : vector<16x32xf32>
    %7 = tpu.matmul %6, %0, %cst_7 {dimension_numbers = #tpu.dot_dimension_numbers<[1], [0], [0], [1], [0, 0, 1, 1], [], []>} : vector<16x16xf32>, vector<16x32xf32>, vector<16x32xf32> -> vector<16x32xf32>
    %c0_8 = arith.constant 0 : index
    %c0_9 = arith.constant 0 : index
    %8 = vector.load %arg4[%c0_8, %c0_9] : memref<16x1xf32, #tpu.memory_space<vmem>>, vector<16x1xf32>
    %9 = vector.broadcast %8 : vector<16x1xf32> to vector<16x32xf32>
    %10 = arith.addf %7, %9 : vector<16x32xf32>
    %cst_10 = arith.constant 5.000000e-01 : f32
    %11 = vector.broadcast %cst_10 : f32 to vector<16x32xf32>
    %12 = arith.mulf %11, %10 : vector<16x32xf32>
    %13 = math.exp %12 : vector<16x32xf32>
    %c0_11 = arith.constant 0 : index
    %c0_12 = arith.constant 0 : index
    %14 = vector.load %arg5[%c0_11, %c0_12] : memref<16x32xf32, #tpu.memory_space<vmem>>, vector<16x32xf32>
    %15 = arith.mulf %13, %14 : vector<16x32xf32>
    %16 = arith.addf %5, %15 : vector<16x32xf32>
    %c0_13 = arith.constant 0 : index
    %c0_14 = arith.constant 0 : index
    %17 = vector.load %arg6[%c0_13, %c0_14] : memref<16x32xf32, #tpu.memory_space<vmem>>, vector<16x32xf32>
    %cst_15 = arith.constant 3.000000e-01 : f32
    %18 = vector.broadcast %cst_15 : f32 to vector<16x32xf32>
    %19 = arith.mulf %18, %17 : vector<16x32xf32>
    %20 = arith.addf %16, %19 : vector<16x32xf32>
    %c0_16 = arith.constant 0 : index
    %c0_17 = arith.constant 0 : index
    %21 = vector.load %arg7[%c0_16, %c0_17] : memref<16x32xf32, #tpu.memory_space<vmem>>, vector<16x32xf32>
    tpu.vector_store %arg7[%c0_16, %c0_17], %20 {strides = array<i32>} : memref<16x32xf32, #tpu.memory_space<vmem>>, vector<16x32xf32>,
    %c0_18 = arith.constant 0 : index
    %c0_19 = arith.constant 0 : index
    %22 = vector.load %arg8[%c0_18, %c0_19] : memref<16x32xf32, #tpu.memory_space<vmem>>, vector<16x32xf32>
    tpu.vector_store %arg8[%c0_18, %c0_19], %5 {strides = array<i32>} : memref<16x32xf32, #tpu.memory_space<vmem>>, vector<16x32xf32>,
    %c0_20 = arith.constant 0 : index
    %c0_21 = arith.constant 0 : index
    %23 = vector.load %arg9[%c0_20, %c0_21] : memref<16x32xf32, #tpu.memory_space<vmem>>, vector<16x32xf32>
    tpu.vector_store %arg9[%c0_20, %c0_21], %10 {strides = array<i32>} : memref<16x32xf32, #tpu.memory_space<vmem>>, vector<16x32xf32>,
    %cst_22 = arith.constant 1.000000e+00 : f32
    %24 = vector.broadcast %cst_22 : f32 to vector<16x32xf32>
    %25 = arith.addf %24, %10 : vector<16x32xf32>
    %26 = arith.mulf %5, %5 : vector<16x32xf32>
    %27 = arith.subf %25, %26 : vector<16x32xf32>
    %28 = math.exp %10 : vector<16x32xf32>
    %29 = arith.subf %27, %28 : vector<16x32xf32>
    %30 = vector.shape_cast %29 : vector<16x32xf32> to vector<1x16x32xf32>
    %cst_23 = arith.constant dense<0.000000e+00> : vector<1xf32>
    %31 = vector.multi_reduction <add>, %30, %cst_23 [1, 2] : vector<1x16x32xf32> to vector<1xf32>
    %32 = vector.shape_cast %31 : vector<1xf32> to vector<1x1x1xf32>
    %33 = vector.extract %32[0, 0, 0] : f32 from vector<1x1x1xf32>
    %cst_24 = arith.constant -5.000000e-01 : f32
    %34 = arith.mulf %cst_24, %33 : f32
    %cst_25 = arith.constant 2.000000e+00 : f32
    %35 = arith.divf %34, %cst_25 : f32
    %c0_26 = arith.constant 0 : index
    %c0_27 = arith.constant 0 : index
    %36 = memref.load %arg10[%c0_26, %c0_27] : memref<1x1xf32, #tpu.memory_space<smem>>
    memref.store %35, %arg10[%c0_26, %c0_27] : memref<1x1xf32, #tpu.memory_space<smem>>
    return
  }
}

module attributes {stable_mosaic.version = 11 : i64} {
  func.func @_matmul_act_kernel(%arg0: i32, %arg1: memref<16x144xbf16, #tpu.memory_space<vmem>>, %arg2: memref<144x128xbf16, #tpu.memory_space<vmem>>, %arg3: memref<16x1xf32, #tpu.memory_space<vmem>>, %arg4: memref<16x128xf32, #tpu.memory_space<vmem>>) attributes {dimension_semantics = [#tpu.dimension_semantics<parallel>], iteration_bounds = array<i64: 1>, scalar_prefetch = 0 : i64, scratch_operands = 0 : i64, tpu.core_type = #tpu.core_type<tc>, window_params = [{pipeline_mode = #tpu.pipeline_mode<synchronous>, transform_indices = @transform_0, window_bounds = array<i64: 16, 144>}, {transform_indices = @transform_1, window_bounds = array<i64: 144, 128>}, {pipeline_mode = #tpu.pipeline_mode<synchronous>, transform_indices = @transform_2, window_bounds = array<i64: 16, 1>}, {transform_indices = @transform_3, window_bounds = array<i64: 16, 128>}]} {
    %c0 = arith.constant 0 : index
    %c0_0 = arith.constant 0 : index
    %0 = vector.load %arg1[%c0, %c0_0] : memref<16x144xbf16, #tpu.memory_space<vmem>>, vector<16x144xbf16>
    %c0_1 = arith.constant 0 : index
    %c0_2 = arith.constant 0 : index
    %1 = vector.load %arg2[%c0_1, %c0_2] : memref<144x128xbf16, #tpu.memory_space<vmem>>, vector<144x128xbf16>
    %cst = arith.constant dense<0.000000e+00> : vector<16x128xf32>
    %2 = tpu.matmul %0, %1, %cst {dimension_numbers = #tpu.dot_dimension_numbers<[1], [0], [0], [1], [0, 0, 1, 1], [], []>} : vector<16x144xbf16>, vector<144x128xbf16>, vector<16x128xf32> -> vector<16x128xf32>
    %c0_3 = arith.constant 0 : index
    %c0_4 = arith.constant 0 : index
    %3 = vector.load %arg3[%c0_3, %c0_4] : memref<16x1xf32, #tpu.memory_space<vmem>>, vector<16x1xf32>
    %4 = vector.broadcast %3 : vector<16x1xf32> to vector<16x128xf32>
    %5 = arith.addf %2, %4 : vector<16x128xf32>
    %6 = arith.negf %5 : vector<16x128xf32>
    %7 = math.exp %6 : vector<16x128xf32>
    %cst_5 = arith.constant 1.000000e+00 : f32
    %8 = vector.broadcast %cst_5 : f32 to vector<16x128xf32>
    %9 = arith.addf %8, %7 : vector<16x128xf32>
    %10 = arith.divf %8, %9 : vector<16x128xf32>
    %11 = arith.mulf %5, %10 : vector<16x128xf32>
    %c0_6 = arith.constant 0 : index
    %c0_7 = arith.constant 0 : index
    %12 = vector.load %arg4[%c0_6, %c0_7] : memref<16x128xf32, #tpu.memory_space<vmem>>, vector<16x128xf32>
    tpu.vector_store %arg4[%c0_6, %c0_7], %11 {strides = array<i32>} : memref<16x128xf32, #tpu.memory_space<vmem>>, vector<16x128xf32>,
    return
  }
  func.func @transform_0(%arg0: i32) -> (i32, i32) {
    %c0_i32 = arith.constant 0 : i32
    %c0_i32_0 = arith.constant 0 : i32
    %c0_i32_1 = arith.constant 0 : i32
    return %c0_i32, %c0_i32_0 : i32, i32
  }
  func.func @transform_1(%arg0: i32) -> (i32, i32) {
    %c0_i32 = arith.constant 0 : i32
    %c0_i32_0 = arith.constant 0 : i32
    return %c0_i32, %arg0 : i32, i32
  }
  func.func @transform_2(%arg0: i32) -> (i32, i32) {
    %c0_i32 = arith.constant 0 : i32
    %c0_i32_0 = arith.constant 0 : i32
    %c0_i32_1 = arith.constant 0 : i32
    return %c0_i32, %c0_i32_0 : i32, i32
  }
  func.func @transform_3(%arg0: i32) -> (i32, i32) {
    %c0_i32 = arith.constant 0 : i32
    %c0_i32_0 = arith.constant 0 : i32
    return %c0_i32, %arg0 : i32, i32
  }
}

module attributes {stable_mosaic.version = 11 : i64} {
  func.func @_matmul_act_kernel(%arg0: i32, %arg1: memref<8x144xbf16, #tpu.memory_space<vmem>>, %arg2: memref<144x128xbf16, #tpu.memory_space<vmem>>, %arg3: memref<8x1xf32, #tpu.memory_space<vmem>>, %arg4: memref<8x128xf32, #tpu.memory_space<vmem>>) attributes {dimension_semantics = [#tpu.dimension_semantics<parallel>], iteration_bounds = array<i64: 1>, scalar_prefetch = 0 : i64, scratch_operands = 0 : i64, tpu.core_type = #tpu.core_type<tc>, window_params = [{pipeline_mode = #tpu.pipeline_mode<synchronous>, transform_indices = @transform_0, window_bounds = array<i64: 8, 144>}, {transform_indices = @transform_1, window_bounds = array<i64: 144, 128>}, {pipeline_mode = #tpu.pipeline_mode<synchronous>, transform_indices = @transform_2, window_bounds = array<i64: 8, 1>}, {transform_indices = @transform_3, window_bounds = array<i64: 8, 128>}]} {
    %c0 = arith.constant 0 : index
    %c0_0 = arith.constant 0 : index
    %0 = vector.load %arg1[%c0, %c0_0] : memref<8x144xbf16, #tpu.memory_space<vmem>>, vector<8x144xbf16>
    %c0_1 = arith.constant 0 : index
    %c0_2 = arith.constant 0 : index
    %1 = vector.load %arg2[%c0_1, %c0_2] : memref<144x128xbf16, #tpu.memory_space<vmem>>, vector<144x128xbf16>
    %cst = arith.constant dense<0.000000e+00> : vector<8x128xf32>
    %2 = tpu.matmul %0, %1, %cst {dimension_numbers = #tpu.dot_dimension_numbers<[1], [0], [0], [1], [0, 0, 1, 1], [], []>} : vector<8x144xbf16>, vector<144x128xbf16>, vector<8x128xf32> -> vector<8x128xf32>
    %c0_3 = arith.constant 0 : index
    %c0_4 = arith.constant 0 : index
    %3 = vector.load %arg3[%c0_3, %c0_4] : memref<8x1xf32, #tpu.memory_space<vmem>>, vector<8x1xf32>
    %4 = vector.broadcast %3 : vector<8x1xf32> to vector<8x128xf32>
    %5 = arith.addf %2, %4 : vector<8x128xf32>
    %6 = arith.negf %5 : vector<8x128xf32>
    %7 = math.exp %6 : vector<8x128xf32>
    %cst_5 = arith.constant 1.000000e+00 : f32
    %8 = vector.broadcast %cst_5 : f32 to vector<8x128xf32>
    %9 = arith.addf %8, %7 : vector<8x128xf32>
    %10 = arith.divf %8, %9 : vector<8x128xf32>
    %11 = arith.mulf %5, %10 : vector<8x128xf32>
    %c0_6 = arith.constant 0 : index
    %c0_7 = arith.constant 0 : index
    %12 = vector.load %arg4[%c0_6, %c0_7] : memref<8x128xf32, #tpu.memory_space<vmem>>, vector<8x128xf32>
    tpu.vector_store %arg4[%c0_6, %c0_7], %11 {strides = array<i32>} : memref<8x128xf32, #tpu.memory_space<vmem>>, vector<8x128xf32>,
    return
  }
  func.func @transform_0(%arg0: i32) -> (i32, i32) {
    %c0_i32 = arith.constant 0 : i32
    %c0_i32_0 = arith.constant 0 : i32
    %c0_i32_1 = arith.constant 0 : i32
    return %c0_i32, %c0_i32_0 : i32, i32
  }
  func.func @transform_1(%arg0: i32) -> (i32, i32) {
    %c0_i32 = arith.constant 0 : i32
    %c0_i32_0 = arith.constant 0 : i32
    return %c0_i32, %arg0 : i32, i32
  }
  func.func @transform_2(%arg0: i32) -> (i32, i32) {
    %c0_i32 = arith.constant 0 : i32
    %c0_i32_0 = arith.constant 0 : i32
    %c0_i32_1 = arith.constant 0 : i32
    return %c0_i32, %c0_i32_0 : i32, i32
  }
  func.func @transform_3(%arg0: i32) -> (i32, i32) {
    %c0_i32 = arith.constant 0 : i32
    %c0_i32_0 = arith.constant 0 : i32
    return %c0_i32, %arg0 : i32, i32
  }
}

module attributes {stable_mosaic.version = 11 : i64} {
  func.func @_dec_level_kernel(%arg0: memref<8x128xf32, #tpu.memory_space<vmem>>, %arg1: memref<8x128xf32, #tpu.memory_space<vmem>>, %arg2: memref<8x8xf32, #tpu.memory_space<vmem>>, %arg3: memref<8x8xf32, #tpu.memory_space<vmem>>, %arg4: memref<8x8xf32, #tpu.memory_space<vmem>>, %arg5: memref<8x8xf32, #tpu.memory_space<vmem>>, %arg6: memref<8x1xf32, #tpu.memory_space<vmem>>, %arg7: memref<8x1xf32, #tpu.memory_space<vmem>>, %arg8: memref<8x128xf32, #tpu.memory_space<vmem>>, %arg9: memref<8x128xf32, #tpu.memory_space<vmem>>, %arg10: memref<1x1xf32, #tpu.memory_space<smem>>) attributes {dimension_semantics = [], scalar_prefetch = 0 : i64, scratch_operands = 0 : i64, tpu.core_type = #tpu.core_type<tc>} {
    %c0 = arith.constant 0 : index
    %c0_0 = arith.constant 0 : index
    %0 = vector.load %arg0[%c0, %c0_0] : memref<8x128xf32, #tpu.memory_space<vmem>>, vector<8x128xf32>
    %c0_1 = arith.constant 0 : index
    %c0_2 = arith.constant 0 : index
    %1 = vector.load %arg1[%c0_1, %c0_2] : memref<8x128xf32, #tpu.memory_space<vmem>>, vector<8x128xf32>
    %c0_3 = arith.constant 0 : index
    %c0_4 = arith.constant 0 : index
    %2 = vector.load %arg2[%c0_3, %c0_4] : memref<8x8xf32, #tpu.memory_space<vmem>>, vector<8x8xf32>
    %cst = arith.constant dense<0.000000e+00> : vector<8x128xf32>
    %3 = tpu.matmul %2, %0, %cst {dimension_numbers = #tpu.dot_dimension_numbers<[1], [0], [0], [1], [0, 0, 1, 1], [], []>} : vector<8x8xf32>, vector<8x128xf32>, vector<8x128xf32> -> vector<8x128xf32>
    %c0_5 = arith.constant 0 : index
    %c0_6 = arith.constant 0 : index
    %4 = vector.load %arg3[%c0_5, %c0_6] : memref<8x8xf32, #tpu.memory_space<vmem>>, vector<8x8xf32>
    %cst_7 = arith.constant dense<0.000000e+00> : vector<8x128xf32>
    %5 = tpu.matmul %4, %1, %cst_7 {dimension_numbers = #tpu.dot_dimension_numbers<[1], [0], [0], [1], [0, 0, 1, 1], [], []>} : vector<8x8xf32>, vector<8x128xf32>, vector<8x128xf32> -> vector<8x128xf32>
    %6 = arith.addf %3, %5 : vector<8x128xf32>
    %c0_8 = arith.constant 0 : index
    %c0_9 = arith.constant 0 : index
    %7 = vector.load %arg6[%c0_8, %c0_9] : memref<8x1xf32, #tpu.memory_space<vmem>>, vector<8x1xf32>
    %8 = vector.broadcast %7 : vector<8x1xf32> to vector<8x128xf32>
    %9 = arith.addf %6, %8 : vector<8x128xf32>
    %c0_10 = arith.constant 0 : index
    %c0_11 = arith.constant 0 : index
    %10 = vector.load %arg4[%c0_10, %c0_11] : memref<8x8xf32, #tpu.memory_space<vmem>>, vector<8x8xf32>
    %cst_12 = arith.constant dense<0.000000e+00> : vector<8x128xf32>
    %11 = tpu.matmul %10, %0, %cst_12 {dimension_numbers = #tpu.dot_dimension_numbers<[1], [0], [0], [1], [0, 0, 1, 1], [], []>} : vector<8x8xf32>, vector<8x128xf32>, vector<8x128xf32> -> vector<8x128xf32>
    %c0_13 = arith.constant 0 : index
    %c0_14 = arith.constant 0 : index
    %12 = vector.load %arg5[%c0_13, %c0_14] : memref<8x8xf32, #tpu.memory_space<vmem>>, vector<8x8xf32>
    %cst_15 = arith.constant dense<0.000000e+00> : vector<8x128xf32>
    %13 = tpu.matmul %12, %1, %cst_15 {dimension_numbers = #tpu.dot_dimension_numbers<[1], [0], [0], [1], [0, 0, 1, 1], [], []>} : vector<8x8xf32>, vector<8x128xf32>, vector<8x128xf32> -> vector<8x128xf32>
    %14 = arith.addf %11, %13 : vector<8x128xf32>
    %c0_16 = arith.constant 0 : index
    %c0_17 = arith.constant 0 : index
    %15 = vector.load %arg7[%c0_16, %c0_17] : memref<8x1xf32, #tpu.memory_space<vmem>>, vector<8x1xf32>
    %16 = vector.broadcast %15 : vector<8x1xf32> to vector<8x128xf32>
    %17 = arith.addf %14, %16 : vector<8x128xf32>
    %18 = arith.addf %0, %9 : vector<8x128xf32>
    %cst_18 = arith.constant 5.000000e-01 : f32
    %19 = vector.broadcast %cst_18 : f32 to vector<8x128xf32>
    %20 = arith.mulf %19, %17 : vector<8x128xf32>
    %21 = math.exp %20 : vector<8x128xf32>
    %c0_19 = arith.constant 0 : index
    %c0_20 = arith.constant 0 : index
    %22 = vector.load %arg8[%c0_19, %c0_20] : memref<8x128xf32, #tpu.memory_space<vmem>>, vector<8x128xf32>
    %23 = arith.mulf %21, %22 : vector<8x128xf32>
    %24 = arith.addf %18, %23 : vector<8x128xf32>
    %c0_21 = arith.constant 0 : index
    %c0_22 = arith.constant 0 : index
    %25 = vector.load %arg9[%c0_21, %c0_22] : memref<8x128xf32, #tpu.memory_space<vmem>>, vector<8x128xf32>
    tpu.vector_store %arg9[%c0_21, %c0_22], %24 {strides = array<i32>} : memref<8x128xf32, #tpu.memory_space<vmem>>, vector<8x128xf32>,
    %cst_23 = arith.constant 1.000000e+00 : f32
    %26 = vector.broadcast %cst_23 : f32 to vector<8x128xf32>
    %27 = arith.addf %26, %17 : vector<8x128xf32>
    %28 = arith.mulf %9, %9 : vector<8x128xf32>
    %29 = arith.subf %27, %28 : vector<8x128xf32>
    %30 = math.exp %17 : vector<8x128xf32>
    %31 = arith.subf %29, %30 : vector<8x128xf32>
    %32 = vector.shape_cast %31 : vector<8x128xf32> to vector<1x8x128xf32>
    %cst_24 = arith.constant dense<0.000000e+00> : vector<1xf32>
    %33 = vector.multi_reduction <add>, %32, %cst_24 [1, 2] : vector<1x8x128xf32> to vector<1xf32>
    %34 = vector.shape_cast %33 : vector<1xf32> to vector<1x1x1xf32>
    %35 = vector.extract %34[0, 0, 0] : f32 from vector<1x1x1xf32>
    %cst_25 = arith.constant -5.000000e-01 : f32
    %36 = arith.mulf %cst_25, %35 : f32
    %cst_26 = arith.constant 2.000000e+00 : f32
    %37 = arith.divf %36, %cst_26 : f32
    %c0_27 = arith.constant 0 : index
    %c0_28 = arith.constant 0 : index
    %38 = memref.load %arg10[%c0_27, %c0_28] : memref<1x1xf32, #tpu.memory_space<smem>>
    memref.store %37, %arg10[%c0_27, %c0_28] : memref<1x1xf32, #tpu.memory_space<smem>>
    return
  }
}

module attributes {stable_mosaic.version = 11 : i64} {
  func.func @_matmul_act_kernel(%arg0: i32, %arg1: memref<4x72xbf16, #tpu.memory_space<vmem>>, %arg2: memref<72x512xbf16, #tpu.memory_space<vmem>>, %arg3: memref<4x1xf32, #tpu.memory_space<vmem>>, %arg4: memref<4x512xf32, #tpu.memory_space<vmem>>) attributes {dimension_semantics = [#tpu.dimension_semantics<parallel>], iteration_bounds = array<i64: 1>, scalar_prefetch = 0 : i64, scratch_operands = 0 : i64, tpu.core_type = #tpu.core_type<tc>, window_params = [{pipeline_mode = #tpu.pipeline_mode<synchronous>, transform_indices = @transform_0, window_bounds = array<i64: 4, 72>}, {transform_indices = @transform_1, window_bounds = array<i64: 72, 512>}, {pipeline_mode = #tpu.pipeline_mode<synchronous>, transform_indices = @transform_2, window_bounds = array<i64: 4, 1>}, {transform_indices = @transform_3, window_bounds = array<i64: 4, 512>}]} {
    %c0 = arith.constant 0 : index
    %c0_0 = arith.constant 0 : index
    %0 = vector.load %arg1[%c0, %c0_0] : memref<4x72xbf16, #tpu.memory_space<vmem>>, vector<4x72xbf16>
    %c0_1 = arith.constant 0 : index
    %c0_2 = arith.constant 0 : index
    %1 = vector.load %arg2[%c0_1, %c0_2] : memref<72x512xbf16, #tpu.memory_space<vmem>>, vector<72x512xbf16>
    %cst = arith.constant dense<0.000000e+00> : vector<4x512xf32>
    %2 = tpu.matmul %0, %1, %cst {dimension_numbers = #tpu.dot_dimension_numbers<[1], [0], [0], [1], [0, 0, 1, 1], [], []>} : vector<4x72xbf16>, vector<72x512xbf16>, vector<4x512xf32> -> vector<4x512xf32>
    %c0_3 = arith.constant 0 : index
    %c0_4 = arith.constant 0 : index
    %3 = vector.load %arg3[%c0_3, %c0_4] : memref<4x1xf32, #tpu.memory_space<vmem>>, vector<4x1xf32>
    %4 = vector.broadcast %3 : vector<4x1xf32> to vector<4x512xf32>
    %5 = arith.addf %2, %4 : vector<4x512xf32>
    %6 = arith.negf %5 : vector<4x512xf32>
    %7 = math.exp %6 : vector<4x512xf32>
    %cst_5 = arith.constant 1.000000e+00 : f32
    %8 = vector.broadcast %cst_5 : f32 to vector<4x512xf32>
    %9 = arith.addf %8, %7 : vector<4x512xf32>
    %10 = arith.divf %8, %9 : vector<4x512xf32>
    %11 = arith.mulf %5, %10 : vector<4x512xf32>
    %c0_6 = arith.constant 0 : index
    %c0_7 = arith.constant 0 : index
    %12 = vector.load %arg4[%c0_6, %c0_7] : memref<4x512xf32, #tpu.memory_space<vmem>>, vector<4x512xf32>
    tpu.vector_store %arg4[%c0_6, %c0_7], %11 {strides = array<i32>} : memref<4x512xf32, #tpu.memory_space<vmem>>, vector<4x512xf32>,
    return
  }
  func.func @transform_0(%arg0: i32) -> (i32, i32) {
    %c0_i32 = arith.constant 0 : i32
    %c0_i32_0 = arith.constant 0 : i32
    %c0_i32_1 = arith.constant 0 : i32
    return %c0_i32, %c0_i32_0 : i32, i32
  }
  func.func @transform_1(%arg0: i32) -> (i32, i32) {
    %c0_i32 = arith.constant 0 : i32
    %c0_i32_0 = arith.constant 0 : i32
    return %c0_i32, %arg0 : i32, i32
  }
  func.func @transform_2(%arg0: i32) -> (i32, i32) {
    %c0_i32 = arith.constant 0 : i32
    %c0_i32_0 = arith.constant 0 : i32
    %c0_i32_1 = arith.constant 0 : i32
    return %c0_i32, %c0_i32_0 : i32, i32
  }
  func.func @transform_3(%arg0: i32) -> (i32, i32) {
    %c0_i32 = arith.constant 0 : i32
    %c0_i32_0 = arith.constant 0 : i32
    return %c0_i32, %arg0 : i32, i32
  }
}

module attributes {stable_mosaic.version = 11 : i64} {
  func.func @_dec_level_kernel(%arg0: memref<4x512xf32, #tpu.memory_space<vmem>>, %arg1: memref<4x512xf32, #tpu.memory_space<vmem>>, %arg2: memref<4x4xf32, #tpu.memory_space<vmem>>, %arg3: memref<4x4xf32, #tpu.memory_space<vmem>>, %arg4: memref<4x4xf32, #tpu.memory_space<vmem>>, %arg5: memref<4x4xf32, #tpu.memory_space<vmem>>, %arg6: memref<4x1xf32, #tpu.memory_space<vmem>>, %arg7: memref<4x1xf32, #tpu.memory_space<vmem>>, %arg8: memref<4x512xf32, #tpu.memory_space<vmem>>, %arg9: memref<4x512xf32, #tpu.memory_space<vmem>>, %arg10: memref<1x1xf32, #tpu.memory_space<smem>>) attributes {dimension_semantics = [], scalar_prefetch = 0 : i64, scratch_operands = 0 : i64, tpu.core_type = #tpu.core_type<tc>} {
    %c0 = arith.constant 0 : index
    %c0_0 = arith.constant 0 : index
    %0 = vector.load %arg0[%c0, %c0_0] : memref<4x512xf32, #tpu.memory_space<vmem>>, vector<4x512xf32>
    %c0_1 = arith.constant 0 : index
    %c0_2 = arith.constant 0 : index
    %1 = vector.load %arg1[%c0_1, %c0_2] : memref<4x512xf32, #tpu.memory_space<vmem>>, vector<4x512xf32>
    %c0_3 = arith.constant 0 : index
    %c0_4 = arith.constant 0 : index
    %2 = vector.load %arg2[%c0_3, %c0_4] : memref<4x4xf32, #tpu.memory_space<vmem>>, vector<4x4xf32>
    %cst = arith.constant dense<0.000000e+00> : vector<4x512xf32>
    %3 = tpu.matmul %2, %0, %cst {dimension_numbers = #tpu.dot_dimension_numbers<[1], [0], [0], [1], [0, 0, 1, 1], [], []>} : vector<4x4xf32>, vector<4x512xf32>, vector<4x512xf32> -> vector<4x512xf32>
    %c0_5 = arith.constant 0 : index
    %c0_6 = arith.constant 0 : index
    %4 = vector.load %arg3[%c0_5, %c0_6] : memref<4x4xf32, #tpu.memory_space<vmem>>, vector<4x4xf32>
    %cst_7 = arith.constant dense<0.000000e+00> : vector<4x512xf32>
    %5 = tpu.matmul %4, %1, %cst_7 {dimension_numbers = #tpu.dot_dimension_numbers<[1], [0], [0], [1], [0, 0, 1, 1], [], []>} : vector<4x4xf32>, vector<4x512xf32>, vector<4x512xf32> -> vector<4x512xf32>
    %6 = arith.addf %3, %5 : vector<4x512xf32>
    %c0_8 = arith.constant 0 : index
    %c0_9 = arith.constant 0 : index
    %7 = vector.load %arg6[%c0_8, %c0_9] : memref<4x1xf32, #tpu.memory_space<vmem>>, vector<4x1xf32>
    %8 = vector.broadcast %7 : vector<4x1xf32> to vector<4x512xf32>
    %9 = arith.addf %6, %8 : vector<4x512xf32>
    %c0_10 = arith.constant 0 : index
    %c0_11 = arith.constant 0 : index
    %10 = vector.load %arg4[%c0_10, %c0_11] : memref<4x4xf32, #tpu.memory_space<vmem>>, vector<4x4xf32>
    %cst_12 = arith.constant dense<0.000000e+00> : vector<4x512xf32>
    %11 = tpu.matmul %10, %0, %cst_12 {dimension_numbers = #tpu.dot_dimension_numbers<[1], [0], [0], [1], [0, 0, 1, 1], [], []>} : vector<4x4xf32>, vector<4x512xf32>, vector<4x512xf32> -> vector<4x512xf32>
    %c0_13 = arith.constant 0 : index
    %c0_14 = arith.constant 0 : index
    %12 = vector.load %arg5[%c0_13, %c0_14] : memref<4x4xf32, #tpu.memory_space<vmem>>, vector<4x4xf32>
    %cst_15 = arith.constant dense<0.000000e+00> : vector<4x512xf32>
    %13 = tpu.matmul %12, %1, %cst_15 {dimension_numbers = #tpu.dot_dimension_numbers<[1], [0], [0], [1], [0, 0, 1, 1], [], []>} : vector<4x4xf32>, vector<4x512xf32>, vector<4x512xf32> -> vector<4x512xf32>
    %14 = arith.addf %11, %13 : vector<4x512xf32>
    %c0_16 = arith.constant 0 : index
    %c0_17 = arith.constant 0 : index
    %15 = vector.load %arg7[%c0_16, %c0_17] : memref<4x1xf32, #tpu.memory_space<vmem>>, vector<4x1xf32>
    %16 = vector.broadcast %15 : vector<4x1xf32> to vector<4x512xf32>
    %17 = arith.addf %14, %16 : vector<4x512xf32>
    %18 = arith.addf %0, %9 : vector<4x512xf32>
    %cst_18 = arith.constant 5.000000e-01 : f32
    %19 = vector.broadcast %cst_18 : f32 to vector<4x512xf32>
    %20 = arith.mulf %19, %17 : vector<4x512xf32>
    %21 = math.exp %20 : vector<4x512xf32>
    %c0_19 = arith.constant 0 : index
    %c0_20 = arith.constant 0 : index
    %22 = vector.load %arg8[%c0_19, %c0_20] : memref<4x512xf32, #tpu.memory_space<vmem>>, vector<4x512xf32>
    %23 = arith.mulf %21, %22 : vector<4x512xf32>
    %24 = arith.addf %18, %23 : vector<4x512xf32>
    %c0_21 = arith.constant 0 : index
    %c0_22 = arith.constant 0 : index
    %25 = vector.load %arg9[%c0_21, %c0_22] : memref<4x512xf32, #tpu.memory_space<vmem>>, vector<4x512xf32>
    tpu.vector_store %arg9[%c0_21, %c0_22], %24 {strides = array<i32>} : memref<4x512xf32, #tpu.memory_space<vmem>>, vector<4x512xf32>,
    %cst_23 = arith.constant 1.000000e+00 : f32
    %26 = vector.broadcast %cst_23 : f32 to vector<4x512xf32>
    %27 = arith.addf %26, %17 : vector<4x512xf32>
    %28 = arith.mulf %9, %9 : vector<4x512xf32>
    %29 = arith.subf %27, %28 : vector<4x512xf32>
    %30 = math.exp %17 : vector<4x512xf32>
    %31 = arith.subf %29, %30 : vector<4x512xf32>
    %32 = vector.shape_cast %31 : vector<4x512xf32> to vector<1x4x512xf32>
    %cst_24 = arith.constant dense<0.000000e+00> : vector<1xf32>
    %33 = vector.multi_reduction <add>, %32, %cst_24 [1, 2] : vector<1x4x512xf32> to vector<1xf32>
    %34 = vector.shape_cast %33 : vector<1xf32> to vector<1x1x1xf32>
    %35 = vector.extract %34[0, 0, 0] : f32 from vector<1x1x1xf32>
    %cst_25 = arith.constant -5.000000e-01 : f32
    %36 = arith.mulf %cst_25, %35 : f32
    %cst_26 = arith.constant 2.000000e+00 : f32
    %37 = arith.divf %36, %cst_26 : f32
    %c0_27 = arith.constant 0 : index
    %c0_28 = arith.constant 0 : index
    %38 = memref.load %arg10[%c0_27, %c0_28] : memref<1x1xf32, #tpu.memory_space<smem>>
    memref.store %37, %arg10[%c0_27, %c0_28] : memref<1x1xf32, #tpu.memory_space<smem>>
    return
  }
}

module attributes {stable_mosaic.version = 11 : i64} {
  func.func @_matmul_act_kernel(%arg0: i32, %arg1: memref<4x36xbf16, #tpu.memory_space<vmem>>, %arg2: memref<36x1024xbf16, #tpu.memory_space<vmem>>, %arg3: memref<4x1xf32, #tpu.memory_space<vmem>>, %arg4: memref<4x1024xf32, #tpu.memory_space<vmem>>) attributes {dimension_semantics = [#tpu.dimension_semantics<parallel>], iteration_bounds = array<i64: 2>, scalar_prefetch = 0 : i64, scratch_operands = 0 : i64, tpu.core_type = #tpu.core_type<tc>, window_params = [{pipeline_mode = #tpu.pipeline_mode<synchronous>, transform_indices = @transform_0, window_bounds = array<i64: 4, 36>}, {transform_indices = @transform_1, window_bounds = array<i64: 36, 1024>}, {pipeline_mode = #tpu.pipeline_mode<synchronous>, transform_indices = @transform_2, window_bounds = array<i64: 4, 1>}, {transform_indices = @transform_3, window_bounds = array<i64: 4, 1024>}]} {
    %c0 = arith.constant 0 : index
    %c0_0 = arith.constant 0 : index
    %0 = vector.load %arg1[%c0, %c0_0] : memref<4x36xbf16, #tpu.memory_space<vmem>>, vector<4x36xbf16>
    %c0_1 = arith.constant 0 : index
    %c0_2 = arith.constant 0 : index
    %1 = vector.load %arg2[%c0_1, %c0_2] : memref<36x1024xbf16, #tpu.memory_space<vmem>>, vector<36x1024xbf16>
    %cst = arith.constant dense<0.000000e+00> : vector<4x1024xf32>
    %2 = tpu.matmul %0, %1, %cst {dimension_numbers = #tpu.dot_dimension_numbers<[1], [0], [0], [1], [0, 0, 1, 1], [], []>} : vector<4x36xbf16>, vector<36x1024xbf16>, vector<4x1024xf32> -> vector<4x1024xf32>
    %c0_3 = arith.constant 0 : index
    %c0_4 = arith.constant 0 : index
    %3 = vector.load %arg3[%c0_3, %c0_4] : memref<4x1xf32, #tpu.memory_space<vmem>>, vector<4x1xf32>
    %4 = vector.broadcast %3 : vector<4x1xf32> to vector<4x1024xf32>
    %5 = arith.addf %2, %4 : vector<4x1024xf32>
    %6 = arith.negf %5 : vector<4x1024xf32>
    %7 = math.exp %6 : vector<4x1024xf32>
    %cst_5 = arith.constant 1.000000e+00 : f32
    %8 = vector.broadcast %cst_5 : f32 to vector<4x1024xf32>
    %9 = arith.addf %8, %7 : vector<4x1024xf32>
    %10 = arith.divf %8, %9 : vector<4x1024xf32>
    %11 = arith.mulf %5, %10 : vector<4x1024xf32>
    %c0_6 = arith.constant 0 : index
    %c0_7 = arith.constant 0 : index
    %12 = vector.load %arg4[%c0_6, %c0_7] : memref<4x1024xf32, #tpu.memory_space<vmem>>, vector<4x1024xf32>
    tpu.vector_store %arg4[%c0_6, %c0_7], %11 {strides = array<i32>} : memref<4x1024xf32, #tpu.memory_space<vmem>>, vector<4x1024xf32>,
    return
  }
  func.func @transform_0(%arg0: i32) -> (i32, i32) {
    %c0_i32 = arith.constant 0 : i32
    %c0_i32_0 = arith.constant 0 : i32
    %c0_i32_1 = arith.constant 0 : i32
    return %c0_i32, %c0_i32_0 : i32, i32
  }
  func.func @transform_1(%arg0: i32) -> (i32, i32) {
    %c0_i32 = arith.constant 0 : i32
    %c0_i32_0 = arith.constant 0 : i32
    return %c0_i32, %arg0 : i32, i32
  }
  func.func @transform_2(%arg0: i32) -> (i32, i32) {
    %c0_i32 = arith.constant 0 : i32
    %c0_i32_0 = arith.constant 0 : i32
    %c0_i32_1 = arith.constant 0 : i32
    return %c0_i32, %c0_i32_0 : i32, i32
  }
  func.func @transform_3(%arg0: i32) -> (i32, i32) {
    %c0_i32 = arith.constant 0 : i32
    %c0_i32_0 = arith.constant 0 : i32
    return %c0_i32, %arg0 : i32, i32
  }
}

module attributes {stable_mosaic.version = 11 : i64} {
  func.func @_matmul_act_kernel(%arg0: i32, %arg1: memref<3x36xbf16, #tpu.memory_space<vmem>>, %arg2: memref<36x1024xbf16, #tpu.memory_space<vmem>>, %arg3: memref<3x1xf32, #tpu.memory_space<vmem>>, %arg4: memref<3x1024xf32, #tpu.memory_space<vmem>>) attributes {dimension_semantics = [#tpu.dimension_semantics<parallel>], iteration_bounds = array<i64: 2>, scalar_prefetch = 0 : i64, scratch_operands = 0 : i64, tpu.core_type = #tpu.core_type<tc>, window_params = [{pipeline_mode = #tpu.pipeline_mode<synchronous>, transform_indices = @transform_0, window_bounds = array<i64: 3, 36>}, {transform_indices = @transform_1, window_bounds = array<i64: 36, 1024>}, {pipeline_mode = #tpu.pipeline_mode<synchronous>, transform_indices = @transform_2, window_bounds = array<i64: 3, 1>}, {transform_indices = @transform_3, window_bounds = array<i64: 3, 1024>}]} {
    %c0 = arith.constant 0 : index
    %c0_0 = arith.constant 0 : index
    %0 = vector.load %arg1[%c0, %c0_0] : memref<3x36xbf16, #tpu.memory_space<vmem>>, vector<3x36xbf16>
    %c0_1 = arith.constant 0 : index
    %c0_2 = arith.constant 0 : index
    %1 = vector.load %arg2[%c0_1, %c0_2] : memref<36x1024xbf16, #tpu.memory_space<vmem>>, vector<36x1024xbf16>
    %cst = arith.constant dense<0.000000e+00> : vector<3x1024xf32>
    %2 = tpu.matmul %0, %1, %cst {dimension_numbers = #tpu.dot_dimension_numbers<[1], [0], [0], [1], [0, 0, 1, 1], [], []>} : vector<3x36xbf16>, vector<36x1024xbf16>, vector<3x1024xf32> -> vector<3x1024xf32>
    %c0_3 = arith.constant 0 : index
    %c0_4 = arith.constant 0 : index
    %3 = vector.load %arg3[%c0_3, %c0_4] : memref<3x1xf32, #tpu.memory_space<vmem>>, vector<3x1xf32>
    %4 = vector.broadcast %3 : vector<3x1xf32> to vector<3x1024xf32>
    %5 = arith.addf %2, %4 : vector<3x1024xf32>
    %6 = arith.negf %5 : vector<3x1024xf32>
    %7 = math.exp %6 : vector<3x1024xf32>
    %cst_5 = arith.constant 1.000000e+00 : f32
    %8 = vector.broadcast %cst_5 : f32 to vector<3x1024xf32>
    %9 = arith.addf %8, %7 : vector<3x1024xf32>
    %10 = arith.divf %8, %9 : vector<3x1024xf32>
    %c0_6 = arith.constant 0 : index
    %c0_7 = arith.constant 0 : index
    %11 = vector.load %arg4[%c0_6, %c0_7] : memref<3x1024xf32, #tpu.memory_space<vmem>>, vector<3x1024xf32>
    tpu.vector_store %arg4[%c0_6, %c0_7], %10 {strides = array<i32>} : memref<3x1024xf32, #tpu.memory_space<vmem>>, vector<3x1024xf32>,
    return
  }
  func.func @transform_0(%arg0: i32) -> (i32, i32) {
    %c0_i32 = arith.constant 0 : i32
    %c0_i32_0 = arith.constant 0 : i32
    %c0_i32_1 = arith.constant 0 : i32
    return %c0_i32, %c0_i32_0 : i32, i32
  }
  func.func @transform_1(%arg0: i32) -> (i32, i32) {
    %c0_i32 = arith.constant 0 : i32
    %c0_i32_0 = arith.constant 0 : i32
    return %c0_i32, %arg0 : i32, i32
  }
  func.func @transform_2(%arg0: i32) -> (i32, i32) {
    %c0_i32 = arith.constant 0 : i32
    %c0_i32_0 = arith.constant 0 : i32
    %c0_i32_1 = arith.constant 0 : i32
    return %c0_i32, %c0_i32_0 : i32, i32
  }
  func.func @transform_3(%arg0: i32) -> (i32, i32) {
    %c0_i32 = arith.constant 0 : i32
    %c0_i32_0 = arith.constant 0 : i32
    return %c0_i32, %arg0 : i32, i32
  }
}

module attributes {stable_mosaic.version = 11 : i64} {
  func.func @_recon_loss_kernel(%arg0: memref<2x3072xf32, #tpu.memory_space<vmem>>, %arg1: memref<2x3072xf32, #tpu.memory_space<vmem>>, %arg2: memref<1x1xf32, #tpu.memory_space<smem>>) attributes {dimension_semantics = [], scalar_prefetch = 0 : i64, scratch_operands = 0 : i64, tpu.core_type = #tpu.core_type<tc>} {
    %c0 = arith.constant 0 : index
    %c0_0 = arith.constant 0 : index
    %0 = vector.load %arg0[%c0, %c0_0] : memref<2x3072xf32, #tpu.memory_space<vmem>>, vector<2x3072xf32>
    %c0_1 = arith.constant 0 : index
    %c0_2 = arith.constant 0 : index
    %1 = vector.load %arg1[%c0_1, %c0_2] : memref<2x3072xf32, #tpu.memory_space<vmem>>, vector<2x3072xf32>
    %2 = math.log %0 : vector<2x3072xf32>
    %cst = arith.constant -1.000000e+02 : f32
    %3 = vector.broadcast %cst : f32 to vector<2x3072xf32>
    %4 = arith.maximumf %2, %3 : vector<2x3072xf32>
    %cst_3 = arith.constant 1.000000e+00 : f32
    %5 = vector.broadcast %cst_3 : f32 to vector<2x3072xf32>
    %6 = arith.subf %5, %0 : vector<2x3072xf32>
    %7 = math.log %6 : vector<2x3072xf32>
    %cst_4 = arith.constant -1.000000e+02 : f32
    %8 = vector.broadcast %cst_4 : f32 to vector<2x3072xf32>
    %9 = arith.maximumf %7, %8 : vector<2x3072xf32>
    %10 = arith.mulf %1, %4 : vector<2x3072xf32>
    %cst_5 = arith.constant 1.000000e+00 : f32
    %11 = vector.broadcast %cst_5 : f32 to vector<2x3072xf32>
    %12 = arith.subf %11, %1 : vector<2x3072xf32>
    %13 = arith.mulf %12, %9 : vector<2x3072xf32>
    %14 = arith.addf %10, %13 : vector<2x3072xf32>
    %cst_6 = arith.constant 0.000000e+00 : f32
    %15 = vector.broadcast %cst_6 : f32 to vector<2x3072xf32>
    %16 = arith.subf %15, %14 : vector<2x3072xf32>
    %cst_7 = arith.constant dense<0.000000e+00> : vector<2xf32>
    %17 = vector.multi_reduction <add>, %16, %cst_7 [1] : vector<2x3072xf32> to vector<2xf32>
    %18 = vector.shape_cast %17 : vector<2xf32> to vector<2x1xf32>
    %cst_8 = arith.constant 3.072000e+03 : f32
    %19 = vector.broadcast %cst_8 : f32 to vector<2x1xf32>
    %20 = arith.divf %18, %19 : vector<2x1xf32>
    %21 = arith.mulf %20, %20 : vector<2x1xf32>
    %cst_9 = arith.constant 1.000000e+00 : f32
    %22 = vector.broadcast %cst_9 : f32 to vector<2x1xf32>
    %23 = arith.addf %21, %22 : vector<2x1xf32>
    %24 = math.sqrt %23 : vector<2x1xf32>
    %cst_10 = arith.constant 1.000000e+00 : f32
    %25 = vector.broadcast %cst_10 : f32 to vector<2x1xf32>
    %26 = arith.subf %24, %25 : vector<2x1xf32>
    %27 = vector.shape_cast %26 : vector<2x1xf32> to vector<1x2x1xf32>
    %cst_11 = arith.constant dense<0.000000e+00> : vector<1xf32>
    %28 = vector.multi_reduction <add>, %27, %cst_11 [1, 2] : vector<1x2x1xf32> to vector<1xf32>
    %29 = vector.shape_cast %28 : vector<1xf32> to vector<1x1x1xf32>
    %30 = vector.extract %29[0, 0, 0] : f32 from vector<1x1x1xf32>
    %cst_12 = arith.constant 2.000000e+00 : f32
    %31 = arith.divf %30, %cst_12 : f32
    %c0_13 = arith.constant 0 : index
    %c0_14 = arith.constant 0 : index
    %32 = memref.load %arg2[%c0_13, %c0_14] : memref<1x1xf32, #tpu.memory_space<smem>>
    memref.store %31, %arg2[%c0_13, %c0_14] : memref<1x1xf32, #tpu.memory_space<smem>>
    return
  }
}

</mosaic_0001>

<llo_original>
// kernel: nvae_forward.16
$region0: #{nvae_forward.16}
  #allocation0 [shape = 'u32[]', space=smem, size = 0x4, offset = 0x4, fixed_abs, tag = 'smem constant byte address 0x4 - core index']
  #allocation1 [shape = 'u32[144,128]{1,0:T(1,128)}', space=vmem, size = 0x12000, scoped, tag = 'internal scratch']
  %s0 = inlined_call_operand.vmem [shape: bf16[4,27], index: 0, kind: input, shape index: {}]
  %s1 = inlined_call_operand.vmem [shape: bf16[27,512], index: 1, kind: input, shape index: {}]
  %s2 = inlined_call_operand.vmem [shape: f32[4,1], index: 2, kind: input, shape index: {}]
  %s3 = inlined_call_operand.vmem [shape: f32[4,512], index: 3, kind: output, shape index: {}]
  %s4 = sld [smem:[#allocation0]]
  $region22: #{nvae_forward.16} parent=0
    _
  %s6 = ssub.s32 1, %s4
  %s7 = scalar_select 0, %s6, %s4
  // Predicated region
  $region2: #{nvae_forward.16} parent=0 // pred_check
    _
  $region3: #{nvae_forward.16} parent=0 // pred_check_branch
    %9 = sbr.rel (0) target = $region5
  $region4: #{nvae_forward.16} parent=0 // pred_region
    _
  $region5: #{nvae_forward.16} parent=0 // pred_fallthru
    _
  // Predicated region
  $region6: #{nvae_forward.16} parent=0 // pred_check
    _
  $region7: #{nvae_forward.16} parent=0 // pred_check_branch
    %11 = sbr.rel (0) target = $region9
  $region8: #{nvae_forward.16} parent=0 // pred_region
    _
  $region9: #{nvae_forward.16} parent=0 // pred_fallthru
    _
  // Predicated region
  $region10: #{nvae_forward.16} parent=0 // pred_check
    _
  $region11: #{nvae_forward.16} parent=0 // pred_check_branch
    %13 = sbr.rel (0) target = $region13
  $region12: #{nvae_forward.16} parent=0 // pred_region
    _
  $region13: #{nvae_forward.16} parent=0 // pred_fallthru
    _
  %v15 = vld [vmem:[%s0] sm:$0x3]
  %v16 = vld [vmem:[%s1] sm:$0xff]
  %v17 = vld [vmem:[%s1 + $0x8] sm:$0xff]
  %v18 = vld [vmem:[%s1 + $0x10] sm:$0xff]
  %v19 = vld [vmem:[%s1 + $0x18] sm:$0xff]
  %v20 = vld [vmem:[%s1 + $0x20] sm:$0xff]
  %v21 = vld [vmem:[%s1 + $0x28] sm:$0xff]
  %v22 = vld [vmem:[%s1 + $0x30] sm:$0x33]
  %v23 = vld [vmem:[%s1 + $0x38] sm:$0x33]
  %v24 = vld [vmem:[%s2] sm:$0xf]
  %26 = vset.pattern.permute.xlu0 0
  %27 = vperm.xlu0 %26, %v24
  %v28 = vpop.permute.xlu0 %27
  %v38 = vunpack.c.l.b16 %v16
  %v39 = vunpack.c.h.b16 %v16
  %v40 = vunpack.c.l.b16 %v17
  %v41 = vunpack.c.h.b16 %v17
  %v42 = vunpack.c.l.b16 %v18
  %v43 = vunpack.c.h.b16 %v18
  %v44 = vunpack.c.l.b16 %v19
  %v45 = vunpack.c.h.b16 %v19
  %v46 = vunpack.c.l.b16 %v20
  %v47 = vunpack.c.h.b16 %v20
  %v48 = vunpack.c.l.b16 %v21
  %v49 = vunpack.c.h.b16 %v21
  %v50 = vunpack.c.l.b16 %v22
  %v51 = vunpack.c.h.b16 %v22
  %v52 = vunpack.c.l.b16 %v23
  %v53 = vunpack.c.h.b16 %v23
  %v54 = vpack.c.b16 %v42, %v38
  %v55 = vpack.c.b16 %v43, %v39
  %v56 = vpack.c.b16 %v44, %v40
  %v57 = vpack.c.b16 %v45, %v41
  %v58 = vpack.c.b16 %v50, %v46
  %v59 = vpack.c.b16 %v51, %v47
  %v60 = vpack.c.b16 %v52, %v48
  %v61 = vpack.c.b16 %v53, %v49
  %vm66 = vcmask 220160
  %v68 = vsel %vm66, %v15, 0
  %vm70 = vcmask 1044480
  %vm71 = vcmask 1045504
  %v72 = vsel %vm70, 4294967295, 65535
  %v73 = vsel %vm71, %v72, 0
  %v75 = vand.u32 %v58, %v73
  %v78 = vand.u32 %v59, %v73
  %v81 = vand.u32 %v60, %v73
  %v84 = vand.u32 %v61, %v73
  %86 = vmatprep.subr.bf16.mxu0 %v55
  %87 = vmatpush1.bf16.msra.mxu0 %v54
  %88 = vmatprep.subr.bf16.mxu0 %v78
  %89 = vmatpush1.bf16.msra.mxu0 %v75
  %90 = vmatprep.subr.bf16.mxu0 0
  %91 = vmatpush1.bf16.msra.mxu0 0
  %92 = vmatprep.subr.bf16.mxu0 0
  %93 = vmatpush1.bf16.msra.mxu0 0
  %94 = vmatprep.subr.bf16.mxu0 0
  %95 = vmatpush1.bf16.msra.mxu0 0
  %96 = vmatprep.subr.bf16.mxu0 0
  %97 = vmatpush1.bf16.msra.mxu0 0
  %98 = vmatprep.subr.bf16.mxu0 0
  %99 = vmatpush1.bf16.msra.mxu0 0
  %100 = vmatprep.subr.bf16.mxu0 0
  %101 = vmatpush1.bf16.msra.mxu0 0
  %102 = vmatprep.subr.bf16.mxu0 0
  %103 = vmatpush1.bf16.msra.mxu0 0
  %104 = vmatprep.subr.bf16.mxu0 0
  %105 = vmatpush1.bf16.msra.mxu0 0
  %106 = vmatprep.subr.bf16.mxu0 0
  %107 = vmatpush1.bf16.msra.mxu0 0
  %108 = vmatprep.subr.bf16.mxu0 0
  %109 = vmatpush1.bf16.msra.mxu0 0
  %110 = vmatprep.subr.bf16.mxu0 0
  %111 = vmatpush1.bf16.msra.mxu0 0
  %112 = vmatprep.subr.bf16.mxu0 0
  %113 = vmatpush1.bf16.msra.mxu0 0
  %114 = vmatprep.subr.bf16.mxu0 0
  %115 = vmatpush1.bf16.msra.mxu0 0
  %116 = vmatprep.subr.bf16.mxu0 0
  %117 = vmatpush1.bf16.msra.mxu0 0
  %118 = vmatprep.mubr.bf16.mxu0 0
  %119 = vmatmul.mubr.bf16.gmra.mrb[0].mxu0 %v68
  %v120 = vpop.f32.mrb[0].mxu0
  %v121 = vadd.f32 %v28, %v120
  %v122 = vpop.f32.mrb[0].mxu0
  %v123 = vadd.f32 %v28, %v122
  %v124 = vpop.f32.mrb[0].mxu0
  %v125 = vpop.f32.mrb[0].mxu0
  %126 = vdwg.mxu0
  %127 = vmatprep.subr.bf16.mxu0 %v57
  %128 = vmatpush1.bf16.msra.mxu0 %v56
  %129 = vmatprep.subr.bf16.mxu0 %v84
  %130 = vmatpush1.bf16.msra.mxu0 %v81
  %131 = vmatprep.subr.bf16.mxu0 0
  %132 = vmatpush1.bf16.msra.mxu0 0
  %133 = vmatprep.subr.bf16.mxu0 0
  %134 = vmatpush1.bf16.msra.mxu0 0
  %135 = vmatprep.subr.bf16.mxu0 0
  %136 = vmatpush1.bf16.msra.mxu0 0
  %137 = vmatprep.subr.bf16.mxu0 0
  %138 = vmatpush1.bf16.msra.mxu0 0
  %139 = vmatprep.subr.bf16.mxu0 0
  %140 = vmatpush1.bf16.msra.mxu0 0
  %141 = vmatprep.subr.bf16.mxu0 0
  %142 = vmatpush1.bf16.msra.mxu0 0
  %143 = vmatprep.subr.bf16.mxu0 0
  %144 = vmatpush1.bf16.msra.mxu0 0
  %145 = vmatprep.subr.bf16.mxu0 0
  %146 = vmatpush1.bf16.msra.mxu0 0
  %147 = vmatprep.subr.bf16.mxu0 0
  %148 = vmatpush1.bf16.msra.mxu0 0
  %149 = vmatprep.subr.bf16.mxu0 0
  %150 = vmatpush1.bf16.msra.mxu0 0
  %151 = vmatprep.subr.bf16.mxu0 0
  %152 = vmatpush1.bf16.msra.mxu0 0
  %153 = vmatprep.subr.bf16.mxu0 0
  %154 = vmatpush1.bf16.msra.mxu0 0
  %155 = vmatprep.subr.bf16.mxu0 0
  %156 = vmatpush1.bf16.msra.mxu0 0
  %157 = vmatprep.subr.bf16.mxu0 0
  %158 = vmatpush1.bf16.msra.mxu0 0
  %159 = vmatprep.mubr.bf16.mxu0 0
  %160 = vmatmul.mubr.bf16.gmra.mrb[0].mxu0 %v68
  %v161 = vpop.f32.mrb[0].mxu0
  %v162 = vadd.f32 %v28, %v161
  %v163 = vpop.f32.mrb[0].mxu0
  %v164 = vadd.f32 %v28, %v163
  %v165 = vpop.f32.mrb[0].mxu0
  %v166 = vpop.f32.mrb[0].mxu0
  %167 = vdwg.mxu0
  %v168 = vxor.u32 %v121, 2147483648
  %v169 = vxor.u32 %v123, 2147483648
  %v170 = vxor.u32 %v162, 2147483648
  %v171 = vxor.u32 %v164, 2147483648
  %v172 = vmul.f32 %v168, 1.442695
  %v173 = vpow.pop %v172
  %v174 = vmul.f32 %v169, 1.442695
  %v175 = vpow.pop %v174
  %v176 = vmul.f32 %v170, 1.442695
  %v177 = vpow.pop %v176
  %v178 = vmul.f32 %v171, 1.442695
  %v179 = vpow.pop %v178
  %v180 = vadd.f32 %v173, 1.0
  %v181 = vadd.f32 %v175, 1.0
  %v182 = vadd.f32 %v177, 1.0
  %v183 = vadd.f32 %v179, 1.0
  %v184 = vrcp.pop %v180
  %v185 = vmul.f32 1.0, %v184
  %v186 = vrcp.pop %v181
  %v187 = vmul.f32 1.0, %v186
  %v188 = vrcp.pop %v182
  %v189 = vmul.f32 1.0, %v188
  %v190 = vrcp.pop %v183
  %v191 = vmul.f32 1.0, %v190
  %v192 = vmul.f32 %v121, %v185
  %v193 = vmul.f32 %v123, %v187
  %v194 = vmul.f32 %v162, %v189
  %v195 = vmul.f32 %v164, %v191
  %v200 = vcombine.low %v192, %v193
  %v201 = vcombine.low %v194, %v195
  %204 = vst [vmem:[%s3] sm:$0xff] %v200
  %205 = vst [vmem:[%s3 + $0x8] sm:$0xff] %v201
  // Predicated region
  $region14: #{nvae_forward.16} parent=0 // pred_check
    _
  $region15: #{nvae_forward.16} parent=0 // pred_check_branch
    %207 = sbr.rel (0) target = $region17
  $region16: #{nvae_forward.16} parent=0 // pred_region
    _
  $region17: #{nvae_forward.16} parent=0 // pred_fallthru
    _
  // Predicated region
  $region18: #{nvae_forward.16} parent=0 // pred_check
    _
  $region19: #{nvae_forward.16} parent=0 // pred_check_branch
    %209 = sbr.rel (0) target = $region21
  $region20: #{nvae_forward.16} parent=0 // pred_region
    _
  $region21: #{nvae_forward.16} parent=0 // pred_fallthru
    _

// kernel: nvae_forward.17
$region0: #{nvae_forward.17}
  #allocation0 [shape = 'u32[]', space=smem, size = 0x4, offset = 0x4, fixed_abs, tag = 'smem constant byte address 0x4 - core index']
  #allocation1 [shape = 'u32[144,128]{1,0:T(1,128)}', space=vmem, size = 0x12000, scoped, tag = 'internal scratch']
  %s0 = inlined_call_operand.vmem [shape: bf16[4,36], index: 0, kind: input, shape index: {}]
  %s1 = inlined_call_operand.vmem [shape: bf16[36,512], index: 1, kind: input, shape index: {}]
  %s2 = inlined_call_operand.vmem [shape: f32[4,1], index: 2, kind: input, shape index: {}]
  %s3 = inlined_call_operand.vmem [shape: f32[4,512], index: 3, kind: output, shape index: {}]
  %s4 = sld [smem:[#allocation0]]
  $region22: #{nvae_forward.17} parent=0
    _
  %s6 = ssub.s32 1, %s4
  %s7 = scalar_select 0, %s6, %s4
  // Predicated region
  $region2: #{nvae_forward.17} parent=0 // pred_check
    _
  $region3: #{nvae_forward.17} parent=0 // pred_check_branch
    %9 = sbr.rel (0) target = $region5
  $region4: #{nvae_forward.17} parent=0 // pred_region
    _
  $region5: #{nvae_forward.17} parent=0 // pred_fallthru
    _
  // Predicated region
  $region6: #{nvae_forward.17} parent=0 // pred_check
    _
  $region7: #{nvae_forward.17} parent=0 // pred_check_branch
    %11 = sbr.rel (0) target = $region9
  $region8: #{nvae_forward.17} parent=0 // pred_region
    _
  $region9: #{nvae_forward.17} parent=0 // pred_fallthru
    _
  // Predicated region
  $region10: #{nvae_forward.17} parent=0 // pred_check
    _
  $region11: #{nvae_forward.17} parent=0 // pred_check_branch
    %13 = sbr.rel (0) target = $region13
  $region12: #{nvae_forward.17} parent=0 // pred_region
    _
  $region13: #{nvae_forward.17} parent=0 // pred_fallthru
    _
  %v15 = vld [vmem:[%s0] sm:$0x3]
  %v16 = vld [vmem:[%s1] sm:$0xff]
  %v17 = vld [vmem:[%s1 + $0x8] sm:$0xff]
  %v18 = vld [vmem:[%s1 + $0x10] sm:$0xff]
  %v19 = vld [vmem:[%s1 + $0x18] sm:$0xff]
  %v20 = vld [vmem:[%s1 + $0x20] sm:$0xff]
  %v21 = vld [vmem:[%s1 + $0x28] sm:$0xff]
  %v22 = vld [vmem:[%s1 + $0x30] sm:$0xff]
  %v23 = vld [vmem:[%s1 + $0x38] sm:$0xff]
  %v24 = vld [vmem:[%s1 + $0x40] sm:$0x33]
  %v25 = vld [vmem:[%s1 + $0x48] sm:$0x33]
  %v26 = vld [vmem:[%s2] sm:$0xf]
  %28 = vset.pattern.permute.xlu0 0
  %29 = vperm.xlu0 %28, %v26
  %v30 = vpop.permute.xlu0 %29
  %v42 = vunpack.c.l.b16 %v16
  %v43 = vunpack.c.h.b16 %v16
  %v44 = vunpack.c.l.b16 %v17
  %v45 = vunpack.c.h.b16 %v17
  %v46 = vunpack.c.l.b16 %v18
  %v47 = vunpack.c.h.b16 %v18
  %v48 = vunpack.c.l.b16 %v19
  %v49 = vunpack.c.h.b16 %v19
  %v50 = vunpack.c.l.b16 %v20
  %v51 = vunpack.c.h.b16 %v20
  %v52 = vunpack.c.l.b16 %v21
  %v53 = vunpack.c.h.b16 %v21
  %v54 = vunpack.c.l.b16 %v22
  %v55 = vunpack.c.h.b16 %v22
  %v56 = vunpack.c.l.b16 %v23
  %v57 = vunpack.c.h.b16 %v23
  %v58 = vunpack.c.l.b16 %v24
  %v59 = vunpack.c.h.b16 %v24
  %v60 = vunpack.c.l.b16 %v25
  %v61 = vunpack.c.h.b16 %v25
  %v62 = vpack.c.b16 %v46, %v42
  %v63 = vpack.c.b16 %v47, %v43
  %v64 = vpack.c.b16 %v48, %v44
  %v65 = vpack.c.b16 %v49, %v45
  %v66 = vpack.c.b16 %v54, %v50
  %v67 = vpack.c.b16 %v55, %v51
  %v68 = vpack.c.b16 %v56, %v52
  %v69 = vpack.c.b16 %v57, %v53
  %v70 = vpack.c.b16 %v58, %v58
  %v71 = vpack.c.b16 %v59, %v59
  %v72 = vpack.c.b16 %v60, %v60
  %v73 = vpack.c.b16 %v61, %v61
  %vm82 = vcmask 293888
  %v84 = vsel %vm82, %v15, 0
  %vm86 = vcmask 1041408
  %v88 = vsel %vm86, %v70, 0
  %v91 = vsel %vm86, %v71, 0
  %v94 = vsel %vm86, %v72, 0
  %v97 = vsel %vm86, %v73, 0
  %99 = vmatprep.subr.bf16.mxu0 %v63
  %100 = vmatpush1.bf16.msra.mxu0 %v62
  %101 = vmatprep.subr.bf16.mxu0 %v67
  %102 = vmatpush1.bf16.msra.mxu0 %v66
  %103 = vmatprep.subr.bf16.mxu0 %v91
  %104 = vmatpush1.bf16.msra.mxu0 %v88
  %105 = vmatprep.subr.bf16.mxu0 0
  %106 = vmatpush1.bf16.msra.mxu0 0
  %107 = vmatprep.subr.bf16.mxu0 0
  %108 = vmatpush1.bf16.msra.mxu0 0
  %109 = vmatprep.subr.bf16.mxu0 0
  %110 = vmatpush1.bf16.msra.mxu0 0
  %111 = vmatprep.subr.bf16.mxu0 0
  %112 = vmatpush1.bf16.msra.mxu0 0
  %113 = vmatprep.subr.bf16.mxu0 0
  %114 = vmatpush1.bf16.msra.mxu0 0
  %115 = vmatprep.subr.bf16.mxu0 0
  %116 = vmatpush1.bf16.msra.mxu0 0
  %117 = vmatprep.subr.bf16.mxu0 0
  %118 = vmatpush1.bf16.msra.mxu0 0
  %119 = vmatprep.subr.bf16.mxu0 0
  %120 = vmatpush1.bf16.msra.mxu0 0
  %121 = vmatprep.subr.bf16.mxu0 0
  %122 = vmatpush1.bf16.msra.mxu0 0
  %123 = vmatprep.subr.bf16.mxu0 0
  %124 = vmatpush1.bf16.msra.mxu0 0
  %125 = vmatprep.subr.bf16.mxu0 0
  %126 = vmatpush1.bf16.msra.mxu0 0
  %127 = vmatprep.subr.bf16.mxu0 0
  %128 = vmatpush1.bf16.msra.mxu0 0
  %129 = vmatprep.subr.bf16.mxu0 0
  %130 = vmatpush1.bf16.msra.mxu0 0
  %131 = vmatprep.mubr.bf16.mxu0 0
  %132 = vmatmul.mubr.bf16.gmra.mrb[0].mxu0 %v84
  %v133 = vpop.f32.mrb[0].mxu0
  %v134 = vadd.f32 %v30, %v133
  %v135 = vpop.f32.mrb[0].mxu0
  %v136 = vadd.f32 %v30, %v135
  %v137 = vpop.f32.mrb[0].mxu0
  %v138 = vpop.f32.mrb[0].mxu0
  %139 = vdwg.mxu0
  %140 = vmatprep.subr.bf16.mxu0 %v65
  %141 = vmatpush1.bf16.msra.mxu0 %v64
  %142 = vmatprep.subr.bf16.mxu0 %v69
  %143 = vmatpush1.bf16.msra.mxu0 %v68
  %144 = vmatprep.subr.bf16.mxu0 %v97
  %145 = vmatpush1.bf16.msra.mxu0 %v94
  %146 = vmatprep.subr.bf16.mxu0 0
  %147 = vmatpush1.bf16.msra.mxu0 0
  %148 = vmatprep.subr.bf16.mxu0 0
  %149 = vmatpush1.bf16.msra.mxu0 0
  %150 = vmatprep.subr.bf16.mxu0 0
  %151 = vmatpush1.bf16.msra.mxu0 0
  %152 = vmatprep.subr.bf16.mxu0 0
  %153 = vmatpush1.bf16.msra.mxu0 0
  %154 = vmatprep.subr.bf16.mxu0 0
  %155 = vmatpush1.bf16.msra.mxu0 0
  %156 = vmatprep.subr.bf16.mxu0 0
  %157 = vmatpush1.bf16.msra.mxu0 0
  %158 = vmatprep.subr.bf16.mxu0 0
  %159 = vmatpush1.bf16.msra.mxu0 0
  %160 = vmatprep.subr.bf16.mxu0 0
  %161 = vmatpush1.bf16.msra.mxu0 0
  %162 = vmatprep.subr.bf16.mxu0 0
  %163 = vmatpush1.bf16.msra.mxu0 0
  %164 = vmatprep.subr.bf16.mxu0 0
  %165 = vmatpush1.bf16.msra.mxu0 0
  %166 = vmatprep.subr.bf16.mxu0 0
  %167 = vmatpush1.bf16.msra.mxu0 0
  %168 = vmatprep.subr.bf16.mxu0 0
  %169 = vmatpush1.bf16.msra.mxu0 0
  %170 = vmatprep.subr.bf16.mxu0 0
  %171 = vmatpush1.bf16.msra.mxu0 0
  %172 = vmatprep.mubr.bf16.mxu0 0
  %173 = vmatmul.mubr.bf16.gmra.mrb[0].mxu0 %v84
  %v174 = vpop.f32.mrb[0].mxu0
  %v175 = vadd.f32 %v30, %v174
  %v176 = vpop.f32.mrb[0].mxu0
  %v177 = vadd.f32 %v30, %v176
  %v178 = vpop.f32.mrb[0].mxu0
  %v179 = vpop.f32.mrb[0].mxu0
  %180 = vdwg.mxu0
  %v181 = vxor.u32 %v134, 2147483648
  %v182 = vxor.u32 %v136, 2147483648
  %v183 = vxor.u32 %v175, 2147483648
  %v184 = vxor.u32 %v177, 2147483648
  %v185 = vmul.f32 %v181, 1.442695
  %v186 = vpow.pop %v185
  %v187 = vmul.f32 %v182, 1.442695
  %v188 = vpow.pop %v187
  %v189 = vmul.f32 %v183, 1.442695
  %v190 = vpow.pop %v189
  %v191 = vmul.f32 %v184, 1.442695
  %v192 = vpow.pop %v191
  %v193 = vadd.f32 %v186, 1.0
  %v194 = vadd.f32 %v188, 1.0
  %v195 = vadd.f32 %v190, 1.0
  %v196 = vadd.f32 %v192, 1.0
  %v197 = vrcp.pop %v193
  %v198 = vmul.f32 1.0, %v197
  %v199 = vrcp.pop %v194
  %v200 = vmul.f32 1.0, %v199
  %v201 = vrcp.pop %v195
  %v202 = vmul.f32 1.0, %v201
  %v203 = vrcp.pop %v196
  %v204 = vmul.f32 1.0, %v203
  %v205 = vmul.f32 %v134, %v198
  %v206 = vmul.f32 %v136, %v200
  %v207 = vmul.f32 %v175, %v202
  %v208 = vmul.f32 %v177, %v204
  %v213 = vcombine.low %v205, %v206
  %v214 = vcombine.low %v207, %v208
  %217 = vst [vmem:[%s3] sm:$0xff] %v213
  %218 = vst [vmem:[%s3 + $0x8] sm:$0xff] %v214
  // Predicated region
  $region14: #{nvae_forward.17} parent=0 // pred_check
    _
  $region15: #{nvae_forward.17} parent=0 // pred_check_branch
    %220 = sbr.rel (0) target = $region17
  $region16: #{nvae_forward.17} parent=0 // pred_region
    _
  $region17: #{nvae_forward.17} parent=0 // pred_fallthru
    _
  // Predicated region
  $region18: #{nvae_forward.17} parent=0 // pred_check
    _
  $region19: #{nvae_forward.17} parent=0 // pred_check_branch
    %222 = sbr.rel (0) target = $region21
  $region20: #{nvae_forward.17} parent=0 // pred_region
    _
  $region21: #{nvae_forward.17} parent=0 // pred_fallthru
    _

// kernel: nvae_forward.18
$region0: #{nvae_forward.18}
  #allocation0 [shape = 'u32[]', space=smem, size = 0x4, offset = 0x4, fixed_abs, tag = 'smem constant byte address 0x4 - core index']
  #allocation1 [shape = 'u32[144,128]{1,0:T(1,128)}', space=vmem, size = 0x12000, scoped, tag = 'internal scratch']
  %s0 = inlined_call_operand.vmem [shape: bf16[8,36], index: 0, kind: input, shape index: {}]
  %s1 = inlined_call_operand.vmem [shape: bf16[36,128], index: 1, kind: input, shape index: {}]
  %s2 = inlined_call_operand.vmem [shape: f32[8,1], index: 2, kind: input, shape index: {}]
  %s3 = inlined_call_operand.vmem [shape: f32[8,128], index: 3, kind: output, shape index: {}]
  %s4 = sld [smem:[#allocation0]]
  $region22: #{nvae_forward.18} parent=0
    _
  %s6 = ssub.s32 1, %s4
  %s7 = scalar_select 0, %s6, %s4
  // Predicated region
  $region2: #{nvae_forward.18} parent=0 // pred_check
    _
  $region3: #{nvae_forward.18} parent=0 // pred_check_branch
    %9 = sbr.rel (0) target = $region5
  $region4: #{nvae_forward.18} parent=0 // pred_region
    _
  $region5: #{nvae_forward.18} parent=0 // pred_fallthru
    _
  // Predicated region
  $region6: #{nvae_forward.18} parent=0 // pred_check
    _
  $region7: #{nvae_forward.18} parent=0 // pred_check_branch
    %11 = sbr.rel (0) target = $region9
  $region8: #{nvae_forward.18} parent=0 // pred_region
    _
  $region9: #{nvae_forward.18} parent=0 // pred_fallthru
    _
  // Predicated region
  $region10: #{nvae_forward.18} parent=0 // pred_check
    _
  $region11: #{nvae_forward.18} parent=0 // pred_check_branch
    %13 = sbr.rel (0) target = $region13
  $region12: #{nvae_forward.18} parent=0 // pred_region
    _
  $region13: #{nvae_forward.18} parent=0 // pred_fallthru
    _
  %v15 = vld [vmem:[%s0] sm:$0xf]
  %v16 = vld [vmem:[%s1] sm:$0xf]
  %v17 = vld [vmem:[%s1 + $0x4] sm:$0xf]
  %v18 = vld [vmem:[%s1 + $0x8] sm:$0xf]
  %v19 = vld [vmem:[%s1 + $0xc] sm:$0xf]
  %v20 = vld [vmem:[%s1 + $0x10] sm:$0x3]
  %v21 = vld [vmem:[%s2] sm:$0xff]
  %23 = vset.pattern.permute.xlu0 0
  %24 = vperm.xlu0 %23, %v21
  %v25 = vpop.permute.xlu0 %24
  %v32 = vunpack.c.l.b16 %v16
  %v33 = vunpack.c.l.b16 %v17
  %v34 = vunpack.c.l.b16 %v18
  %v35 = vunpack.c.l.b16 %v19
  %v36 = vunpack.c.l.b16 %v20
  %v37 = vpack.c.b16 %v33, %v32
  %v38 = vpack.c.b16 %v35, %v34
  %v39 = vpack.c.b16 %v36, %v36
  %vm42 = vcmask 293888
  %v44 = vsel %vm42, %v15, 0
  %vm46 = vcmask 1041408
  %v48 = vsel %vm46, %v39, 0
  %50 = vmatprep.subr.bf16.mxu0 0
  %51 = vmatpush1.bf16.msra.mxu0 %v37
  %52 = vmatprep.subr.bf16.mxu0 0
  %53 = vmatpush1.bf16.msra.mxu0 %v38
  %54 = vmatprep.subr.bf16.mxu0 0
  %55 = vmatpush1.bf16.msra.mxu0 %v48
  %56 = vmatprep.subr.bf16.mxu0 0
  %57 = vmatpush1.bf16.msra.mxu0 0
  %58 = vmatprep.subr.bf16.mxu0 0
  %59 = vmatpush1.bf16.msra.mxu0 0
  %60 = vmatprep.subr.bf16.mxu0 0
  %61 = vmatpush1.bf16.msra.mxu0 0
  %62 = vmatprep.subr.bf16.mxu0 0
  %63 = vmatpush1.bf16.msra.mxu0 0
  %64 = vmatprep.subr.bf16.mxu0 0
  %65 = vmatpush1.bf16.msra.mxu0 0
  %66 = vmatprep.subr.bf16.mxu0 0
  %67 = vmatpush1.bf16.msra.mxu0 0
  %68 = vmatprep.subr.bf16.mxu0 0
  %69 = vmatpush1.bf16.msra.mxu0 0
  %70 = vmatprep.subr.bf16.mxu0 0
  %71 = vmatpush1.bf16.msra.mxu0 0
  %72 = vmatprep.subr.bf16.mxu0 0
  %73 = vmatpush1.bf16.msra.mxu0 0
  %74 = vmatprep.subr.bf16.mxu0 0
  %75 = vmatpush1.bf16.msra.mxu0 0
  %76 = vmatprep.subr.bf16.mxu0 0
  %77 = vmatpush1.bf16.msra.mxu0 0
  %78 = vmatprep.subr.bf16.mxu0 0
  %79 = vmatpush1.bf16.msra.mxu0 0
  %80 = vmatprep.subr.bf16.mxu0 0
  %81 = vmatpush1.bf16.msra.mxu0 0
  %82 = vmatprep.mubr.bf16.mxu0 0
  %83 = vmatmul.mubr.bf16.gmra.mrb[0].mxu0 %v44
  %v84 = vpop.f32.mrb[0].mxu0
  %v85 = vadd.f32 %v25, %v84
  %v86 = vpop.f32.mrb[0].mxu0
  %v87 = vpop.f32.mrb[0].mxu0
  %v88 = vpop.f32.mrb[0].mxu0
  %89 = vdwg.mxu0
  %v90 = vxor.u32 %v85, 2147483648
  %v91 = vmul.f32 %v90, 1.442695
  %v92 = vpow.pop %v91
  %v93 = vadd.f32 %v92, 1.0
  %v94 = vrcp.pop %v93
  %v95 = vmul.f32 1.0, %v94
  %v96 = vmul.f32 %v85, %v95
  %97 = vst [vmem:[%s3] sm:$0xff] %v96
  // Predicated region
  $region14: #{nvae_forward.18} parent=0 // pred_check
    _
  $region15: #{nvae_forward.18} parent=0 // pred_check_branch
    %99 = sbr.rel (0) target = $region17
  $region16: #{nvae_forward.18} parent=0 // pred_region
    _
  $region17: #{nvae_forward.18} parent=0 // pred_fallthru
    _
  // Predicated region
  $region18: #{nvae_forward.18} parent=0 // pred_check
    _
  $region19: #{nvae_forward.18} parent=0 // pred_check_branch
    %101 = sbr.rel (0) target = $region21
  $region20: #{nvae_forward.18} parent=0 // pred_region
    _
  $region21: #{nvae_forward.18} parent=0 // pred_fallthru
    _

// kernel: nvae_forward.19
$region0: #{nvae_forward.19}
  #allocation0 [shape = 'u32[]', space=smem, size = 0x4, offset = 0x4, fixed_abs, tag = 'smem constant byte address 0x4 - core index']
  #allocation1 [shape = 'u32[144,128]{1,0:T(1,128)}', space=vmem, size = 0x12000, scoped, tag = 'internal scratch']
  %s0 = inlined_call_operand.vmem [shape: bf16[8,72], index: 0, kind: input, shape index: {}]
  %s1 = inlined_call_operand.vmem [shape: bf16[72,128], index: 1, kind: input, shape index: {}]
  %s2 = inlined_call_operand.vmem [shape: f32[8,1], index: 2, kind: input, shape index: {}]
  %s3 = inlined_call_operand.vmem [shape: f32[8,128], index: 3, kind: output, shape index: {}]
  %s4 = sld [smem:[#allocation0]]
  $region22: #{nvae_forward.19} parent=0
    _
  %s6 = ssub.s32 1, %s4
  %s7 = scalar_select 0, %s6, %s4
  // Predicated region
  $region2: #{nvae_forward.19} parent=0 // pred_check
    _
  $region3: #{nvae_forward.19} parent=0 // pred_check_branch
    %9 = sbr.rel (0) target = $region5
  $region4: #{nvae_forward.19} parent=0 // pred_region
    _
  $region5: #{nvae_forward.19} parent=0 // pred_fallthru
    _
  // Predicated region
  $region6: #{nvae_forward.19} parent=0 // pred_check
    _
  $region7: #{nvae_forward.19} parent=0 // pred_check_branch
    %11 = sbr.rel (0) target = $region9
  $region8: #{nvae_forward.19} parent=0 // pred_region
    _
  $region9: #{nvae_forward.19} parent=0 // pred_fallthru
    _
  // Predicated region
  $region10: #{nvae_forward.19} parent=0 // pred_check
    _
  $region11: #{nvae_forward.19} parent=0 // pred_check_branch
    %13 = sbr.rel (0) target = $region13
  $region12: #{nvae_forward.19} parent=0 // pred_region
    _
  $region13: #{nvae_forward.19} parent=0 // pred_fallthru
    _
  %v15 = vld [vmem:[%s0] sm:$0xf]
  %v16 = vld [vmem:[%s1] sm:$0xf]
  %v17 = vld [vmem:[%s1 + $0x4] sm:$0xf]
  %v18 = vld [vmem:[%s1 + $0x8] sm:$0xf]
  %v19 = vld [vmem:[%s1 + $0xc] sm:$0xf]
  %v20 = vld [vmem:[%s1 + $0x10] sm:$0xf]
  %v21 = vld [vmem:[%s1 + $0x14] sm:$0xf]
  %v22 = vld [vmem:[%s1 + $0x18] sm:$0xf]
  %v23 = vld [vmem:[%s1 + $0x1c] sm:$0xf]
  %v24 = vld [vmem:[%s1 + $0x20] sm:$0xf]
  %v25 = vld [vmem:[%s2] sm:$0xff]
  %27 = vset.pattern.permute.xlu0 0
  %28 = vperm.xlu0 %27, %v25
  %v29 = vpop.permute.xlu0 %28
  %v40 = vunpack.c.l.b16 %v16
  %v41 = vunpack.c.l.b16 %v17
  %v42 = vunpack.c.l.b16 %v18
  %v43 = vunpack.c.l.b16 %v19
  %v44 = vunpack.c.l.b16 %v20
  %v45 = vunpack.c.l.b16 %v21
  %v46 = vunpack.c.l.b16 %v22
  %v47 = vunpack.c.l.b16 %v23
  %v48 = vunpack.c.l.b16 %v24
  %v49 = vpack.c.b16 %v41, %v40
  %v50 = vpack.c.b16 %v43, %v42
  %v51 = vpack.c.b16 %v45, %v44
  %v52 = vpack.c.b16 %v47, %v46
  %v53 = vpack.c.b16 %v48, %v48
  %vm58 = vcmask 588800
  %v60 = vsel %vm58, %v15, 0
  %vm62 = vcmask 1043456
  %v64 = vsel %vm62, %v53, 0
  %66 = vmatprep.subr.bf16.mxu0 0
  %67 = vmatpush1.bf16.msra.mxu0 %v49
  %68 = vmatprep.subr.bf16.mxu0 0
  %69 = vmatpush1.bf16.msra.mxu0 %v50
  %70 = vmatprep.subr.bf16.mxu0 0
  %71 = vmatpush1.bf16.msra.mxu0 %v51
  %72 = vmatprep.subr.bf16.mxu0 0
  %73 = vmatpush1.bf16.msra.mxu0 %v52
  %74 = vmatprep.subr.bf16.mxu0 0
  %75 = vmatpush1.bf16.msra.mxu0 %v64
  %76 = vmatprep.subr.bf16.mxu0 0
  %77 = vmatpush1.bf16.msra.mxu0 0
  %78 = vmatprep.subr.bf16.mxu0 0
  %79 = vmatpush1.bf16.msra.mxu0 0
  %80 = vmatprep.subr.bf16.mxu0 0
  %81 = vmatpush1.bf16.msra.mxu0 0
  %82 = vmatprep.subr.bf16.mxu0 0
  %83 = vmatpush1.bf16.msra.mxu0 0
  %84 = vmatprep.subr.bf16.mxu0 0
  %85 = vmatpush1.bf16.msra.mxu0 0
  %86 = vmatprep.subr.bf16.mxu0 0
  %87 = vmatpush1.bf16.msra.mxu0 0
  %88 = vmatprep.subr.bf16.mxu0 0
  %89 = vmatpush1.bf16.msra.mxu0 0
  %90 = vmatprep.subr.bf16.mxu0 0
  %91 = vmatpush1.bf16.msra.mxu0 0
  %92 = vmatprep.subr.bf16.mxu0 0
  %93 = vmatpush1.bf16.msra.mxu0 0
  %94 = vmatprep.subr.bf16.mxu0 0
  %95 = vmatpush1.bf16.msra.mxu0 0
  %96 = vmatprep.subr.bf16.mxu0 0
  %97 = vmatpush1.bf16.msra.mxu0 0
  %98 = vmatprep.mubr.bf16.mxu0 0
  %99 = vmatmul.mubr.bf16.gmra.mrb[0].mxu0 %v60
  %v100 = vpop.f32.mrb[0].mxu0
  %v101 = vadd.f32 %v29, %v100
  %v102 = vpop.f32.mrb[0].mxu0
  %v103 = vpop.f32.mrb[0].mxu0
  %v104 = vpop.f32.mrb[0].mxu0
  %105 = vdwg.mxu0
  %v106 = vxor.u32 %v101, 2147483648
  %v107 = vmul.f32 %v106, 1.442695
  %v108 = vpow.pop %v107
  %v109 = vadd.f32 %v108, 1.0
  %v110 = vrcp.pop %v109
  %v111 = vmul.f32 1.0, %v110
  %v112 = vmul.f32 %v101, %v111
  %113 = vst [vmem:[%s3] sm:$0xff] %v112
  // Predicated region
  $region14: #{nvae_forward.19} parent=0 // pred_check
    _
  $region15: #{nvae_forward.19} parent=0 // pred_check_branch
    %115 = sbr.rel (0) target = $region17
  $region16: #{nvae_forward.19} parent=0 // pred_region
    _
  $region17: #{nvae_forward.19} parent=0 // pred_fallthru
    _
  // Predicated region
  $region18: #{nvae_forward.19} parent=0 // pred_check
    _
  $region19: #{nvae_forward.19} parent=0 // pred_check_branch
    %117 = sbr.rel (0) target = $region21
  $region20: #{nvae_forward.19} parent=0 // pred_region
    _
  $region21: #{nvae_forward.19} parent=0 // pred_fallthru
    _

// kernel: nvae_forward.20
$region0: #{nvae_forward.20}
  #allocation0 [shape = 'u32[]', space=smem, size = 0x4, offset = 0x4, fixed_abs, tag = 'smem constant byte address 0x4 - core index']
  #allocation1 [shape = 'u32[144,128]{1,0:T(1,128)}', space=vmem, size = 0x12000, scoped, tag = 'internal scratch']
  %s0 = inlined_call_operand.vmem [shape: bf16[16,72], index: 0, kind: input, shape index: {}]
  %s1 = inlined_call_operand.vmem [shape: bf16[72,128], index: 1, kind: input, shape index: {}]
  %s2 = inlined_call_operand.vmem [shape: f32[16,1], index: 2, kind: input, shape index: {}]
  %s3 = inlined_call_operand.vmem [shape: f32[16,128], index: 3, kind: output, shape index: {}]
  %s4 = sld [smem:[#allocation0]]
  $region22: #{nvae_forward.20} parent=0
    _
  %s6 = ssub.s32 1, %s4
  %s7 = scalar_select 0, %s6, %s4
  // Predicated region
  $region2: #{nvae_forward.20} parent=0 // pred_check
    _
  $region3: #{nvae_forward.20} parent=0 // pred_check_branch
    %9 = sbr.rel (0) target = $region5
  $region4: #{nvae_forward.20} parent=0 // pred_region
    _
  $region5: #{nvae_forward.20} parent=0 // pred_fallthru
    _
  // Predicated region
  $region6: #{nvae_forward.20} parent=0 // pred_check
    _
  $region7: #{nvae_forward.20} parent=0 // pred_check_branch
    %11 = sbr.rel (0) target = $region9
  $region8: #{nvae_forward.20} parent=0 // pred_region
    _
  $region9: #{nvae_forward.20} parent=0 // pred_fallthru
    _
  // Predicated region
  $region10: #{nvae_forward.20} parent=0 // pred_check
    _
  $region11: #{nvae_forward.20} parent=0 // pred_check_branch
    %13 = sbr.rel (0) target = $region13
  $region12: #{nvae_forward.20} parent=0 // pred_region
    _
  $region13: #{nvae_forward.20} parent=0 // pred_fallthru
    _
  %v15 = vld [vmem:[%s0] sm:$0xf]
  %v16 = vld [vmem:[%s0 + $0x4] sm:$0xf]
  %v17 = vld [vmem:[%s1] sm:$0xf]
  %v18 = vld [vmem:[%s1 + $0x4] sm:$0xf]
  %v19 = vld [vmem:[%s1 + $0x8] sm:$0xf]
  %v20 = vld [vmem:[%s1 + $0xc] sm:$0xf]
  %v21 = vld [vmem:[%s1 + $0x10] sm:$0xf]
  %v22 = vld [vmem:[%s1 + $0x14] sm:$0xf]
  %v23 = vld [vmem:[%s1 + $0x18] sm:$0xf]
  %v24 = vld [vmem:[%s1 + $0x1c] sm:$0xf]
  %v25 = vld [vmem:[%s1 + $0x20] sm:$0xf]
  %v26 = vld [vmem:[%s2] sm:$0xff]
  %v27 = vld [vmem:[%s2 + $0x8] sm:$0xff]
  %29 = vset.pattern.permute.xlu0 0
  %30 = vperm.xlu0 %29, %v26
  %v31 = vpop.permute.xlu0 %30
  %34 = vset.pattern.permute.xlu0 0
  %35 = vperm.xlu0 %34, %v27
  %v36 = vpop.permute.xlu0 %35
  %v40 = vunpack.c.l.b16 %v15
  %v41 = vunpack.c.l.b16 %v16
  %v42 = vpack.c.b16 %v41, %v40
  %v52 = vunpack.c.l.b16 %v17
  %v53 = vunpack.c.l.b16 %v18
  %v54 = vunpack.c.l.b16 %v19
  %v55 = vunpack.c.l.b16 %v20
  %v56 = vunpack.c.l.b16 %v21
  %v57 = vunpack.c.l.b16 %v22
  %v58 = vunpack.c.l.b16 %v23
  %v59 = vunpack.c.l.b16 %v24
  %v60 = vunpack.c.l.b16 %v25
  %v61 = vpack.c.b16 %v53, %v52
  %v62 = vpack.c.b16 %v55, %v54
  %v63 = vpack.c.b16 %v57, %v56
  %v64 = vpack.c.b16 %v59, %v58
  %v65 = vpack.c.b16 %v60, %v60
  %vm70 = vcmask 588800
  %v72 = vsel %vm70, %v42, 0
  %vm74 = vcmask 1043456
  %v76 = vsel %vm74, %v65, 0
  %78 = vmatprep.subr.bf16.mxu0 0
  %79 = vmatpush1.bf16.msra.mxu0 %v61
  %80 = vmatprep.subr.bf16.mxu0 0
  %81 = vmatpush1.bf16.msra.mxu0 %v62
  %82 = vmatprep.subr.bf16.mxu0 0
  %83 = vmatpush1.bf16.msra.mxu0 %v63
  %84 = vmatprep.subr.bf16.mxu0 0
  %85 = vmatpush1.bf16.msra.mxu0 %v64
  %86 = vmatprep.subr.bf16.mxu0 0
  %87 = vmatpush1.bf16.msra.mxu0 %v76
  %88 = vmatprep.subr.bf16.mxu0 0
  %89 = vmatpush1.bf16.msra.mxu0 0
  %90 = vmatprep.subr.bf16.mxu0 0
  %91 = vmatpush1.bf16.msra.mxu0 0
  %92 = vmatprep.subr.bf16.mxu0 0
  %93 = vmatpush1.bf16.msra.mxu0 0
  %94 = vmatprep.subr.bf16.mxu0 0
  %95 = vmatpush1.bf16.msra.mxu0 0
  %96 = vmatprep.subr.bf16.mxu0 0
  %97 = vmatpush1.bf16.msra.mxu0 0
  %98 = vmatprep.subr.bf16.mxu0 0
  %99 = vmatpush1.bf16.msra.mxu0 0
  %100 = vmatprep.subr.bf16.mxu0 0
  %101 = vmatpush1.bf16.msra.mxu0 0
  %102 = vmatprep.subr.bf16.mxu0 0
  %103 = vmatpush1.bf16.msra.mxu0 0
  %104 = vmatprep.subr.bf16.mxu0 0
  %105 = vmatpush1.bf16.msra.mxu0 0
  %106 = vmatprep.subr.bf16.mxu0 0
  %107 = vmatpush1.bf16.msra.mxu0 0
  %108 = vmatprep.subr.bf16.mxu0 0
  %109 = vmatpush1.bf16.msra.mxu0 0
  %110 = vmatprep.mubr.bf16.mxu0 0
  %111 = vmatmul.mubr.bf16.gmra.mrb[0].mxu0 %v72
  %v112 = vpop.f32.mrb[0].mxu0
  %v113 = vadd.f32 %v31, %v112
  %v114 = vpop.f32.mrb[0].mxu0
  %v115 = vpop.f32.mrb[0].mxu0
  %v116 = vadd.f32 %v36, %v115
  %v117 = vpop.f32.mrb[0].mxu0
  %118 = vdwg.mxu0
  %v119 = vxor.u32 %v113, 2147483648
  %v120 = vxor.u32 %v116, 2147483648
  %v121 = vmul.f32 %v119, 1.442695
  %v122 = vpow.pop %v121
  %v123 = vmul.f32 %v120, 1.442695
  %v124 = vpow.pop %v123
  %v125 = vadd.f32 %v122, 1.0
  %v126 = vadd.f32 %v124, 1.0
  %v127 = vrcp.pop %v125
  %v128 = vmul.f32 1.0, %v127
  %v129 = vrcp.pop %v126
  %v130 = vmul.f32 1.0, %v129
  %v131 = vmul.f32 %v113, %v128
  %v132 = vmul.f32 %v116, %v130
  %133 = vst [vmem:[%s3] sm:$0xff] %v131
  %134 = vst [vmem:[%s3 + $0x8] sm:$0xff] %v132
  // Predicated region
  $region14: #{nvae_forward.20} parent=0 // pred_check
    _
  $region15: #{nvae_forward.20} parent=0 // pred_check_branch
    %136 = sbr.rel (0) target = $region17
  $region16: #{nvae_forward.20} parent=0 // pred_region
    _
  $region17: #{nvae_forward.20} parent=0 // pred_fallthru
    _
  // Predicated region
  $region18: #{nvae_forward.20} parent=0 // pred_check
    _
  $region19: #{nvae_forward.20} parent=0 // pred_check_branch
    %138 = sbr.rel (0) target = $region21
  $region20: #{nvae_forward.20} parent=0 // pred_region
    _
  $region21: #{nvae_forward.20} parent=0 // pred_fallthru
    _

// kernel: nvae_forward.22
$region0: #{nvae_forward.22}
  #allocation0 [shape = 'u32[]', space=smem, size = 0x4, offset = 0x4, fixed_abs, tag = 'smem constant byte address 0x4 - core index']
  #allocation1 [shape = 'u32[144,128]{1,0:T(1,128)}', space=vmem, size = 0x12000, scoped, tag = 'internal scratch']
  %s0 = inlined_call_operand.vmem [shape: f32[16,32], index: 0, kind: input, shape index: {}]
  %s1 = inlined_call_operand.vmem [shape: f32[16,16], index: 1, kind: input, shape index: {}]
  %s2 = inlined_call_operand.vmem [shape: f32[16,16], index: 2, kind: input, shape index: {}]
  %s3 = inlined_call_operand.vmem [shape: f32[16,1], index: 3, kind: input, shape index: {}]
  %s4 = inlined_call_operand.vmem [shape: f32[16,1], index: 4, kind: input, shape index: {}]
  %s5 = inlined_call_operand.vmem [shape: f32[16,32], index: 5, kind: input, shape index: {}]
  %s6 = inlined_call_operand.vmem [shape: f32[16,32], index: 6, kind: input, shape index: {}]
  %s7 = inlined_call_operand.vmem [shape: f32[16,32], index: 7, kind: output, shape index: {0}]
  %s8 = inlined_call_operand.vmem [shape: f32[16,32], index: 8, kind: output, shape index: {1}]
  %s9 = inlined_call_operand.vmem [shape: f32[16,32], index: 9, kind: output, shape index: {2}]
  %s10 = inlined_call_operand.hbm [shape: f32[1,1], index: 10, kind: output, shape index: {3}]
  %11 = xla_tuple %s7, %s8, %s9, %s10
  %s12 = sld [smem:[#allocation0]]
  $region62: #{nvae_forward.22} parent=0
    _
  %s14 = ssub.s32 1, %s12
  %s15 = scalar_select 0, %s14, %s12
  $region1: #{nvae_forward.22} parent=0
    #allocation2 [shape = 'u8[512]{0}', space=smem, size = 0x200, scoped, tag = 'output window, operand 3, single buffered']
    #allocation3 [shape = 's32[1]{0}', space=sflag, size = 0x4, scoped, tag = 'scoped memory for nvae_forward.22']
    %16 = vsyncpa [#allocation3], 0
    // Predicated region
    $region2: #{nvae_forward.22} parent=1 // pred_check
      _
    $region3: #{nvae_forward.22} parent=1 // pred_check_branch
      %18 = sbr.rel (0) target = $region5
    $region4: #{nvae_forward.22} parent=1 // pred_region
      _
    $region5: #{nvae_forward.22} parent=1 // pred_fallthru
      _
    // Predicated region
    $region6: #{nvae_forward.22} parent=1 // pred_check
      _
    $region7: #{nvae_forward.22} parent=1 // pred_check_branch
      %20 = sbr.rel (0) target = $region9
    $region8: #{nvae_forward.22} parent=1 // pred_region
      _
    $region9: #{nvae_forward.22} parent=1 // pred_fallthru
      _
    // Predicated region
    $region10: #{nvae_forward.22} parent=1 // pred_check
      _
    $region11: #{nvae_forward.22} parent=1 // pred_check_branch
      %22 = sbr.rel (0) target = $region13
    $region12: #{nvae_forward.22} parent=1 // pred_region
      _
    $region13: #{nvae_forward.22} parent=1 // pred_fallthru
      _
    // Predicated region
    $region14: #{nvae_forward.22} parent=1 // pred_check
      _
    $region15: #{nvae_forward.22} parent=1 // pred_check_branch
      %24 = sbr.rel (0) target = $region17
    $region16: #{nvae_forward.22} parent=1 // pred_region
      _
    $region17: #{nvae_forward.22} parent=1 // pred_fallthru
      _
    // Predicated region
    $region18: #{nvae_forward.22} parent=1 // pred_check
      _
    $region19: #{nvae_forward.22} parent=1 // pred_check_branch
      %26 = sbr.rel (0) target = $region21
    $region20: #{nvae_forward.22} parent=1 // pred_region
      _
    $region21: #{nvae_forward.22} parent=1 // pred_fallthru
      _
    // Predicated region
    $region22: #{nvae_forward.22} parent=1 // pred_check
      _
    $region23: #{nvae_forward.22} parent=1 // pred_check_branch
      %28 = sbr.rel (0) target = $region25
    $region24: #{nvae_forward.22} parent=1 // pred_region
      _
    $region25: #{nvae_forward.22} parent=1 // pred_fallthru
      _
    // Predicated region
    $region26: #{nvae_forward.22} parent=1 // pred_check
      _
    $region27: #{nvae_forward.22} parent=1 // pred_check_branch
      %30 = sbr.rel (0) target = $region29
    $region28: #{nvae_forward.22} parent=1 // pred_region
      _
    $region29: #{nvae_forward.22} parent=1 // pred_fallthru
      _
    %v31 = vld [vmem:[%s0] sm:$0xff]
    %v32 = vld [vmem:[%s0 + $0x8] sm:$0xff]
    %v33 = vld [vmem:[%s1] sm:$0xff]
    %v34 = vld [vmem:[%s1 + $0x8] sm:$0xff]
    %v35 = vld [vmem:[%s3] sm:$0xff]
    %v36 = vld [vmem:[%s3 + $0x8] sm:$0xff]
    %38 = vset.pattern.permute.xlu0 0
    %39 = vperm.xlu0 %38, %v35
    %v40 = vpop.permute.xlu0 %39
    %43 = vset.pattern.permute.xlu0 0
    %44 = vperm.xlu0 %43, %v36
    %v45 = vpop.permute.xlu0 %44
    %vm47 = vcmask 130048
    %v49 = vsel %vm47, %v33, 0
    %v52 = vsel %vm47, %v34, 0
    %54 = vmatprep.subr.mxu0 0.0
    %55 = vmatpush1.msra.mxu0 %v31
    %56 = vmatprep.subr.mxu0 0.0
    %57 = vmatpush1.msra.mxu0 %v32
    %58 = vmatprep.subr.mxu0 0.0
    %59 = vmatpush1.msra.mxu0 0.0
    %60 = vmatprep.subr.mxu0 0.0
    %61 = vmatpush1.msra.mxu0 0.0
    %62 = vmatprep.subr.mxu0 0.0
    %63 = vmatpush1.msra.mxu0 0.0
    %64 = vmatprep.subr.mxu0 0.0
    %65 = vmatpush1.msra.mxu0 0.0
    %66 = vmatprep.subr.mxu0 0.0
    %67 = vmatpush1.msra.mxu0 0.0
    %68 = vmatprep.subr.mxu0 0.0
    %69 = vmatpush1.msra.mxu0 0.0
    %70 = vmatprep.subr.mxu0 0.0
    %71 = vmatpush1.msra.mxu0 0.0
    %72 = vmatprep.subr.mxu0 0.0
    %73 = vmatpush1.msra.mxu0 0.0
    %74 = vmatprep.subr.mxu0 0.0
    %75 = vmatpush1.msra.mxu0 0.0
    %76 = vmatprep.subr.mxu0 0.0
    %77 = vmatpush1.msra.mxu0 0.0
    %78 = vmatprep.subr.mxu0 0.0
    %79 = vmatpush1.msra.mxu0 0.0
    %80 = vmatprep.subr.mxu0 0.0
    %81 = vmatpush1.msra.mxu0 0.0
    %82 = vmatprep.subr.mxu0 0.0
    %83 = vmatpush1.msra.mxu0 0.0
    %84 = vmatprep.subr.mxu0 0.0
    %85 = vmatpush1.msra.mxu0 0.0
    %86 = vmatprep.subr.mxu0 0.0
    %87 = vmatpush1.msra.mxu0 0.0
    %88 = vmatprep.subr.mxu0 0.0
    %89 = vmatpush1.msra.mxu0 0.0
    %90 = vmatprep.subr.mxu0 0.0
    %91 = vmatpush1.msra.mxu0 0.0
    %92 = vmatprep.subr.mxu0 0.0
    %93 = vmatpush1.msra.mxu0 0.0
    %94 = vmatprep.subr.mxu0 0.0
    %95 = vmatpush1.msra.mxu0 0.0
    %96 = vmatprep.subr.mxu0 0.0
    %97 = vmatpush1.msra.mxu0 0.0
    %98 = vmatprep.subr.mxu0 0.0
    %99 = vmatpush1.msra.mxu0 0.0
    %100 = vmatprep.subr.mxu0 0.0
    %101 = vmatpush1.msra.mxu0 0.0
    %102 = vmatprep.subr.mxu0 0.0
    %103 = vmatpush1.msra.mxu0 0.0
    %104 = vmatprep.subr.mxu0 0.0
    %105 = vmatpush1.msra.mxu0 0.0
    %106 = vmatprep.subr.mxu0 0.0
    %107 = vmatpush1.msra.mxu0 0.0
    %108 = vmatprep.subr.mxu0 0.0
    %109 = vmatpush1.msra.mxu0 0.0
    %110 = vmatprep.subr.mxu0 0.0
    %111 = vmatpush1.msra.mxu0 0.0
    %112 = vmatprep.subr.mxu0 0.0
    %113 = vmatpush1.msra.mxu0 0.0
    %114 = vmatprep.subr.mxu0 0.0
    %115 = vmatpush1.msra.mxu0 0.0
    %116 = vmatprep.subr.mxu0 0.0
    %117 = vmatpush1.msra.mxu0 0.0
    %118 = vmatprep.mubr.f32.mxu0 0.0
    %119 = vmatmul.mubr.f32.gmra.mrb[0].mxu0 %v49
    %v120 = vpop.f32.mrb[0].mxu0
    %v121 = vadd.f32 %v40, %v120
    %v122 = vpop.f32.mrb[0].mxu0
    %123 = vmatprep.mubr.f32.mxu0 0.0
    %124 = vmatmul.mubr.f32.gmra.mrb[0].mxu0 %v52
    %v125 = vpop.f32.mrb[0].mxu0
    %v126 = vadd.f32 %v45, %v125
    %v127 = vpop.f32.mrb[0].mxu0
    %128 = vdwg.mxu0
    %v129 = vld [vmem:[%s2] sm:$0xff]
    %v130 = vld [vmem:[%s2 + $0x8] sm:$0xff]
    %v131 = vld [vmem:[%s4] sm:$0xff]
    %v132 = vld [vmem:[%s4 + $0x8] sm:$0xff]
    %134 = vset.pattern.permute.xlu0 0
    %135 = vperm.xlu0 %134, %v131
    %v136 = vpop.permute.xlu0 %135
    %139 = vset.pattern.permute.xlu0 0
    %140 = vperm.xlu0 %139, %v132
    %v141 = vpop.permute.xlu0 %140
    %v144 = vsel %vm47, %v129, 0
    %v147 = vsel %vm47, %v130, 0
    %149 = vmatprep.subr.mxu0 0.0
    %150 = vmatpush1.msra.mxu0 %v31
    %151 = vmatprep.subr.mxu0 0.0
    %152 = vmatpush1.msra.mxu0 %v32
    %153 = vmatprep.subr.mxu0 0.0
    %154 = vmatpush1.msra.mxu0 0.0
    %155 = vmatprep.subr.mxu0 0.0
    %156 = vmatpush1.msra.mxu0 0.0
    %157 = vmatprep.subr.mxu0 0.0
    %158 = vmatpush1.msra.mxu0 0.0
    %159 = vmatprep.subr.mxu0 0.0
    %160 = vmatpush1.msra.mxu0 0.0
    %161 = vmatprep.subr.mxu0 0.0
    %162 = vmatpush1.msra.mxu0 0.0
    %163 = vmatprep.subr.mxu0 0.0
    %164 = vmatpush1.msra.mxu0 0.0
    %165 = vmatprep.subr.mxu0 0.0
    %166 = vmatpush1.msra.mxu0 0.0
    %167 = vmatprep.subr.mxu0 0.0
    %168 = vmatpush1.msra.mxu0 0.0
    %169 = vmatprep.subr.mxu0 0.0
    %170 = vmatpush1.msra.mxu0 0.0
    %171 = vmatprep.subr.mxu0 0.0
    %172 = vmatpush1.msra.mxu0 0.0
    %173 = vmatprep.subr.mxu0 0.0
    %174 = vmatpush1.msra.mxu0 0.0
    %175 = vmatprep.subr.mxu0 0.0
    %176 = vmatpush1.msra.mxu0 0.0
    %177 = vmatprep.subr.mxu0 0.0
    %178 = vmatpush1.msra.mxu0 0.0
    %179 = vmatprep.subr.mxu0 0.0
    %180 = vmatpush1.msra.mxu0 0.0
    %181 = vmatprep.subr.mxu0 0.0
    %182 = vmatpush1.msra.mxu0 0.0
    %183 = vmatprep.subr.mxu0 0.0
    %184 = vmatpush1.msra.mxu0 0.0
    %185 = vmatprep.subr.mxu0 0.0
    %186 = vmatpush1.msra.mxu0 0.0
    %187 = vmatprep.subr.mxu0 0.0
    %188 = vmatpush1.msra.mxu0 0.0
    %189 = vmatprep.subr.mxu0 0.0
    %190 = vmatpush1.msra.mxu0 0.0
    %191 = vmatprep.subr.mxu0 0.0
    %192 = vmatpush1.msra.mxu0 0.0
    %193 = vmatprep.subr.mxu0 0.0
    %194 = vmatpush1.msra.mxu0 0.0
    %195 = vmatprep.subr.mxu0 0.0
    %196 = vmatpush1.msra.mxu0 0.0
    %197 = vmatprep.subr.mxu0 0.0
    %198 = vmatpush1.msra.mxu0 0.0
    %199 = vmatprep.subr.mxu0 0.0
    %200 = vmatpush1.msra.mxu0 0.0
    %201 = vmatprep.subr.mxu0 0.0
    %202 = vmatpush1.msra.mxu0 0.0
    %203 = vmatprep.subr.mxu0 0.0
    %204 = vmatpush1.msra.mxu0 0.0
    %205 = vmatprep.subr.mxu0 0.0
    %206 = vmatpush1.msra.mxu0 0.0
    %207 = vmatprep.subr.mxu0 0.0
    %208 = vmatpush1.msra.mxu0 0.0
    %209 = vmatprep.subr.mxu0 0.0
    %210 = vmatpush1.msra.mxu0 0.0
    %211 = vmatprep.subr.mxu0 0.0
    %212 = vmatpush1.msra.mxu0 0.0
    %213 = vmatprep.mubr.f32.mxu0 0.0
    %214 = vmatmul.mubr.f32.gmra.mrb[0].mxu0 %v144
    %v215 = vpop.f32.mrb[0].mxu0
    %v216 = vadd.f32 %v136, %v215
    %v217 = vpop.f32.mrb[0].mxu0
    %218 = vmatprep.mubr.f32.mxu0 0.0
    %219 = vmatmul.mubr.f32.gmra.mrb[0].mxu0 %v147
    %v220 = vpop.f32.mrb[0].mxu0
    %v221 = vadd.f32 %v141, %v220
    %v222 = vpop.f32.mrb[0].mxu0
    %223 = vdwg.mxu0
    %v224 = vmul.f32 %v216, 0.5
    %v225 = vmul.f32 %v221, 0.5
    %v226 = vmul.f32 %v224, 1.442695
    %v227 = vpow.pop %v226
    %v228 = vmul.f32 %v225, 1.442695
    %v229 = vpow.pop %v228
    %v230 = vld [vmem:[%s5] sm:$0xff]
    %v231 = vld [vmem:[%s5 + $0x8] sm:$0xff]
    %v232 = vmul.f32 %v227, %v230
    %v233 = vmul.f32 %v229, %v231
    %v234 = vadd.f32 %v121, %v232
    %v235 = vadd.f32 %v126, %v233
    %v236 = vld [vmem:[%s6] sm:$0xff]
    %v237 = vld [vmem:[%s6 + $0x8] sm:$0xff]
    %v238 = vmul.f32 %v236, 0.3
    %v239 = vmul.f32 %v237, 0.3
    %v240 = vadd.f32 %v234, %v238
    %v241 = vadd.f32 %v235, %v239
    %vm242 = vcmask 261120
    %243 = vst.msk [vmem:[%s7] sm:$0xff] %vm242, %v240
    %244 = vst.msk [vmem:[%s7 + $0x8] sm:$0xff] %vm242, %v241
    %245 = vst.msk [vmem:[%s8] sm:$0xff] %vm242, %v121
    %246 = vst.msk [vmem:[%s8 + $0x8] sm:$0xff] %vm242, %v126
    %247 = vst.msk [vmem:[%s9] sm:$0xff] %vm242, %v216
    %248 = vst.msk [vmem:[%s9 + $0x8] sm:$0xff] %vm242, %v221
    %v249 = vadd.f32 %v216, 1.0
    %v250 = vadd.f32 %v221, 1.0
    %v251 = vmul.f32 %v121, %v121
    %v252 = vmul.f32 %v126, %v126
    %v253 = vsub.f32 %v249, %v251
    %v254 = vsub.f32 %v250, %v252
    %v255 = vmul.f32 %v216, 1.442695
    %v256 = vpow.pop %v255
    %v257 = vmul.f32 %v221, 1.442695
    %v258 = vpow.pop %v257
    %v259 = vsub.f32 %v253, %v256
    %v260 = vsub.f32 %v254, %v258
    %v261 = vsel %vm242, %v259, 0.0
    %v262 = vsel %vm242, %v260, 0.0
    %v263 = vadd.f32 %v261, %v262
    %264 = vadd.xlane.f32.xlu0 %v263
    %v265 = vpop.xlane.xlu0 %264
    %v266 = vrot.slane %v265, 4
    %v267 = vadd.f32 %v265, %v266
    %v268 = vrot.slane %v267, 2
    %v269 = vadd.f32 %v267, %v268
    %v270 = vrot.slane %v269, 1
    %v271 = vadd.f32 %v269, %v270
    %s272 = vtos %v271
    %s273 = smul.f32 %s272, -0.5
    %v274 = vrcp.pop 2.0
    %s275 = vtos %v274
    %s276 = smul.f32 %s273, %s275
    %s277 = scalar_lea.smem [#allocation2], 0
    %278 = sst [smem:[%s277]] %s276
    // Predicated region
    $region30: #{nvae_forward.22} parent=1 // pred_check
      _
    $region31: #{nvae_forward.22} parent=1 // pred_check_branch
      %280 = sbr.rel (0) target = $region33
    $region32: #{nvae_forward.22} parent=1 // pred_region
      _
    $region33: #{nvae_forward.22} parent=1 // pred_fallthru
      _
    // Predicated region
    $region34: #{nvae_forward.22} parent=1 // pred_check
      _
    $region35: #{nvae_forward.22} parent=1 // pred_check_branch
      %282 = sbr.rel (0) target = $region37
    $region36: #{nvae_forward.22} parent=1 // pred_region
      _
    $region37: #{nvae_forward.22} parent=1 // pred_fallthru
      _
    // Predicated region
    $region38: #{nvae_forward.22} parent=1 // pred_check
      _
    $region39: #{nvae_forward.22} parent=1 // pred_check_branch
      %284 = sbr.rel (0) target = $region41
    $region40: #{nvae_forward.22} parent=1 // pred_region
      _
    $region41: #{nvae_forward.22} parent=1 // pred_fallthru
      _
    // Predicated region
    $region42: #{nvae_forward.22} parent=1 // pred_check
      _
    $region43: #{nvae_forward.22} parent=1 // pred_check_branch
      %286 = sbr.rel (0) target = $region45
    $region44: #{nvae_forward.22} parent=1 // pred_region
      %s288 = ssub.s32 16, 16
      %289 = vsyncadd [#allocation3], %s288
      %292 = dma.smem_to_hbm [#allocation2], 16, %s10, [#allocation3]
    $region45: #{nvae_forward.22} parent=1 // pred_fallthru
      _
    // Predicated region
    $region46: #{nvae_forward.22} parent=1 // pred_check
      _
    $region47: #{nvae_forward.22} parent=1 // pred_check_branch
      %294 = sbr.rel (0) target = $region49
    $region48: #{nvae_forward.22} parent=1 // pred_region
      _
    $region49: #{nvae_forward.22} parent=1 // pred_fallthru
      _
    // Predicated region
    $region50: #{nvae_forward.22} parent=1 // pred_check
      _
    $region51: #{nvae_forward.22} parent=1 // pred_check_branch
      %296 = sbr.rel (0) target = $region53
    $region52: #{nvae_forward.22} parent=1 // pred_region
      _
    $region53: #{nvae_forward.22} parent=1 // pred_fallthru
      _
    // Predicated region
    $region54: #{nvae_forward.22} parent=1 // pred_check
      _
    $region55: #{nvae_forward.22} parent=1 // pred_check_branch
      %298 = sbr.rel (0) target = $region57
    $region56: #{nvae_forward.22} parent=1 // pred_region
      _
    $region57: #{nvae_forward.22} parent=1 // pred_fallthru
      _
    // Predicated region
    $region58: #{nvae_forward.22} parent=1 // pred_check
      _
    $region59: #{nvae_forward.22} parent=1 // pred_check_branch
      %300 = sbr.rel (0) target = $region61
    $region60: #{nvae_forward.22} parent=1 // pred_region
      %301 = dma.done [#allocation3], 16
    $region61: #{nvae_forward.22} parent=1 // pred_fallthru
      _
    %302 = sfence
    %303 = vsyncpa [#allocation3], 1

// kernel: nvae_forward.21
$region0: #{nvae_forward.21}
  #allocation0 [shape = 'u32[]', space=smem, size = 0x4, offset = 0x4, fixed_abs, tag = 'smem constant byte address 0x4 - core index']
  #allocation1 [shape = 'u32[144,128]{1,0:T(1,128)}', space=vmem, size = 0x12000, scoped, tag = 'internal scratch']
  %s0 = inlined_call_operand.vmem [shape: bf16[16,144], index: 0, kind: input, shape index: {}]
  %s1 = inlined_call_operand.vmem [shape: bf16[144,128], index: 1, kind: input, shape index: {}]
  %s2 = inlined_call_operand.vmem [shape: f32[16,1], index: 2, kind: input, shape index: {}]
  %s3 = inlined_call_operand.vmem [shape: f32[16,128], index: 3, kind: output, shape index: {}]
  %s4 = sld [smem:[#allocation0]]
  $region22: #{nvae_forward.21} parent=0
    _
  %s6 = ssub.s32 1, %s4
  %s7 = scalar_select 0, %s6, %s4
  // Predicated region
  $region2: #{nvae_forward.21} parent=0 // pred_check
    _
  $region3: #{nvae_forward.21} parent=0 // pred_check_branch
    %9 = sbr.rel (0) target = $region5
  $region4: #{nvae_forward.21} parent=0 // pred_region
    _
  $region5: #{nvae_forward.21} parent=0 // pred_fallthru
    _
  // Predicated region
  $region6: #{nvae_forward.21} parent=0 // pred_check
    _
  $region7: #{nvae_forward.21} parent=0 // pred_check_branch
    %11 = sbr.rel (0) target = $region9
  $region8: #{nvae_forward.21} parent=0 // pred_region
    _
  $region9: #{nvae_forward.21} parent=0 // pred_fallthru
    _
  // Predicated region
  $region10: #{nvae_forward.21} parent=0 // pred_check
    _
  $region11: #{nvae_forward.21} parent=0 // pred_check_branch
    %13 = sbr.rel (0) target = $region13
  $region12: #{nvae_forward.21} parent=0 // pred_region
    _
  $region13: #{nvae_forward.21} parent=0 // pred_fallthru
    _
  %v15 = vld [vmem:[%s0] sm:$0xff]
  %v16 = vld [vmem:[%s0 + $0x8] sm:$0xff]
  %v17 = vld [vmem:[%s1] sm:$0xf]
  %v18 = vld [vmem:[%s1 + $0x4] sm:$0xf]
  %v19 = vld [vmem:[%s1 + $0x8] sm:$0xf]
  %v20 = vld [vmem:[%s1 + $0xc] sm:$0xf]
  %v21 = vld [vmem:[%s1 + $0x10] sm:$0xf]
  %v22 = vld [vmem:[%s1 + $0x14] sm:$0xf]
  %v23 = vld [vmem:[%s1 + $0x18] sm:$0xf]
  %v24 = vld [vmem:[%s1 + $0x1c] sm:$0xf]
  %v25 = vld [vmem:[%s1 + $0x20] sm:$0xf]
  %v26 = vld [vmem:[%s1 + $0x24] sm:$0xf]
  %v27 = vld [vmem:[%s1 + $0x28] sm:$0xf]
  %v28 = vld [vmem:[%s1 + $0x2c] sm:$0xf]
  %v29 = vld [vmem:[%s1 + $0x30] sm:$0xf]
  %v30 = vld [vmem:[%s1 + $0x34] sm:$0xf]
  %v31 = vld [vmem:[%s1 + $0x38] sm:$0xf]
  %v32 = vld [vmem:[%s1 + $0x3c] sm:$0xf]
  %v33 = vld [vmem:[%s1 + $0x40] sm:$0xf]
  %v34 = vld [vmem:[%s1 + $0x44] sm:$0xf]
  %v35 = vld [vmem:[%s2] sm:$0xff]
  %v36 = vld [vmem:[%s2 + $0x8] sm:$0xff]
  %38 = vset.pattern.permute.xlu0 0
  %39 = vperm.xlu0 %38, %v35
  %v40 = vpop.permute.xlu0 %39
  %43 = vset.pattern.permute.xlu0 0
  %44 = vperm.xlu0 %43, %v36
  %v45 = vpop.permute.xlu0 %44
  %v49 = vunpack.c.l.b16 %v15
  %v50 = vunpack.c.h.b16 %v15
  %v51 = vunpack.c.l.b16 %v16
  %v52 = vunpack.c.h.b16 %v16
  %v53 = vpack.c.b16 %v51, %v49
  %v54 = vpack.c.b16 %v52, %v50
  %v74 = vunpack.c.l.b16 %v17
  %v75 = vunpack.c.l.b16 %v18
  %v76 = vunpack.c.l.b16 %v19
  %v77 = vunpack.c.l.b16 %v20
  %v78 = vunpack.c.l.b16 %v21
  %v79 = vunpack.c.l.b16 %v22
  %v80 = vunpack.c.l.b16 %v23
  %v81 = vunpack.c.l.b16 %v24
  %v82 = vunpack.c.l.b16 %v25
  %v83 = vunpack.c.l.b16 %v26
  %v84 = vunpack.c.l.b16 %v27
  %v85 = vunpack.c.l.b16 %v28
  %v86 = vunpack.c.l.b16 %v29
  %v87 = vunpack.c.l.b16 %v30
  %v88 = vunpack.c.l.b16 %v31
  %v89 = vunpack.c.l.b16 %v32
  %v90 = vunpack.c.l.b16 %v33
  %v91 = vunpack.c.l.b16 %v34
  %v92 = vpack.c.b16 %v75, %v74
  %v93 = vpack.c.b16 %v77, %v76
  %v94 = vpack.c.b16 %v79, %v78
  %v95 = vpack.c.b16 %v81, %v80
  %v96 = vpack.c.b16 %v83, %v82
  %v97 = vpack.c.b16 %v85, %v84
  %v98 = vpack.c.b16 %v87, %v86
  %v99 = vpack.c.b16 %v89, %v88
  %v100 = vpack.c.b16 %v91, %v90
  %vm110 = vcmask 130048
  %v112 = vsel %vm110, %v54, 0
  %114 = vmatprep.subr.bf16.mxu0 0
  %115 = vmatpush1.bf16.msra.mxu0 %v92
  %116 = vmatprep.subr.bf16.mxu0 0
  %117 = vmatpush1.bf16.msra.mxu0 %v93
  %118 = vmatprep.subr.bf16.mxu0 0
  %119 = vmatpush1.bf16.msra.mxu0 %v94
  %120 = vmatprep.subr.bf16.mxu0 0
  %121 = vmatpush1.bf16.msra.mxu0 %v95
  %122 = vmatprep.subr.bf16.mxu0 0
  %123 = vmatpush1.bf16.msra.mxu0 %v96
  %124 = vmatprep.subr.bf16.mxu0 0
  %125 = vmatpush1.bf16.msra.mxu0 %v97
  %126 = vmatprep.subr.bf16.mxu0 0
  %127 = vmatpush1.bf16.msra.mxu0 %v98
  %128 = vmatprep.subr.bf16.mxu0 0
  %129 = vmatpush1.bf16.msra.mxu0 %v99
  %130 = vmatprep.subr.bf16.mxu0 0
  %131 = vmatpush1.bf16.msra.mxu0 %v100
  %132 = vmatprep.subr.bf16.mxu0 0
  %133 = vmatpush1.bf16.msra.mxu0 0
  %134 = vmatprep.subr.bf16.mxu0 0
  %135 = vmatpush1.bf16.msra.mxu0 0
  %136 = vmatprep.subr.bf16.mxu0 0
  %137 = vmatpush1.bf16.msra.mxu0 0
  %138 = vmatprep.subr.bf16.mxu0 0
  %139 = vmatpush1.bf16.msra.mxu0 0
  %140 = vmatprep.subr.bf16.mxu0 0
  %141 = vmatpush1.bf16.msra.mxu0 0
  %142 = vmatprep.subr.bf16.mxu0 0
  %143 = vmatpush1.bf16.msra.mxu0 0
  %144 = vmatprep.subr.bf16.mxu0 0
  %145 = vmatpush1.bf16.msra.mxu0 0
  %146 = vmatprep.mubr.bf16.mxu0 %v112
  %147 = vmatmul.mubr.bf16.gmra.mrb[0].mxu0 %v53
  %v148 = vpop.f32.mrb[0].mxu0
  %v149 = vadd.f32 %v40, %v148
  %v150 = vpop.f32.mrb[0].mxu0
  %v151 = vpop.f32.mrb[0].mxu0
  %v152 = vadd.f32 %v45, %v151
  %v153 = vpop.f32.mrb[0].mxu0
  %154 = vdwg.mxu0
  %v155 = vxor.u32 %v149, 2147483648
  %v156 = vxor.u32 %v152, 2147483648
  %v157 = vmul.f32 %v155, 1.442695
  %v158 = vpow.pop %v157
  %v159 = vmul.f32 %v156, 1.442695
  %v160 = vpow.pop %v159
  %v161 = vadd.f32 %v158, 1.0
  %v162 = vadd.f32 %v160, 1.0
  %v163 = vrcp.pop %v161
  %v164 = vmul.f32 1.0, %v163
  %v165 = vrcp.pop %v162
  %v166 = vmul.f32 1.0, %v165
  %v167 = vmul.f32 %v149, %v164
  %v168 = vmul.f32 %v152, %v166
  %169 = vst [vmem:[%s3] sm:$0xff] %v167
  %170 = vst [vmem:[%s3 + $0x8] sm:$0xff] %v168
  // Predicated region
  $region14: #{nvae_forward.21} parent=0 // pred_check
    _
  $region15: #{nvae_forward.21} parent=0 // pred_check_branch
    %172 = sbr.rel (0) target = $region17
  $region16: #{nvae_forward.21} parent=0 // pred_region
    _
  $region17: #{nvae_forward.21} parent=0 // pred_fallthru
    _
  // Predicated region
  $region18: #{nvae_forward.21} parent=0 // pred_check
    _
  $region19: #{nvae_forward.21} parent=0 // pred_check_branch
    %174 = sbr.rel (0) target = $region21
  $region20: #{nvae_forward.21} parent=0 // pred_region
    _
  $region21: #{nvae_forward.21} parent=0 // pred_fallthru
    _

// kernel: nvae_forward.23
$region0: #{nvae_forward.23}
  #allocation0 [shape = 'u32[]', space=smem, size = 0x4, offset = 0x4, fixed_abs, tag = 'smem constant byte address 0x4 - core index']
  #allocation1 [shape = 'u32[144,128]{1,0:T(1,128)}', space=vmem, size = 0x12000, scoped, tag = 'internal scratch']
  %s0 = inlined_call_operand.vmem [shape: bf16[8,144], index: 0, kind: input, shape index: {}]
  %s1 = inlined_call_operand.vmem [shape: bf16[144,128], index: 1, kind: input, shape index: {}]
  %s2 = inlined_call_operand.vmem [shape: f32[8,1], index: 2, kind: input, shape index: {}]
  %s3 = inlined_call_operand.vmem [shape: f32[8,128], index: 3, kind: output, shape index: {}]
  %s4 = sld [smem:[#allocation0]]
  $region22: #{nvae_forward.23} parent=0
    _
  %s6 = ssub.s32 1, %s4
  %s7 = scalar_select 0, %s6, %s4
  // Predicated region
  $region2: #{nvae_forward.23} parent=0 // pred_check
    _
  $region3: #{nvae_forward.23} parent=0 // pred_check_branch
    %9 = sbr.rel (0) target = $region5
  $region4: #{nvae_forward.23} parent=0 // pred_region
    _
  $region5: #{nvae_forward.23} parent=0 // pred_fallthru
    _
  // Predicated region
  $region6: #{nvae_forward.23} parent=0 // pred_check
    _
  $region7: #{nvae_forward.23} parent=0 // pred_check_branch
    %11 = sbr.rel (0) target = $region9
  $region8: #{nvae_forward.23} parent=0 // pred_region
    _
  $region9: #{nvae_forward.23} parent=0 // pred_fallthru
    _
  // Predicated region
  $region10: #{nvae_forward.23} parent=0 // pred_check
    _
  $region11: #{nvae_forward.23} parent=0 // pred_check_branch
    %13 = sbr.rel (0) target = $region13
  $region12: #{nvae_forward.23} parent=0 // pred_region
    _
  $region13: #{nvae_forward.23} parent=0 // pred_fallthru
    _
  %v15 = vld [vmem:[%s0] sm:$0xff]
  %v16 = vld [vmem:[%s1] sm:$0xf]
  %v17 = vld [vmem:[%s1 + $0x4] sm:$0xf]
  %v18 = vld [vmem:[%s1 + $0x8] sm:$0xf]
  %v19 = vld [vmem:[%s1 + $0xc] sm:$0xf]
  %v20 = vld [vmem:[%s1 + $0x10] sm:$0xf]
  %v21 = vld [vmem:[%s1 + $0x14] sm:$0xf]
  %v22 = vld [vmem:[%s1 + $0x18] sm:$0xf]
  %v23 = vld [vmem:[%s1 + $0x1c] sm:$0xf]
  %v24 = vld [vmem:[%s1 + $0x20] sm:$0xf]
  %v25 = vld [vmem:[%s1 + $0x24] sm:$0xf]
  %v26 = vld [vmem:[%s1 + $0x28] sm:$0xf]
  %v27 = vld [vmem:[%s1 + $0x2c] sm:$0xf]
  %v28 = vld [vmem:[%s1 + $0x30] sm:$0xf]
  %v29 = vld [vmem:[%s1 + $0x34] sm:$0xf]
  %v30 = vld [vmem:[%s1 + $0x38] sm:$0xf]
  %v31 = vld [vmem:[%s1 + $0x3c] sm:$0xf]
  %v32 = vld [vmem:[%s1 + $0x40] sm:$0xf]
  %v33 = vld [vmem:[%s1 + $0x44] sm:$0xf]
  %v34 = vld [vmem:[%s2] sm:$0xff]
  %36 = vset.pattern.permute.xlu0 0
  %37 = vperm.xlu0 %36, %v34
  %v38 = vpop.permute.xlu0 %37
  %v41 = vunpack.c.l.b16 %v15
  %v42 = vunpack.c.h.b16 %v15
  %v43 = vpack.c.b16 %v41, %v41
  %v44 = vpack.c.b16 %v42, %v42
  %v64 = vunpack.c.l.b16 %v16
  %v65 = vunpack.c.l.b16 %v17
  %v66 = vunpack.c.l.b16 %v18
  %v67 = vunpack.c.l.b16 %v19
  %v68 = vunpack.c.l.b16 %v20
  %v69 = vunpack.c.l.b16 %v21
  %v70 = vunpack.c.l.b16 %v22
  %v71 = vunpack.c.l.b16 %v23
  %v72 = vunpack.c.l.b16 %v24
  %v73 = vunpack.c.l.b16 %v25
  %v74 = vunpack.c.l.b16 %v26
  %v75 = vunpack.c.l.b16 %v27
  %v76 = vunpack.c.l.b16 %v28
  %v77 = vunpack.c.l.b16 %v29
  %v78 = vunpack.c.l.b16 %v30
  %v79 = vunpack.c.l.b16 %v31
  %v80 = vunpack.c.l.b16 %v32
  %v81 = vunpack.c.l.b16 %v33
  %v82 = vpack.c.b16 %v65, %v64
  %v83 = vpack.c.b16 %v67, %v66
  %v84 = vpack.c.b16 %v69, %v68
  %v85 = vpack.c.b16 %v71, %v70
  %v86 = vpack.c.b16 %v73, %v72
  %v87 = vpack.c.b16 %v75, %v74
  %v88 = vpack.c.b16 %v77, %v76
  %v89 = vpack.c.b16 %v79, %v78
  %v90 = vpack.c.b16 %v81, %v80
  %vm100 = vcmask 130048
  %v102 = vsel %vm100, %v44, 0
  %104 = vmatprep.subr.bf16.mxu0 0
  %105 = vmatpush1.bf16.msra.mxu0 %v82
  %106 = vmatprep.subr.bf16.mxu0 0
  %107 = vmatpush1.bf16.msra.mxu0 %v83
  %108 = vmatprep.subr.bf16.mxu0 0
  %109 = vmatpush1.bf16.msra.mxu0 %v84
  %110 = vmatprep.subr.bf16.mxu0 0
  %111 = vmatpush1.bf16.msra.mxu0 %v85
  %112 = vmatprep.subr.bf16.mxu0 0
  %113 = vmatpush1.bf16.msra.mxu0 %v86
  %114 = vmatprep.subr.bf16.mxu0 0
  %115 = vmatpush1.bf16.msra.mxu0 %v87
  %116 = vmatprep.subr.bf16.mxu0 0
  %117 = vmatpush1.bf16.msra.mxu0 %v88
  %118 = vmatprep.subr.bf16.mxu0 0
  %119 = vmatpush1.bf16.msra.mxu0 %v89
  %120 = vmatprep.subr.bf16.mxu0 0
  %121 = vmatpush1.bf16.msra.mxu0 %v90
  %122 = vmatprep.subr.bf16.mxu0 0
  %123 = vmatpush1.bf16.msra.mxu0 0
  %124 = vmatprep.subr.bf16.mxu0 0
  %125 = vmatpush1.bf16.msra.mxu0 0
  %126 = vmatprep.subr.bf16.mxu0 0
  %127 = vmatpush1.bf16.msra.mxu0 0
  %128 = vmatprep.subr.bf16.mxu0 0
  %129 = vmatpush1.bf16.msra.mxu0 0
  %130 = vmatprep.subr.bf16.mxu0 0
  %131 = vmatpush1.bf16.msra.mxu0 0
  %132 = vmatprep.subr.bf16.mxu0 0
  %133 = vmatpush1.bf16.msra.mxu0 0
  %134 = vmatprep.subr.bf16.mxu0 0
  %135 = vmatpush1.bf16.msra.mxu0 0
  %136 = vmatprep.mubr.bf16.mxu0 %v102
  %137 = vmatmul.mubr.bf16.gmra.mrb[0].mxu0 %v43
  %v138 = vpop.f32.mrb[0].mxu0
  %v139 = vadd.f32 %v38, %v138
  %v140 = vpop.f32.mrb[0].mxu0
  %v141 = vpop.f32.mrb[0].mxu0
  %v142 = vpop.f32.mrb[0].mxu0
  %143 = vdwg.mxu0
  %v144 = vxor.u32 %v139, 2147483648
  %v145 = vmul.f32 %v144, 1.442695
  %v146 = vpow.pop %v145
  %v147 = vadd.f32 %v146, 1.0
  %v148 = vrcp.pop %v147
  %v149 = vmul.f32 1.0, %v148
  %v150 = vmul.f32 %v139, %v149
  %151 = vst [vmem:[%s3] sm:$0xff] %v150
  // Predicated region
  $region14: #{nvae_forward.23} parent=0 // pred_check
    _
  $region15: #{nvae_forward.23} parent=0 // pred_check_branch
    %153 = sbr.rel (0) target = $region17
  $region16: #{nvae_forward.23} parent=0 // pred_region
    _
  $region17: #{nvae_forward.23} parent=0 // pred_fallthru
    _
  // Predicated region
  $region18: #{nvae_forward.23} parent=0 // pred_check
    _
  $region19: #{nvae_forward.23} parent=0 // pred_check_branch
    %155 = sbr.rel (0) target = $region21
  $region20: #{nvae_forward.23} parent=0 // pred_region
    _
  $region21: #{nvae_forward.23} parent=0 // pred_fallthru
    _

// kernel: nvae_forward.24
$region0: #{nvae_forward.24}
  #allocation0 [shape = 'u32[]', space=smem, size = 0x4, offset = 0x4, fixed_abs, tag = 'smem constant byte address 0x4 - core index']
  #allocation1 [shape = 'u32[144,128]{1,0:T(1,128)}', space=vmem, size = 0x12000, scoped, tag = 'internal scratch']
  %s0 = inlined_call_operand.vmem [shape: f32[8,128], index: 0, kind: input, shape index: {}]
  %s1 = inlined_call_operand.vmem [shape: f32[8,128], index: 1, kind: input, shape index: {}]
  %s2 = inlined_call_operand.vmem [shape: f32[8,8], index: 2, kind: input, shape index: {}]
  %s3 = inlined_call_operand.vmem [shape: f32[8,8], index: 3, kind: input, shape index: {}]
  %s4 = inlined_call_operand.vmem [shape: f32[8,8], index: 4, kind: input, shape index: {}]
  %s5 = inlined_call_operand.vmem [shape: f32[8,8], index: 5, kind: input, shape index: {}]
  %s6 = inlined_call_operand.vmem [shape: f32[8,1], index: 6, kind: input, shape index: {}]
  %s7 = inlined_call_operand.vmem [shape: f32[8,1], index: 7, kind: input, shape index: {}]
  %s8 = inlined_call_operand.vmem [shape: f32[8,128], index: 8, kind: input, shape index: {}]
  %s9 = inlined_call_operand.vmem [shape: f32[8,128], index: 9, kind: output, shape index: {0}]
  %s10 = inlined_call_operand.hbm [shape: f32[1,1], index: 10, kind: output, shape index: {1}]
  %11 = xla_tuple %s9, %s10
  %s12 = sld [smem:[#allocation0]]
  $region54: #{nvae_forward.24} parent=0
    _
  %s14 = ssub.s32 1, %s12
  %s15 = scalar_select 0, %s14, %s12
  $region1: #{nvae_forward.24} parent=0
    #allocation2 [shape = 'u8[512]{0}', space=smem, size = 0x200, scoped, tag = 'output window, operand 1, single buffered']
    #allocation3 [shape = 's32[1]{0}', space=sflag, size = 0x4, scoped, tag = 'scoped memory for nvae_forward.24']
    %16 = vsyncpa [#allocation3], 0
    // Predicated region
    $region2: #{nvae_forward.24} parent=1 // pred_check
      _
    $region3: #{nvae_forward.24} parent=1 // pred_check_branch
      %18 = sbr.rel (0) target = $region5
    $region4: #{nvae_forward.24} parent=1 // pred_region
      _
    $region5: #{nvae_forward.24} parent=1 // pred_fallthru
      _
    // Predicated region
    $region6: #{nvae_forward.24} parent=1 // pred_check
      _
    $region7: #{nvae_forward.24} parent=1 // pred_check_branch
      %20 = sbr.rel (0) target = $region9
    $region8: #{nvae_forward.24} parent=1 // pred_region
      _
    $region9: #{nvae_forward.24} parent=1 // pred_fallthru
      _
    // Predicated region
    $region10: #{nvae_forward.24} parent=1 // pred_check
      _
    $region11: #{nvae_forward.24} parent=1 // pred_check_branch
      %22 = sbr.rel (0) target = $region13
    $region12: #{nvae_forward.24} parent=1 // pred_region
      _
    $region13: #{nvae_forward.24} parent=1 // pred_fallthru
      _
    // Predicated region
    $region14: #{nvae_forward.24} parent=1 // pred_check
      _
    $region15: #{nvae_forward.24} parent=1 // pred_check_branch
      %24 = sbr.rel (0) target = $region17
    $region16: #{nvae_forward.24} parent=1 // pred_region
      _
    $region17: #{nvae_forward.24} parent=1 // pred_fallthru
      _
    // Predicated region
    $region18: #{nvae_forward.24} parent=1 // pred_check
      _
    $region19: #{nvae_forward.24} parent=1 // pred_check_branch
      %26 = sbr.rel (0) target = $region21
    $region20: #{nvae_forward.24} parent=1 // pred_region
      _
    $region21: #{nvae_forward.24} parent=1 // pred_fallthru
      _
    // Predicated region
    $region22: #{nvae_forward.24} parent=1 // pred_check
      _
    $region23: #{nvae_forward.24} parent=1 // pred_check_branch
      %28 = sbr.rel (0) target = $region25
    $region24: #{nvae_forward.24} parent=1 // pred_region
      _
    $region25: #{nvae_forward.24} parent=1 // pred_fallthru
      _
    // Predicated region
    $region26: #{nvae_forward.24} parent=1 // pred_check
      _
    $region27: #{nvae_forward.24} parent=1 // pred_check_branch
      %30 = sbr.rel (0) target = $region29
    $region28: #{nvae_forward.24} parent=1 // pred_region
      _
    $region29: #{nvae_forward.24} parent=1 // pred_fallthru
      _
    // Predicated region
    $region30: #{nvae_forward.24} parent=1 // pred_check
      _
    $region31: #{nvae_forward.24} parent=1 // pred_check_branch
      %32 = sbr.rel (0) target = $region33
    $region32: #{nvae_forward.24} parent=1 // pred_region
      _
    $region33: #{nvae_forward.24} parent=1 // pred_fallthru
      _
    // Predicated region
    $region34: #{nvae_forward.24} parent=1 // pred_check
      _
    $region35: #{nvae_forward.24} parent=1 // pred_check_branch
      %34 = sbr.rel (0) target = $region37
    $region36: #{nvae_forward.24} parent=1 // pred_region
      _
    $region37: #{nvae_forward.24} parent=1 // pred_fallthru
      _
    %v35 = vld [vmem:[%s0] sm:$0xff]
    %v36 = vld [vmem:[%s1] sm:$0xff]
    %v37 = vld [vmem:[%s2] sm:$0xff]
    %v38 = vld [vmem:[%s3] sm:$0xff]
    %vm39 = vcmask 64512
    %v41 = vsel %vm39, %v38, 0
    %43 = vmatprep.subr.mxu0 0.0
    %44 = vmatpush1.msra.mxu0 %v36
    %45 = vmatprep.subr.mxu0 0.0
    %46 = vmatpush1.msra.mxu0 0.0
    %47 = vmatprep.subr.mxu0 0.0
    %48 = vmatpush1.msra.mxu0 0.0
    %49 = vmatprep.subr.mxu0 0.0
    %50 = vmatpush1.msra.mxu0 0.0
    %51 = vmatprep.subr.mxu0 0.0
    %52 = vmatpush1.msra.mxu0 0.0
    %53 = vmatprep.subr.mxu0 0.0
    %54 = vmatpush1.msra.mxu0 0.0
    %55 = vmatprep.subr.mxu0 0.0
    %56 = vmatpush1.msra.mxu0 0.0
    %57 = vmatprep.subr.mxu0 0.0
    %58 = vmatpush1.msra.mxu0 0.0
    %59 = vmatprep.subr.mxu0 0.0
    %60 = vmatpush1.msra.mxu0 0.0
    %61 = vmatprep.subr.mxu0 0.0
    %62 = vmatpush1.msra.mxu0 0.0
    %63 = vmatprep.subr.mxu0 0.0
    %64 = vmatpush1.msra.mxu0 0.0
    %65 = vmatprep.subr.mxu0 0.0
    %66 = vmatpush1.msra.mxu0 0.0
    %67 = vmatprep.subr.mxu0 0.0
    %68 = vmatpush1.msra.mxu0 0.0
    %69 = vmatprep.subr.mxu0 0.0
    %70 = vmatpush1.msra.mxu0 0.0
    %71 = vmatprep.subr.mxu0 0.0
    %72 = vmatpush1.msra.mxu0 0.0
    %73 = vmatprep.subr.mxu0 0.0
    %74 = vmatpush1.msra.mxu0 0.0
    %75 = vmatprep.subr.mxu0 0.0
    %76 = vmatpush1.msra.mxu0 0.0
    %77 = vmatprep.subr.mxu0 0.0
    %78 = vmatpush1.msra.mxu0 0.0
    %79 = vmatprep.subr.mxu0 0.0
    %80 = vmatpush1.msra.mxu0 0.0
    %81 = vmatprep.subr.mxu0 0.0
    %82 = vmatpush1.msra.mxu0 0.0
    %83 = vmatprep.subr.mxu0 0.0
    %84 = vmatpush1.msra.mxu0 0.0
    %85 = vmatprep.subr.mxu0 0.0
    %86 = vmatpush1.msra.mxu0 0.0
    %87 = vmatprep.subr.mxu0 0.0
    %88 = vmatpush1.msra.mxu0 0.0
    %89 = vmatprep.subr.mxu0 0.0
    %90 = vmatpush1.msra.mxu0 0.0
    %91 = vmatprep.subr.mxu0 0.0
    %92 = vmatpush1.msra.mxu0 0.0
    %93 = vmatprep.subr.mxu0 0.0
    %94 = vmatpush1.msra.mxu0 0.0
    %95 = vmatprep.subr.mxu0 0.0
    %96 = vmatpush1.msra.mxu0 0.0
    %97 = vmatprep.subr.mxu0 0.0
    %98 = vmatpush1.msra.mxu0 0.0
    %99 = vmatprep.subr.mxu0 0.0
    %100 = vmatpush1.msra.mxu0 0.0
    %101 = vmatprep.subr.mxu0 0.0
    %102 = vmatpush1.msra.mxu0 0.0
    %103 = vmatprep.subr.mxu0 0.0
    %104 = vmatpush1.msra.mxu0 0.0
    %105 = vmatprep.subr.mxu0 0.0
    %106 = vmatpush1.msra.mxu0 0.0
    %107 = vmatprep.mubr.f32.mxu0 0.0
    %108 = vmatmul.mubr.f32.gmra.mrb[0].mxu0 %v41
    %v109 = vpop.f32.mrb[0].mxu0
    %v110 = vadd.f32 0.0, %v109
    %v111 = vpop.f32.mrb[0].mxu0
    %112 = vdwg.mxu0
    %v114 = vsel %vm39, %v37, 0
    %116 = vmatprep.subr.mxu0 0.0
    %117 = vmatpush1.msra.mxu0 %v35
    %118 = vmatprep.subr.mxu0 0.0
    %119 = vmatpush1.msra.mxu0 0.0
    %120 = vmatprep.subr.mxu0 0.0
    %121 = vmatpush1.msra.mxu0 0.0
    %122 = vmatprep.subr.mxu0 0.0
    %123 = vmatpush1.msra.mxu0 0.0
    %124 = vmatprep.subr.mxu0 0.0
    %125 = vmatpush1.msra.mxu0 0.0
    %126 = vmatprep.subr.mxu0 0.0
    %127 = vmatpush1.msra.mxu0 0.0
    %128 = vmatprep.subr.mxu0 0.0
    %129 = vmatpush1.msra.mxu0 0.0
    %130 = vmatprep.subr.mxu0 0.0
    %131 = vmatpush1.msra.mxu0 0.0
    %132 = vmatprep.subr.mxu0 0.0
    %133 = vmatpush1.msra.mxu0 0.0
    %134 = vmatprep.subr.mxu0 0.0
    %135 = vmatpush1.msra.mxu0 0.0
    %136 = vmatprep.subr.mxu0 0.0
    %137 = vmatpush1.msra.mxu0 0.0
    %138 = vmatprep.subr.mxu0 0.0
    %139 = vmatpush1.msra.mxu0 0.0
    %140 = vmatprep.subr.mxu0 0.0
    %141 = vmatpush1.msra.mxu0 0.0
    %142 = vmatprep.subr.mxu0 0.0
    %143 = vmatpush1.msra.mxu0 0.0
    %144 = vmatprep.subr.mxu0 0.0
    %145 = vmatpush1.msra.mxu0 0.0
    %146 = vmatprep.subr.mxu0 0.0
    %147 = vmatpush1.msra.mxu0 0.0
    %148 = vmatprep.subr.mxu0 0.0
    %149 = vmatpush1.msra.mxu0 0.0
    %150 = vmatprep.subr.mxu0 0.0
    %151 = vmatpush1.msra.mxu0 0.0
    %152 = vmatprep.subr.mxu0 0.0
    %153 = vmatpush1.msra.mxu0 0.0
    %154 = vmatprep.subr.mxu0 0.0
    %155 = vmatpush1.msra.mxu0 0.0
    %156 = vmatprep.subr.mxu0 0.0
    %157 = vmatpush1.msra.mxu0 0.0
    %158 = vmatprep.subr.mxu0 0.0
    %159 = vmatpush1.msra.mxu0 0.0
    %160 = vmatprep.subr.mxu0 0.0
    %161 = vmatpush1.msra.mxu0 0.0
    %162 = vmatprep.subr.mxu0 0.0
    %163 = vmatpush1.msra.mxu0 0.0
    %164 = vmatprep.subr.mxu0 0.0
    %165 = vmatpush1.msra.mxu0 0.0
    %166 = vmatprep.subr.mxu0 0.0
    %167 = vmatpush1.msra.mxu0 0.0
    %168 = vmatprep.subr.mxu0 0.0
    %169 = vmatpush1.msra.mxu0 0.0
    %170 = vmatprep.subr.mxu0 0.0
    %171 = vmatpush1.msra.mxu0 0.0
    %172 = vmatprep.subr.mxu0 0.0
    %173 = vmatpush1.msra.mxu0 0.0
    %174 = vmatprep.subr.mxu0 0.0
    %175 = vmatpush1.msra.mxu0 0.0
    %176 = vmatprep.subr.mxu0 0.0
    %177 = vmatpush1.msra.mxu0 0.0
    %178 = vmatprep.subr.mxu0 0.0
    %179 = vmatpush1.msra.mxu0 0.0
    %180 = vmatprep.mubr.f32.mxu0 0.0
    %181 = vmatmul.mubr.f32.gmra.mrb[0].mxu0 %v114
    %v182 = vpop.f32.mrb[0].mxu0
    %v183 = vadd.f32 %v110, %v182
    %v184 = vpop.f32.mrb[0].mxu0
    %185 = vdwg.mxu0
    %v186 = vld [vmem:[%s6] sm:$0xff]
    %188 = vset.pattern.permute.xlu0 0
    %189 = vperm.xlu0 %188, %v186
    %v190 = vpop.permute.xlu0 %189
    %v192 = vadd.f32 %v183, %v190
    %v193 = vld [vmem:[%s4] sm:$0xff]
    %v194 = vld [vmem:[%s5] sm:$0xff]
    %v196 = vsel %vm39, %v194, 0
    %198 = vmatprep.subr.mxu0 0.0
    %199 = vmatpush1.msra.mxu0 %v36
    %200 = vmatprep.subr.mxu0 0.0
    %201 = vmatpush1.msra.mxu0 0.0
    %202 = vmatprep.subr.mxu0 0.0
    %203 = vmatpush1.msra.mxu0 0.0
    %204 = vmatprep.subr.mxu0 0.0
    %205 = vmatpush1.msra.mxu0 0.0
    %206 = vmatprep.subr.mxu0 0.0
    %207 = vmatpush1.msra.mxu0 0.0
    %208 = vmatprep.subr.mxu0 0.0
    %209 = vmatpush1.msra.mxu0 0.0
    %210 = vmatprep.subr.mxu0 0.0
    %211 = vmatpush1.msra.mxu0 0.0
    %212 = vmatprep.subr.mxu0 0.0
    %213 = vmatpush1.msra.mxu0 0.0
    %214 = vmatprep.subr.mxu0 0.0
    %215 = vmatpush1.msra.mxu0 0.0
    %216 = vmatprep.subr.mxu0 0.0
    %217 = vmatpush1.msra.mxu0 0.0
    %218 = vmatprep.subr.mxu0 0.0
    %219 = vmatpush1.msra.mxu0 0.0
    %220 = vmatprep.subr.mxu0 0.0
    %221 = vmatpush1.msra.mxu0 0.0
    %222 = vmatprep.subr.mxu0 0.0
    %223 = vmatpush1.msra.mxu0 0.0
    %224 = vmatprep.subr.mxu0 0.0
    %225 = vmatpush1.msra.mxu0 0.0
    %226 = vmatprep.subr.mxu0 0.0
    %227 = vmatpush1.msra.mxu0 0.0
    %228 = vmatprep.subr.mxu0 0.0
    %229 = vmatpush1.msra.mxu0 0.0
    %230 = vmatprep.subr.mxu0 0.0
    %231 = vmatpush1.msra.mxu0 0.0
    %232 = vmatprep.subr.mxu0 0.0
    %233 = vmatpush1.msra.mxu0 0.0
    %234 = vmatprep.subr.mxu0 0.0
    %235 = vmatpush1.msra.mxu0 0.0
    %236 = vmatprep.subr.mxu0 0.0
    %237 = vmatpush1.msra.mxu0 0.0
    %238 = vmatprep.subr.mxu0 0.0
    %239 = vmatpush1.msra.mxu0 0.0
    %240 = vmatprep.subr.mxu0 0.0
    %241 = vmatpush1.msra.mxu0 0.0
    %242 = vmatprep.subr.mxu0 0.0
    %243 = vmatpush1.msra.mxu0 0.0
    %244 = vmatprep.subr.mxu0 0.0
    %245 = vmatpush1.msra.mxu0 0.0
    %246 = vmatprep.subr.mxu0 0.0
    %247 = vmatpush1.msra.mxu0 0.0
    %248 = vmatprep.subr.mxu0 0.0
    %249 = vmatpush1.msra.mxu0 0.0
    %250 = vmatprep.subr.mxu0 0.0
    %251 = vmatpush1.msra.mxu0 0.0
    %252 = vmatprep.subr.mxu0 0.0
    %253 = vmatpush1.msra.mxu0 0.0
    %254 = vmatprep.subr.mxu0 0.0
    %255 = vmatpush1.msra.mxu0 0.0
    %256 = vmatprep.subr.mxu0 0.0
    %257 = vmatpush1.msra.mxu0 0.0
    %258 = vmatprep.subr.mxu0 0.0
    %259 = vmatpush1.msra.mxu0 0.0
    %260 = vmatprep.subr.mxu0 0.0
    %261 = vmatpush1.msra.mxu0 0.0
    %262 = vmatprep.mubr.f32.mxu0 0.0
    %263 = vmatmul.mubr.f32.gmra.mrb[0].mxu0 %v196
    %v264 = vpop.f32.mrb[0].mxu0
    %v265 = vadd.f32 0.0, %v264
    %v266 = vpop.f32.mrb[0].mxu0
    %267 = vdwg.mxu0
    %v269 = vsel %vm39, %v193, 0
    %271 = vmatprep.subr.mxu0 0.0
    %272 = vmatpush1.msra.mxu0 %v35
    %273 = vmatprep.subr.mxu0 0.0
    %274 = vmatpush1.msra.mxu0 0.0
    %275 = vmatprep.subr.mxu0 0.0
    %276 = vmatpush1.msra.mxu0 0.0
    %277 = vmatprep.subr.mxu0 0.0
    %278 = vmatpush1.msra.mxu0 0.0
    %279 = vmatprep.subr.mxu0 0.0
    %280 = vmatpush1.msra.mxu0 0.0
    %281 = vmatprep.subr.mxu0 0.0
    %282 = vmatpush1.msra.mxu0 0.0
    %283 = vmatprep.subr.mxu0 0.0
    %284 = vmatpush1.msra.mxu0 0.0
    %285 = vmatprep.subr.mxu0 0.0
    %286 = vmatpush1.msra.mxu0 0.0
    %287 = vmatprep.subr.mxu0 0.0
    %288 = vmatpush1.msra.mxu0 0.0
    %289 = vmatprep.subr.mxu0 0.0
    %290 = vmatpush1.msra.mxu0 0.0
    %291 = vmatprep.subr.mxu0 0.0
    %292 = vmatpush1.msra.mxu0 0.0
    %293 = vmatprep.subr.mxu0 0.0
    %294 = vmatpush1.msra.mxu0 0.0
    %295 = vmatprep.subr.mxu0 0.0
    %296 = vmatpush1.msra.mxu0 0.0
    %297 = vmatprep.subr.mxu0 0.0
    %298 = vmatpush1.msra.mxu0 0.0
    %299 = vmatprep.subr.mxu0 0.0
    %300 = vmatpush1.msra.mxu0 0.0
    %301 = vmatprep.subr.mxu0 0.0
    %302 = vmatpush1.msra.mxu0 0.0
    %303 = vmatprep.subr.mxu0 0.0
    %304 = vmatpush1.msra.mxu0 0.0
    %305 = vmatprep.subr.mxu0 0.0
    %306 = vmatpush1.msra.mxu0 0.0
    %307 = vmatprep.subr.mxu0 0.0
    %308 = vmatpush1.msra.mxu0 0.0
    %309 = vmatprep.subr.mxu0 0.0
    %310 = vmatpush1.msra.mxu0 0.0
    %311 = vmatprep.subr.mxu0 0.0
    %312 = vmatpush1.msra.mxu0 0.0
    %313 = vmatprep.subr.mxu0 0.0
    %314 = vmatpush1.msra.mxu0 0.0
    %315 = vmatprep.subr.mxu0 0.0
    %316 = vmatpush1.msra.mxu0 0.0
    %317 = vmatprep.subr.mxu0 0.0
    %318 = vmatpush1.msra.mxu0 0.0
    %319 = vmatprep.subr.mxu0 0.0
    %320 = vmatpush1.msra.mxu0 0.0
    %321 = vmatprep.subr.mxu0 0.0
    %322 = vmatpush1.msra.mxu0 0.0
    %323 = vmatprep.subr.mxu0 0.0
    %324 = vmatpush1.msra.mxu0 0.0
    %325 = vmatprep.subr.mxu0 0.0
    %326 = vmatpush1.msra.mxu0 0.0
    %327 = vmatprep.subr.mxu0 0.0
    %328 = vmatpush1.msra.mxu0 0.0
    %329 = vmatprep.subr.mxu0 0.0
    %330 = vmatpush1.msra.mxu0 0.0
    %331 = vmatprep.subr.mxu0 0.0
    %332 = vmatpush1.msra.mxu0 0.0
    %333 = vmatprep.subr.mxu0 0.0
    %334 = vmatpush1.msra.mxu0 0.0
    %335 = vmatprep.mubr.f32.mxu0 0.0
    %336 = vmatmul.mubr.f32.gmra.mrb[0].mxu0 %v269
    %v337 = vpop.f32.mrb[0].mxu0
    %v338 = vadd.f32 %v265, %v337
    %v339 = vpop.f32.mrb[0].mxu0
    %340 = vdwg.mxu0
    %v341 = vld [vmem:[%s7] sm:$0xff]
    %343 = vset.pattern.permute.xlu0 0
    %344 = vperm.xlu0 %343, %v341
    %v345 = vpop.permute.xlu0 %344
    %v347 = vadd.f32 %v338, %v345
    %v348 = vadd.f32 %v35, %v192
    %v349 = vmul.f32 %v347, 0.5
    %v350 = vmul.f32 %v349, 1.442695
    %v351 = vpow.pop %v350
    %v352 = vld [vmem:[%s8] sm:$0xff]
    %v353 = vmul.f32 %v351, %v352
    %v354 = vadd.f32 %v348, %v353
    %355 = vst [vmem:[%s9] sm:$0xff] %v354
    %v356 = vadd.f32 %v347, 1.0
    %v357 = vmul.f32 %v192, %v192
    %v358 = vsub.f32 %v356, %v357
    %v359 = vmul.f32 %v347, 1.442695
    %v360 = vpow.pop %v359
    %v361 = vsub.f32 %v358, %v360
    %362 = vadd.xlane.f32.xlu0 %v361
    %v363 = vpop.xlane.xlu0 %362
    %v364 = vrot.slane %v363, 4
    %v365 = vadd.f32 %v363, %v364
    %v366 = vrot.slane %v365, 2
    %v367 = vadd.f32 %v365, %v366
    %v368 = vrot.slane %v367, 1
    %v369 = vadd.f32 %v367, %v368
    %s370 = vtos %v369
    %s371 = smul.f32 %s370, -0.5
    %v372 = vrcp.pop 2.0
    %s373 = vtos %v372
    %s374 = smul.f32 %s371, %s373
    %s375 = scalar_lea.smem [#allocation2], 0
    %376 = sst [smem:[%s375]] %s374
    // Predicated region
    $region38: #{nvae_forward.24} parent=1 // pred_check
      _
    $region39: #{nvae_forward.24} parent=1 // pred_check_branch
      %378 = sbr.rel (0) target = $region41
    $region40: #{nvae_forward.24} parent=1 // pred_region
      _
    $region41: #{nvae_forward.24} parent=1 // pred_fallthru
      _
    // Predicated region
    $region42: #{nvae_forward.24} parent=1 // pred_check
      _
    $region43: #{nvae_forward.24} parent=1 // pred_check_branch
      %380 = sbr.rel (0) target = $region45
    $region44: #{nvae_forward.24} parent=1 // pred_region
      %s382 = ssub.s32 16, 16
      %383 = vsyncadd [#allocation3], %s382
      %386 = dma.smem_to_hbm [#allocation2], 16, %s10, [#allocation3]
    $region45: #{nvae_forward.24} parent=1 // pred_fallthru
      _
    // Predicated region
    $region46: #{nvae_forward.24} parent=1 // pred_check
      _
    $region47: #{nvae_forward.24} parent=1 // pred_check_branch
      %388 = sbr.rel (0) target = $region49
    $region48: #{nvae_forward.24} parent=1 // pred_region
      _
    $region49: #{nvae_forward.24} parent=1 // pred_fallthru
      _
    // Predicated region
    $region50: #{nvae_forward.24} parent=1 // pred_check
      _
    $region51: #{nvae_forward.24} parent=1 // pred_check_branch
      %390 = sbr.rel (0) target = $region53
    $region52: #{nvae_forward.24} parent=1 // pred_region
      %391 = dma.done [#allocation3], 16
    $region53: #{nvae_forward.24} parent=1 // pred_fallthru
      _
    %392 = sfence
    %393 = vsyncpa [#allocation3], 1

// kernel: nvae_forward.25
$region0: #{nvae_forward.25}
  #allocation0 [shape = 'u32[]', space=smem, size = 0x4, offset = 0x4, fixed_abs, tag = 'smem constant byte address 0x4 - core index']
  #allocation1 [shape = 'u32[144,128]{1,0:T(1,128)}', space=vmem, size = 0x12000, scoped, tag = 'internal scratch']
  %s0 = inlined_call_operand.vmem [shape: bf16[4,72], index: 0, kind: input, shape index: {}]
  %s1 = inlined_call_operand.vmem [shape: bf16[72,512], index: 1, kind: input, shape index: {}]
  %s2 = inlined_call_operand.vmem [shape: f32[4,1], index: 2, kind: input, shape index: {}]
  %s3 = inlined_call_operand.vmem [shape: f32[4,512], index: 3, kind: output, shape index: {}]
  %s4 = sld [smem:[#allocation0]]
  $region22: #{nvae_forward.25} parent=0
    _
  %s6 = ssub.s32 1, %s4
  %s7 = scalar_select 0, %s6, %s4
  // Predicated region
  $region2: #{nvae_forward.25} parent=0 // pred_check
    _
  $region3: #{nvae_forward.25} parent=0 // pred_check_branch
    %9 = sbr.rel (0) target = $region5
  $region4: #{nvae_forward.25} parent=0 // pred_region
    _
  $region5: #{nvae_forward.25} parent=0 // pred_fallthru
    _
  // Predicated region
  $region6: #{nvae_forward.25} parent=0 // pred_check
    _
  $region7: #{nvae_forward.25} parent=0 // pred_check_branch
    %11 = sbr.rel (0) target = $region9
  $region8: #{nvae_forward.25} parent=0 // pred_region
    _
  $region9: #{nvae_forward.25} parent=0 // pred_fallthru
    _
  // Predicated region
  $region10: #{nvae_forward.25} parent=0 // pred_check
    _
  $region11: #{nvae_forward.25} parent=0 // pred_check_branch
    %13 = sbr.rel (0) target = $region13
  $region12: #{nvae_forward.25} parent=0 // pred_region
    _
  $region13: #{nvae_forward.25} parent=0 // pred_fallthru
    _
  %v15 = vld [vmem:[%s0] sm:$0x3]
  %v16 = vld [vmem:[%s1] sm:$0xff]
  %v17 = vld [vmem:[%s1 + $0x8] sm:$0xff]
  %v18 = vld [vmem:[%s1 + $0x10] sm:$0xff]
  %v19 = vld [vmem:[%s1 + $0x18] sm:$0xff]
  %v20 = vld [vmem:[%s1 + $0x20] sm:$0xff]
  %v21 = vld [vmem:[%s1 + $0x28] sm:$0xff]
  %v22 = vld [vmem:[%s1 + $0x30] sm:$0xff]
  %v23 = vld [vmem:[%s1 + $0x38] sm:$0xff]
  %v24 = vld [vmem:[%s1 + $0x40] sm:$0xff]
  %v25 = vld [vmem:[%s1 + $0x48] sm:$0xff]
  %v26 = vld [vmem:[%s1 + $0x50] sm:$0xff]
  %v27 = vld [vmem:[%s1 + $0x58] sm:$0xff]
  %v28 = vld [vmem:[%s1 + $0x60] sm:$0xff]
  %v29 = vld [vmem:[%s1 + $0x68] sm:$0xff]
  %v30 = vld [vmem:[%s1 + $0x70] sm:$0xff]
  %v31 = vld [vmem:[%s1 + $0x78] sm:$0xff]
  %v32 = vld [vmem:[%s1 + $0x80] sm:$0xff]
  %v33 = vld [vmem:[%s1 + $0x88] sm:$0xff]
  %v34 = vld [vmem:[%s2] sm:$0xf]
  %36 = vset.pattern.permute.xlu0 0
  %37 = vperm.xlu0 %36, %v34
  %v38 = vpop.permute.xlu0 %37
  %v58 = vunpack.c.l.b16 %v16
  %v59 = vunpack.c.h.b16 %v16
  %v60 = vunpack.c.l.b16 %v17
  %v61 = vunpack.c.h.b16 %v17
  %v62 = vunpack.c.l.b16 %v18
  %v63 = vunpack.c.h.b16 %v18
  %v64 = vunpack.c.l.b16 %v19
  %v65 = vunpack.c.h.b16 %v19
  %v66 = vunpack.c.l.b16 %v20
  %v67 = vunpack.c.h.b16 %v20
  %v68 = vunpack.c.l.b16 %v21
  %v69 = vunpack.c.h.b16 %v21
  %v70 = vunpack.c.l.b16 %v22
  %v71 = vunpack.c.h.b16 %v22
  %v72 = vunpack.c.l.b16 %v23
  %v73 = vunpack.c.h.b16 %v23
  %v74 = vunpack.c.l.b16 %v24
  %v75 = vunpack.c.h.b16 %v24
  %v76 = vunpack.c.l.b16 %v25
  %v77 = vunpack.c.h.b16 %v25
  %v78 = vunpack.c.l.b16 %v26
  %v79 = vunpack.c.h.b16 %v26
  %v80 = vunpack.c.l.b16 %v27
  %v81 = vunpack.c.h.b16 %v27
  %v82 = vunpack.c.l.b16 %v28
  %v83 = vunpack.c.h.b16 %v28
  %v84 = vunpack.c.l.b16 %v29
  %v85 = vunpack.c.h.b16 %v29
  %v86 = vunpack.c.l.b16 %v30
  %v87 = vunpack.c.h.b16 %v30
  %v88 = vunpack.c.l.b16 %v31
  %v89 = vunpack.c.h.b16 %v31
  %v90 = vunpack.c.l.b16 %v32
  %v91 = vunpack.c.h.b16 %v32
  %v92 = vunpack.c.l.b16 %v33
  %v93 = vunpack.c.h.b16 %v33
  %v94 = vpack.c.b16 %v62, %v58
  %v95 = vpack.c.b16 %v63, %v59
  %v96 = vpack.c.b16 %v64, %v60
  %v97 = vpack.c.b16 %v65, %v61
  %v98 = vpack.c.b16 %v70, %v66
  %v99 = vpack.c.b16 %v71, %v67
  %v100 = vpack.c.b16 %v72, %v68
  %v101 = vpack.c.b16 %v73, %v69
  %v102 = vpack.c.b16 %v78, %v74
  %v103 = vpack.c.b16 %v79, %v75
  %v104 = vpack.c.b16 %v80, %v76
  %v105 = vpack.c.b16 %v81, %v77
  %v106 = vpack.c.b16 %v86, %v82
  %v107 = vpack.c.b16 %v87, %v83
  %v108 = vpack.c.b16 %v88, %v84
  %v109 = vpack.c.b16 %v89, %v85
  %v110 = vpack.c.b16 %v90, %v90
  %v111 = vpack.c.b16 %v91, %v91
  %v112 = vpack.c.b16 %v92, %v92
  %v113 = vpack.c.b16 %v93, %v93
  %vm130 = vcmask 588800
  %v132 = vsel %vm130, %v15, 0
  %vm134 = vcmask 1043456
  %v136 = vsel %vm134, %v110, 0
  %v139 = vsel %vm134, %v111, 0
  %v142 = vsel %vm134, %v112, 0
  %v145 = vsel %vm134, %v113, 0
  %147 = vmatprep.subr.bf16.mxu0 %v95
  %148 = vmatpush1.bf16.msra.mxu0 %v94
  %149 = vmatprep.subr.bf16.mxu0 %v99
  %150 = vmatpush1.bf16.msra.mxu0 %v98
  %151 = vmatprep.subr.bf16.mxu0 %v103
  %152 = vmatpush1.bf16.msra.mxu0 %v102
  %153 = vmatprep.subr.bf16.mxu0 %v107
  %154 = vmatpush1.bf16.msra.mxu0 %v106
  %155 = vmatprep.subr.bf16.mxu0 %v139
  %156 = vmatpush1.bf16.msra.mxu0 %v136
  %157 = vmatprep.subr.bf16.mxu0 0
  %158 = vmatpush1.bf16.msra.mxu0 0
  %159 = vmatprep.subr.bf16.mxu0 0
  %160 = vmatpush1.bf16.msra.mxu0 0
  %161 = vmatprep.subr.bf16.mxu0 0
  %162 = vmatpush1.bf16.msra.mxu0 0
  %163 = vmatprep.subr.bf16.mxu0 0
  %164 = vmatpush1.bf16.msra.mxu0 0
  %165 = vmatprep.subr.bf16.mxu0 0
  %166 = vmatpush1.bf16.msra.mxu0 0
  %167 = vmatprep.subr.bf16.mxu0 0
  %168 = vmatpush1.bf16.msra.mxu0 0
  %169 = vmatprep.subr.bf16.mxu0 0
  %170 = vmatpush1.bf16.msra.mxu0 0
  %171 = vmatprep.subr.bf16.mxu0 0
  %172 = vmatpush1.bf16.msra.mxu0 0
  %173 = vmatprep.subr.bf16.mxu0 0
  %174 = vmatpush1.bf16.msra.mxu0 0
  %175 = vmatprep.subr.bf16.mxu0 0
  %176 = vmatpush1.bf16.msra.mxu0 0
  %177 = vmatprep.subr.bf16.mxu0 0
  %178 = vmatpush1.bf16.msra.mxu0 0
  %179 = vmatprep.mubr.bf16.mxu0 0
  %180 = vmatmul.mubr.bf16.gmra.mrb[0].mxu0 %v132
  %v181 = vpop.f32.mrb[0].mxu0
  %v182 = vadd.f32 %v38, %v181
  %v183 = vpop.f32.mrb[0].mxu0
  %v184 = vadd.f32 %v38, %v183
  %v185 = vpop.f32.mrb[0].mxu0
  %v186 = vpop.f32.mrb[0].mxu0
  %187 = vdwg.mxu0
  %188 = vmatprep.subr.bf16.mxu0 %v97
  %189 = vmatpush1.bf16.msra.mxu0 %v96
  %190 = vmatprep.subr.bf16.mxu0 %v101
  %191 = vmatpush1.bf16.msra.mxu0 %v100
  %192 = vmatprep.subr.bf16.mxu0 %v105
  %193 = vmatpush1.bf16.msra.mxu0 %v104
  %194 = vmatprep.subr.bf16.mxu0 %v109
  %195 = vmatpush1.bf16.msra.mxu0 %v108
  %196 = vmatprep.subr.bf16.mxu0 %v145
  %197 = vmatpush1.bf16.msra.mxu0 %v142
  %198 = vmatprep.subr.bf16.mxu0 0
  %199 = vmatpush1.bf16.msra.mxu0 0
  %200 = vmatprep.subr.bf16.mxu0 0
  %201 = vmatpush1.bf16.msra.mxu0 0
  %202 = vmatprep.subr.bf16.mxu0 0
  %203 = vmatpush1.bf16.msra.mxu0 0
  %204 = vmatprep.subr.bf16.mxu0 0
  %205 = vmatpush1.bf16.msra.mxu0 0
  %206 = vmatprep.subr.bf16.mxu0 0
  %207 = vmatpush1.bf16.msra.mxu0 0
  %208 = vmatprep.subr.bf16.mxu0 0
  %209 = vmatpush1.bf16.msra.mxu0 0
  %210 = vmatprep.subr.bf16.mxu0 0
  %211 = vmatpush1.bf16.msra.mxu0 0
  %212 = vmatprep.subr.bf16.mxu0 0
  %213 = vmatpush1.bf16.msra.mxu0 0
  %214 = vmatprep.subr.bf16.mxu0 0
  %215 = vmatpush1.bf16.msra.mxu0 0
  %216 = vmatprep.subr.bf16.mxu0 0
  %217 = vmatpush1.bf16.msra.mxu0 0
  %218 = vmatprep.subr.bf16.mxu0 0
  %219 = vmatpush1.bf16.msra.mxu0 0
  %220 = vmatprep.mubr.bf16.mxu0 0
  %221 = vmatmul.mubr.bf16.gmra.mrb[0].mxu0 %v132
  %v222 = vpop.f32.mrb[0].mxu0
  %v223 = vadd.f32 %v38, %v222
  %v224 = vpop.f32.mrb[0].mxu0
  %v225 = vadd.f32 %v38, %v224
  %v226 = vpop.f32.mrb[0].mxu0
  %v227 = vpop.f32.mrb[0].mxu0
  %228 = vdwg.mxu0
  %v229 = vxor.u32 %v182, 2147483648
  %v230 = vxor.u32 %v184, 2147483648
  %v231 = vxor.u32 %v223, 2147483648
  %v232 = vxor.u32 %v225, 2147483648
  %v233 = vmul.f32 %v229, 1.442695
  %v234 = vpow.pop %v233
  %v235 = vmul.f32 %v230, 1.442695
  %v236 = vpow.pop %v235
  %v237 = vmul.f32 %v231, 1.442695
  %v238 = vpow.pop %v237
  %v239 = vmul.f32 %v232, 1.442695
  %v240 = vpow.pop %v239
  %v241 = vadd.f32 %v234, 1.0
  %v242 = vadd.f32 %v236, 1.0
  %v243 = vadd.f32 %v238, 1.0
  %v244 = vadd.f32 %v240, 1.0
  %v245 = vrcp.pop %v241
  %v246 = vmul.f32 1.0, %v245
  %v247 = vrcp.pop %v242
  %v248 = vmul.f32 1.0, %v247
  %v249 = vrcp.pop %v243
  %v250 = vmul.f32 1.0, %v249
  %v251 = vrcp.pop %v244
  %v252 = vmul.f32 1.0, %v251
  %v253 = vmul.f32 %v182, %v246
  %v254 = vmul.f32 %v184, %v248
  %v255 = vmul.f32 %v223, %v250
  %v256 = vmul.f32 %v225, %v252
  %v261 = vcombine.low %v253, %v254
  %v262 = vcombine.low %v255, %v256
  %265 = vst [vmem:[%s3] sm:$0xff] %v261
  %266 = vst [vmem:[%s3 + $0x8] sm:$0xff] %v262
  // Predicated region
  $region14: #{nvae_forward.25} parent=0 // pred_check
    _
  $region15: #{nvae_forward.25} parent=0 // pred_check_branch
    %268 = sbr.rel (0) target = $region17
  $region16: #{nvae_forward.25} parent=0 // pred_region
    _
  $region17: #{nvae_forward.25} parent=0 // pred_fallthru
    _
  // Predicated region
  $region18: #{nvae_forward.25} parent=0 // pred_check
    _
  $region19: #{nvae_forward.25} parent=0 // pred_check_branch
    %270 = sbr.rel (0) target = $region21
  $region20: #{nvae_forward.25} parent=0 // pred_region
    _
  $region21: #{nvae_forward.25} parent=0 // pred_fallthru
    _

// kernel: nvae_forward.26
$region0: #{nvae_forward.26}
  #allocation0 [shape = 'u32[]', space=smem, size = 0x4, offset = 0x4, fixed_abs, tag = 'smem constant byte address 0x4 - core index']
  #allocation1 [shape = 'u32[144,128]{1,0:T(1,128)}', space=vmem, size = 0x12000, scoped, tag = 'internal scratch']
  %s0 = inlined_call_operand.vmem [shape: f32[4,512], index: 0, kind: input, shape index: {}]
  %s1 = inlined_call_operand.vmem [shape: f32[4,512], index: 1, kind: input, shape index: {}]
  %s2 = inlined_call_operand.vmem [shape: f32[4,4], index: 2, kind: input, shape index: {}]
  %s3 = inlined_call_operand.vmem [shape: f32[4,4], index: 3, kind: input, shape index: {}]
  %s4 = inlined_call_operand.vmem [shape: f32[4,4], index: 4, kind: input, shape index: {}]
  %s5 = inlined_call_operand.vmem [shape: f32[4,4], index: 5, kind: input, shape index: {}]
  %s6 = inlined_call_operand.vmem [shape: f32[4,1], index: 6, kind: input, shape index: {}]
  %s7 = inlined_call_operand.vmem [shape: f32[4,1], index: 7, kind: input, shape index: {}]
  %s8 = inlined_call_operand.vmem [shape: f32[4,512], index: 8, kind: input, shape index: {}]
  %s9 = inlined_call_operand.vmem [shape: f32[4,512], index: 9, kind: output, shape index: {0}]
  %s10 = inlined_call_operand.hbm [shape: f32[1,1], index: 10, kind: output, shape index: {1}]
  %11 = xla_tuple %s9, %s10
  %s12 = sld [smem:[#allocation0]]
  $region54: #{nvae_forward.26} parent=0
    _
  %s14 = ssub.s32 1, %s12
  %s15 = scalar_select 0, %s14, %s12
  $region1: #{nvae_forward.26} parent=0
    #allocation2 [shape = 'u8[512]{0}', space=smem, size = 0x200, scoped, tag = 'output window, operand 1, single buffered']
    #allocation3 [shape = 's32[1]{0}', space=sflag, size = 0x4, scoped, tag = 'scoped memory for nvae_forward.26']
    %16 = vsyncpa [#allocation3], 0
    // Predicated region
    $region2: #{nvae_forward.26} parent=1 // pred_check
      _
    $region3: #{nvae_forward.26} parent=1 // pred_check_branch
      %18 = sbr.rel (0) target = $region5
    $region4: #{nvae_forward.26} parent=1 // pred_region
      _
    $region5: #{nvae_forward.26} parent=1 // pred_fallthru
      _
    // Predicated region
    $region6: #{nvae_forward.26} parent=1 // pred_check
      _
    $region7: #{nvae_forward.26} parent=1 // pred_check_branch
      %20 = sbr.rel (0) target = $region9
    $region8: #{nvae_forward.26} parent=1 // pred_region
      _
    $region9: #{nvae_forward.26} parent=1 // pred_fallthru
      _
    // Predicated region
    $region10: #{nvae_forward.26} parent=1 // pred_check
      _
    $region11: #{nvae_forward.26} parent=1 // pred_check_branch
      %22 = sbr.rel (0) target = $region13
    $region12: #{nvae_forward.26} parent=1 // pred_region
      _
    $region13: #{nvae_forward.26} parent=1 // pred_fallthru
      _
    // Predicated region
    $region14: #{nvae_forward.26} parent=1 // pred_check
      _
    $region15: #{nvae_forward.26} parent=1 // pred_check_branch
      %24 = sbr.rel (0) target = $region17
    $region16: #{nvae_forward.26} parent=1 // pred_region
      _
    $region17: #{nvae_forward.26} parent=1 // pred_fallthru
      _
    // Predicated region
    $region18: #{nvae_forward.26} parent=1 // pred_check
      _
    $region19: #{nvae_forward.26} parent=1 // pred_check_branch
      %26 = sbr.rel (0) target = $region21
    $region20: #{nvae_forward.26} parent=1 // pred_region
      _
    $region21: #{nvae_forward.26} parent=1 // pred_fallthru
      _
    // Predicated region
    $region22: #{nvae_forward.26} parent=1 // pred_check
      _
    $region23: #{nvae_forward.26} parent=1 // pred_check_branch
      %28 = sbr.rel (0) target = $region25
    $region24: #{nvae_forward.26} parent=1 // pred_region
      _
    $region25: #{nvae_forward.26} parent=1 // pred_fallthru
      _
    // Predicated region
    $region26: #{nvae_forward.26} parent=1 // pred_check
      _
    $region27: #{nvae_forward.26} parent=1 // pred_check_branch
      %30 = sbr.rel (0) target = $region29
    $region28: #{nvae_forward.26} parent=1 // pred_region
      _
    $region29: #{nvae_forward.26} parent=1 // pred_fallthru
      _
    // Predicated region
    $region30: #{nvae_forward.26} parent=1 // pred_check
      _
    $region31: #{nvae_forward.26} parent=1 // pred_check_branch
      %32 = sbr.rel (0) target = $region33
    $region32: #{nvae_forward.26} parent=1 // pred_region
      _
    $region33: #{nvae_forward.26} parent=1 // pred_fallthru
      _
    // Predicated region
    $region34: #{nvae_forward.26} parent=1 // pred_check
      _
    $region35: #{nvae_forward.26} parent=1 // pred_check_branch
      %34 = sbr.rel (0) target = $region37
    $region36: #{nvae_forward.26} parent=1 // pred_region
      _
    $region37: #{nvae_forward.26} parent=1 // pred_fallthru
      _
    %v35 = vld [vmem:[%s0] sm:$0xff]
    %v36 = vld [vmem:[%s0 + $0x8] sm:$0xff]
    %v37 = vld [vmem:[%s1] sm:$0xff]
    %v38 = vld [vmem:[%s1 + $0x8] sm:$0xff]
    %v39 = vld [vmem:[%s2] sm:$0xf]
    %v40 = vld [vmem:[%s3] sm:$0xf]
    %v43 = vcombine.high %v37, %v37
    %v44 = vcombine.high %v38, %v38
    %vm45 = vcmask 31744
    %v47 = vsel %vm45, %v40, 0
    %vm49 = vcmask 1043456
    %v50 = vsel %vm49, %v37, 0
    %v52 = vsel %vm49, %v43, 0
    %v54 = vsel %vm49, %v38, 0
    %v56 = vsel %vm49, %v44, 0
    %58 = vmatprep.subr.mxu0 %v52
    %59 = vmatpush1.msra.mxu0 %v50
    %60 = vmatprep.subr.mxu0 0.0
    %61 = vmatpush1.msra.mxu0 0.0
    %62 = vmatprep.subr.mxu0 0.0
    %63 = vmatpush1.msra.mxu0 0.0
    %64 = vmatprep.subr.mxu0 0.0
    %65 = vmatpush1.msra.mxu0 0.0
    %66 = vmatprep.subr.mxu0 0.0
    %67 = vmatpush1.msra.mxu0 0.0
    %68 = vmatprep.subr.mxu0 0.0
    %69 = vmatpush1.msra.mxu0 0.0
    %70 = vmatprep.subr.mxu0 0.0
    %71 = vmatpush1.msra.mxu0 0.0
    %72 = vmatprep.subr.mxu0 0.0
    %73 = vmatpush1.msra.mxu0 0.0
    %74 = vmatprep.subr.mxu0 0.0
    %75 = vmatpush1.msra.mxu0 0.0
    %76 = vmatprep.subr.mxu0 0.0
    %77 = vmatpush1.msra.mxu0 0.0
    %78 = vmatprep.subr.mxu0 0.0
    %79 = vmatpush1.msra.mxu0 0.0
    %80 = vmatprep.subr.mxu0 0.0
    %81 = vmatpush1.msra.mxu0 0.0
    %82 = vmatprep.subr.mxu0 0.0
    %83 = vmatpush1.msra.mxu0 0.0
    %84 = vmatprep.subr.mxu0 0.0
    %85 = vmatpush1.msra.mxu0 0.0
    %86 = vmatprep.subr.mxu0 0.0
    %87 = vmatpush1.msra.mxu0 0.0
    %88 = vmatprep.subr.mxu0 0.0
    %89 = vmatpush1.msra.mxu0 0.0
    %90 = vmatprep.subr.mxu0 0.0
    %91 = vmatpush1.msra.mxu0 0.0
    %92 = vmatprep.subr.mxu0 0.0
    %93 = vmatpush1.msra.mxu0 0.0
    %94 = vmatprep.subr.mxu0 0.0
    %95 = vmatpush1.msra.mxu0 0.0
    %96 = vmatprep.subr.mxu0 0.0
    %97 = vmatpush1.msra.mxu0 0.0
    %98 = vmatprep.subr.mxu0 0.0
    %99 = vmatpush1.msra.mxu0 0.0
    %100 = vmatprep.subr.mxu0 0.0
    %101 = vmatpush1.msra.mxu0 0.0
    %102 = vmatprep.subr.mxu0 0.0
    %103 = vmatpush1.msra.mxu0 0.0
    %104 = vmatprep.subr.mxu0 0.0
    %105 = vmatpush1.msra.mxu0 0.0
    %106 = vmatprep.subr.mxu0 0.0
    %107 = vmatpush1.msra.mxu0 0.0
    %108 = vmatprep.subr.mxu0 0.0
    %109 = vmatpush1.msra.mxu0 0.0
    %110 = vmatprep.subr.mxu0 0.0
    %111 = vmatpush1.msra.mxu0 0.0
    %112 = vmatprep.subr.mxu0 0.0
    %113 = vmatpush1.msra.mxu0 0.0
    %114 = vmatprep.subr.mxu0 0.0
    %115 = vmatpush1.msra.mxu0 0.0
    %116 = vmatprep.subr.mxu0 0.0
    %117 = vmatpush1.msra.mxu0 0.0
    %118 = vmatprep.subr.mxu0 0.0
    %119 = vmatpush1.msra.mxu0 0.0
    %120 = vmatprep.subr.mxu0 0.0
    %121 = vmatpush1.msra.mxu0 0.0
    %122 = vmatprep.mubr.f32.mxu0 0.0
    %123 = vmatmul.mubr.f32.gmra.mrb[0].mxu0 %v47
    %v124 = vpop.f32.mrb[0].mxu0
    %v125 = vadd.f32 0.0, %v124
    %v126 = vpop.f32.mrb[0].mxu0
    %v127 = vadd.f32 0.0, %v126
    %128 = vdwg.mxu0
    %129 = vmatprep.subr.mxu0 %v56
    %130 = vmatpush1.msra.mxu0 %v54
    %131 = vmatprep.subr.mxu0 0.0
    %132 = vmatpush1.msra.mxu0 0.0
    %133 = vmatprep.subr.mxu0 0.0
    %134 = vmatpush1.msra.mxu0 0.0
    %135 = vmatprep.subr.mxu0 0.0
    %136 = vmatpush1.msra.mxu0 0.0
    %137 = vmatprep.subr.mxu0 0.0
    %138 = vmatpush1.msra.mxu0 0.0
    %139 = vmatprep.subr.mxu0 0.0
    %140 = vmatpush1.msra.mxu0 0.0
    %141 = vmatprep.subr.mxu0 0.0
    %142 = vmatpush1.msra.mxu0 0.0
    %143 = vmatprep.subr.mxu0 0.0
    %144 = vmatpush1.msra.mxu0 0.0
    %145 = vmatprep.subr.mxu0 0.0
    %146 = vmatpush1.msra.mxu0 0.0
    %147 = vmatprep.subr.mxu0 0.0
    %148 = vmatpush1.msra.mxu0 0.0
    %149 = vmatprep.subr.mxu0 0.0
    %150 = vmatpush1.msra.mxu0 0.0
    %151 = vmatprep.subr.mxu0 0.0
    %152 = vmatpush1.msra.mxu0 0.0
    %153 = vmatprep.subr.mxu0 0.0
    %154 = vmatpush1.msra.mxu0 0.0
    %155 = vmatprep.subr.mxu0 0.0
    %156 = vmatpush1.msra.mxu0 0.0
    %157 = vmatprep.subr.mxu0 0.0
    %158 = vmatpush1.msra.mxu0 0.0
    %159 = vmatprep.subr.mxu0 0.0
    %160 = vmatpush1.msra.mxu0 0.0
    %161 = vmatprep.subr.mxu0 0.0
    %162 = vmatpush1.msra.mxu0 0.0
    %163 = vmatprep.subr.mxu0 0.0
    %164 = vmatpush1.msra.mxu0 0.0
    %165 = vmatprep.subr.mxu0 0.0
    %166 = vmatpush1.msra.mxu0 0.0
    %167 = vmatprep.subr.mxu0 0.0
    %168 = vmatpush1.msra.mxu0 0.0
    %169 = vmatprep.subr.mxu0 0.0
    %170 = vmatpush1.msra.mxu0 0.0
    %171 = vmatprep.subr.mxu0 0.0
    %172 = vmatpush1.msra.mxu0 0.0
    %173 = vmatprep.subr.mxu0 0.0
    %174 = vmatpush1.msra.mxu0 0.0
    %175 = vmatprep.subr.mxu0 0.0
    %176 = vmatpush1.msra.mxu0 0.0
    %177 = vmatprep.subr.mxu0 0.0
    %178 = vmatpush1.msra.mxu0 0.0
    %179 = vmatprep.subr.mxu0 0.0
    %180 = vmatpush1.msra.mxu0 0.0
    %181 = vmatprep.subr.mxu0 0.0
    %182 = vmatpush1.msra.mxu0 0.0
    %183 = vmatprep.subr.mxu0 0.0
    %184 = vmatpush1.msra.mxu0 0.0
    %185 = vmatprep.subr.mxu0 0.0
    %186 = vmatpush1.msra.mxu0 0.0
    %187 = vmatprep.subr.mxu0 0.0
    %188 = vmatpush1.msra.mxu0 0.0
    %189 = vmatprep.subr.mxu0 0.0
    %190 = vmatpush1.msra.mxu0 0.0
    %191 = vmatprep.subr.mxu0 0.0
    %192 = vmatpush1.msra.mxu0 0.0
    %193 = vmatprep.mubr.f32.mxu0 0.0
    %194 = vmatmul.mubr.f32.gmra.mrb[0].mxu0 %v47
    %v195 = vpop.f32.mrb[0].mxu0
    %v196 = vadd.f32 0.0, %v195
    %v197 = vpop.f32.mrb[0].mxu0
    %v198 = vadd.f32 0.0, %v197
    %199 = vdwg.mxu0
    %v202 = vcombine.high %v35, %v35
    %v203 = vcombine.high %v36, %v36
    %v205 = vsel %vm45, %v39, 0
    %v207 = vsel %vm49, %v35, 0
    %v209 = vsel %vm49, %v202, 0
    %v211 = vsel %vm49, %v36, 0
    %v213 = vsel %vm49, %v203, 0
    %215 = vmatprep.subr.mxu0 %v209
    %216 = vmatpush1.msra.mxu0 %v207
    %217 = vmatprep.subr.mxu0 0.0
    %218 = vmatpush1.msra.mxu0 0.0
    %219 = vmatprep.subr.mxu0 0.0
    %220 = vmatpush1.msra.mxu0 0.0
    %221 = vmatprep.subr.mxu0 0.0
    %222 = vmatpush1.msra.mxu0 0.0
    %223 = vmatprep.subr.mxu0 0.0
    %224 = vmatpush1.msra.mxu0 0.0
    %225 = vmatprep.subr.mxu0 0.0
    %226 = vmatpush1.msra.mxu0 0.0
    %227 = vmatprep.subr.mxu0 0.0
    %228 = vmatpush1.msra.mxu0 0.0
    %229 = vmatprep.subr.mxu0 0.0
    %230 = vmatpush1.msra.mxu0 0.0
    %231 = vmatprep.subr.mxu0 0.0
    %232 = vmatpush1.msra.mxu0 0.0
    %233 = vmatprep.subr.mxu0 0.0
    %234 = vmatpush1.msra.mxu0 0.0
    %235 = vmatprep.subr.mxu0 0.0
    %236 = vmatpush1.msra.mxu0 0.0
    %237 = vmatprep.subr.mxu0 0.0
    %238 = vmatpush1.msra.mxu0 0.0
    %239 = vmatprep.subr.mxu0 0.0
    %240 = vmatpush1.msra.mxu0 0.0
    %241 = vmatprep.subr.mxu0 0.0
    %242 = vmatpush1.msra.mxu0 0.0
    %243 = vmatprep.subr.mxu0 0.0
    %244 = vmatpush1.msra.mxu0 0.0
    %245 = vmatprep.subr.mxu0 0.0
    %246 = vmatpush1.msra.mxu0 0.0
    %247 = vmatprep.subr.mxu0 0.0
    %248 = vmatpush1.msra.mxu0 0.0
    %249 = vmatprep.subr.mxu0 0.0
    %250 = vmatpush1.msra.mxu0 0.0
    %251 = vmatprep.subr.mxu0 0.0
    %252 = vmatpush1.msra.mxu0 0.0
    %253 = vmatprep.subr.mxu0 0.0
    %254 = vmatpush1.msra.mxu0 0.0
    %255 = vmatprep.subr.mxu0 0.0
    %256 = vmatpush1.msra.mxu0 0.0
    %257 = vmatprep.subr.mxu0 0.0
    %258 = vmatpush1.msra.mxu0 0.0
    %259 = vmatprep.subr.mxu0 0.0
    %260 = vmatpush1.msra.mxu0 0.0
    %261 = vmatprep.subr.mxu0 0.0
    %262 = vmatpush1.msra.mxu0 0.0
    %263 = vmatprep.subr.mxu0 0.0
    %264 = vmatpush1.msra.mxu0 0.0
    %265 = vmatprep.subr.mxu0 0.0
    %266 = vmatpush1.msra.mxu0 0.0
    %267 = vmatprep.subr.mxu0 0.0
    %268 = vmatpush1.msra.mxu0 0.0
    %269 = vmatprep.subr.mxu0 0.0
    %270 = vmatpush1.msra.mxu0 0.0
    %271 = vmatprep.subr.mxu0 0.0
    %272 = vmatpush1.msra.mxu0 0.0
    %273 = vmatprep.subr.mxu0 0.0
    %274 = vmatpush1.msra.mxu0 0.0
    %275 = vmatprep.subr.mxu0 0.0
    %276 = vmatpush1.msra.mxu0 0.0
    %277 = vmatprep.subr.mxu0 0.0
    %278 = vmatpush1.msra.mxu0 0.0
    %279 = vmatprep.mubr.f32.mxu0 0.0
    %280 = vmatmul.mubr.f32.gmra.mrb[0].mxu0 %v205
    %v281 = vpop.f32.mrb[0].mxu0
    %v282 = vadd.f32 %v125, %v281
    %v283 = vpop.f32.mrb[0].mxu0
    %v284 = vadd.f32 %v127, %v283
    %285 = vdwg.mxu0
    %286 = vmatprep.subr.mxu0 %v213
    %287 = vmatpush1.msra.mxu0 %v211
    %288 = vmatprep.subr.mxu0 0.0
    %289 = vmatpush1.msra.mxu0 0.0
    %290 = vmatprep.subr.mxu0 0.0
    %291 = vmatpush1.msra.mxu0 0.0
    %292 = vmatprep.subr.mxu0 0.0
    %293 = vmatpush1.msra.mxu0 0.0
    %294 = vmatprep.subr.mxu0 0.0
    %295 = vmatpush1.msra.mxu0 0.0
    %296 = vmatprep.subr.mxu0 0.0
    %297 = vmatpush1.msra.mxu0 0.0
    %298 = vmatprep.subr.mxu0 0.0
    %299 = vmatpush1.msra.mxu0 0.0
    %300 = vmatprep.subr.mxu0 0.0
    %301 = vmatpush1.msra.mxu0 0.0
    %302 = vmatprep.subr.mxu0 0.0
    %303 = vmatpush1.msra.mxu0 0.0
    %304 = vmatprep.subr.mxu0 0.0
    %305 = vmatpush1.msra.mxu0 0.0
    %306 = vmatprep.subr.mxu0 0.0
    %307 = vmatpush1.msra.mxu0 0.0
    %308 = vmatprep.subr.mxu0 0.0
    %309 = vmatpush1.msra.mxu0 0.0
    %310 = vmatprep.subr.mxu0 0.0
    %311 = vmatpush1.msra.mxu0 0.0
    %312 = vmatprep.subr.mxu0 0.0
    %313 = vmatpush1.msra.mxu0 0.0
    %314 = vmatprep.subr.mxu0 0.0
    %315 = vmatpush1.msra.mxu0 0.0
    %316 = vmatprep.subr.mxu0 0.0
    %317 = vmatpush1.msra.mxu0 0.0
    %318 = vmatprep.subr.mxu0 0.0
    %319 = vmatpush1.msra.mxu0 0.0
    %320 = vmatprep.subr.mxu0 0.0
    %321 = vmatpush1.msra.mxu0 0.0
    %322 = vmatprep.subr.mxu0 0.0
    %323 = vmatpush1.msra.mxu0 0.0
    %324 = vmatprep.subr.mxu0 0.0
    %325 = vmatpush1.msra.mxu0 0.0
    %326 = vmatprep.subr.mxu0 0.0
    %327 = vmatpush1.msra.mxu0 0.0
    %328 = vmatprep.subr.mxu0 0.0
    %329 = vmatpush1.msra.mxu0 0.0
    %330 = vmatprep.subr.mxu0 0.0
    %331 = vmatpush1.msra.mxu0 0.0
    %332 = vmatprep.subr.mxu0 0.0
    %333 = vmatpush1.msra.mxu0 0.0
    %334 = vmatprep.subr.mxu0 0.0
    %335 = vmatpush1.msra.mxu0 0.0
    %336 = vmatprep.subr.mxu0 0.0
    %337 = vmatpush1.msra.mxu0 0.0
    %338 = vmatprep.subr.mxu0 0.0
    %339 = vmatpush1.msra.mxu0 0.0
    %340 = vmatprep.subr.mxu0 0.0
    %341 = vmatpush1.msra.mxu0 0.0
    %342 = vmatprep.subr.mxu0 0.0
    %343 = vmatpush1.msra.mxu0 0.0
    %344 = vmatprep.subr.mxu0 0.0
    %345 = vmatpush1.msra.mxu0 0.0
    %346 = vmatprep.subr.mxu0 0.0
    %347 = vmatpush1.msra.mxu0 0.0
    %348 = vmatprep.subr.mxu0 0.0
    %349 = vmatpush1.msra.mxu0 0.0
    %350 = vmatprep.mubr.f32.mxu0 0.0
    %351 = vmatmul.mubr.f32.gmra.mrb[0].mxu0 %v205
    %v352 = vpop.f32.mrb[0].mxu0
    %v353 = vadd.f32 %v196, %v352
    %v354 = vpop.f32.mrb[0].mxu0
    %v355 = vadd.f32 %v198, %v354
    %356 = vdwg.mxu0
    %v357 = vld [vmem:[%s6] sm:$0xf]
    %359 = vset.pattern.permute.xlu0 0
    %360 = vperm.xlu0 %359, %v357
    %v361 = vpop.permute.xlu0 %360
    %v363 = vadd.f32 %v282, %v361
    %v364 = vadd.f32 %v284, %v361
    %v365 = vadd.f32 %v353, %v361
    %v366 = vadd.f32 %v355, %v361
    %v367 = vld [vmem:[%s4] sm:$0xf]
    %v368 = vld [vmem:[%s5] sm:$0xf]
    %v370 = vsel %vm45, %v368, 0
    %372 = vmatprep.subr.mxu0 %v52
    %373 = vmatpush1.msra.mxu0 %v50
    %374 = vmatprep.subr.mxu0 0.0
    %375 = vmatpush1.msra.mxu0 0.0
    %376 = vmatprep.subr.mxu0 0.0
    %377 = vmatpush1.msra.mxu0 0.0
    %378 = vmatprep.subr.mxu0 0.0
    %379 = vmatpush1.msra.mxu0 0.0
    %380 = vmatprep.subr.mxu0 0.0
    %381 = vmatpush1.msra.mxu0 0.0
    %382 = vmatprep.subr.mxu0 0.0
    %383 = vmatpush1.msra.mxu0 0.0
    %384 = vmatprep.subr.mxu0 0.0
    %385 = vmatpush1.msra.mxu0 0.0
    %386 = vmatprep.subr.mxu0 0.0
    %387 = vmatpush1.msra.mxu0 0.0
    %388 = vmatprep.subr.mxu0 0.0
    %389 = vmatpush1.msra.mxu0 0.0
    %390 = vmatprep.subr.mxu0 0.0
    %391 = vmatpush1.msra.mxu0 0.0
    %392 = vmatprep.subr.mxu0 0.0
    %393 = vmatpush1.msra.mxu0 0.0
    %394 = vmatprep.subr.mxu0 0.0
    %395 = vmatpush1.msra.mxu0 0.0
    %396 = vmatprep.subr.mxu0 0.0
    %397 = vmatpush1.msra.mxu0 0.0
    %398 = vmatprep.subr.mxu0 0.0
    %399 = vmatpush1.msra.mxu0 0.0
    %400 = vmatprep.subr.mxu0 0.0
    %401 = vmatpush1.msra.mxu0 0.0
    %402 = vmatprep.subr.mxu0 0.0
    %403 = vmatpush1.msra.mxu0 0.0
    %404 = vmatprep.subr.mxu0 0.0
    %405 = vmatpush1.msra.mxu0 0.0
    %406 = vmatprep.subr.mxu0 0.0
    %407 = vmatpush1.msra.mxu0 0.0
    %408 = vmatprep.subr.mxu0 0.0
    %409 = vmatpush1.msra.mxu0 0.0
    %410 = vmatprep.subr.mxu0 0.0
    %411 = vmatpush1.msra.mxu0 0.0
    %412 = vmatprep.subr.mxu0 0.0
    %413 = vmatpush1.msra.mxu0 0.0
    %414 = vmatprep.subr.mxu0 0.0
    %415 = vmatpush1.msra.mxu0 0.0
    %416 = vmatprep.subr.mxu0 0.0
    %417 = vmatpush1.msra.mxu0 0.0
    %418 = vmatprep.subr.mxu0 0.0
    %419 = vmatpush1.msra.mxu0 0.0
    %420 = vmatprep.subr.mxu0 0.0
    %421 = vmatpush1.msra.mxu0 0.0
    %422 = vmatprep.subr.mxu0 0.0
    %423 = vmatpush1.msra.mxu0 0.0
    %424 = vmatprep.subr.mxu0 0.0
    %425 = vmatpush1.msra.mxu0 0.0
    %426 = vmatprep.subr.mxu0 0.0
    %427 = vmatpush1.msra.mxu0 0.0
    %428 = vmatprep.subr.mxu0 0.0
    %429 = vmatpush1.msra.mxu0 0.0
    %430 = vmatprep.subr.mxu0 0.0
    %431 = vmatpush1.msra.mxu0 0.0
    %432 = vmatprep.subr.mxu0 0.0
    %433 = vmatpush1.msra.mxu0 0.0
    %434 = vmatprep.subr.mxu0 0.0
    %435 = vmatpush1.msra.mxu0 0.0
    %436 = vmatprep.mubr.f32.mxu0 0.0
    %437 = vmatmul.mubr.f32.gmra.mrb[0].mxu0 %v370
    %v438 = vpop.f32.mrb[0].mxu0
    %v439 = vadd.f32 0.0, %v438
    %v440 = vpop.f32.mrb[0].mxu0
    %v441 = vadd.f32 0.0, %v440
    %442 = vdwg.mxu0
    %443 = vmatprep.subr.mxu0 %v56
    %444 = vmatpush1.msra.mxu0 %v54
    %445 = vmatprep.subr.mxu0 0.0
    %446 = vmatpush1.msra.mxu0 0.0
    %447 = vmatprep.subr.mxu0 0.0
    %448 = vmatpush1.msra.mxu0 0.0
    %449 = vmatprep.subr.mxu0 0.0
    %450 = vmatpush1.msra.mxu0 0.0
    %451 = vmatprep.subr.mxu0 0.0
    %452 = vmatpush1.msra.mxu0 0.0
    %453 = vmatprep.subr.mxu0 0.0
    %454 = vmatpush1.msra.mxu0 0.0
    %455 = vmatprep.subr.mxu0 0.0
    %456 = vmatpush1.msra.mxu0 0.0
    %457 = vmatprep.subr.mxu0 0.0
    %458 = vmatpush1.msra.mxu0 0.0
    %459 = vmatprep.subr.mxu0 0.0
    %460 = vmatpush1.msra.mxu0 0.0
    %461 = vmatprep.subr.mxu0 0.0
    %462 = vmatpush1.msra.mxu0 0.0
    %463 = vmatprep.subr.mxu0 0.0
    %464 = vmatpush1.msra.mxu0 0.0
    %465 = vmatprep.subr.mxu0 0.0
    %466 = vmatpush1.msra.mxu0 0.0
    %467 = vmatprep.subr.mxu0 0.0
    %468 = vmatpush1.msra.mxu0 0.0
    %469 = vmatprep.subr.mxu0 0.0
    %470 = vmatpush1.msra.mxu0 0.0
    %471 = vmatprep.subr.mxu0 0.0
    %472 = vmatpush1.msra.mxu0 0.0
    %473 = vmatprep.subr.mxu0 0.0
    %474 = vmatpush1.msra.mxu0 0.0
    %475 = vmatprep.subr.mxu0 0.0
    %476 = vmatpush1.msra.mxu0 0.0
    %477 = vmatprep.subr.mxu0 0.0
    %478 = vmatpush1.msra.mxu0 0.0
    %479 = vmatprep.subr.mxu0 0.0
    %480 = vmatpush1.msra.mxu0 0.0
    %481 = vmatprep.subr.mxu0 0.0
    %482 = vmatpush1.msra.mxu0 0.0
    %483 = vmatprep.subr.mxu0 0.0
    %484 = vmatpush1.msra.mxu0 0.0
    %485 = vmatprep.subr.mxu0 0.0
    %486 = vmatpush1.msra.mxu0 0.0
    %487 = vmatprep.subr.mxu0 0.0
    %488 = vmatpush1.msra.mxu0 0.0
    %489 = vmatprep.subr.mxu0 0.0
    %490 = vmatpush1.msra.mxu0 0.0
    %491 = vmatprep.subr.mxu0 0.0
    %492 = vmatpush1.msra.mxu0 0.0
    %493 = vmatprep.subr.mxu0 0.0
    %494 = vmatpush1.msra.mxu0 0.0
    %495 = vmatprep.subr.mxu0 0.0
    %496 = vmatpush1.msra.mxu0 0.0
    %497 = vmatprep.subr.mxu0 0.0
    %498 = vmatpush1.msra.mxu0 0.0
    %499 = vmatprep.subr.mxu0 0.0
    %500 = vmatpush1.msra.mxu0 0.0
    %501 = vmatprep.subr.mxu0 0.0
    %502 = vmatpush1.msra.mxu0 0.0
    %503 = vmatprep.subr.mxu0 0.0
    %504 = vmatpush1.msra.mxu0 0.0
    %505 = vmatprep.subr.mxu0 0.0
    %506 = vmatpush1.msra.mxu0 0.0
    %507 = vmatprep.mubr.f32.mxu0 0.0
    %508 = vmatmul.mubr.f32.gmra.mrb[0].mxu0 %v370
    %v509 = vpop.f32.mrb[0].mxu0
    %v510 = vadd.f32 0.0, %v509
    %v511 = vpop.f32.mrb[0].mxu0
    %v512 = vadd.f32 0.0, %v511
    %513 = vdwg.mxu0
    %v515 = vsel %vm45, %v367, 0
    %517 = vmatprep.subr.mxu0 %v209
    %518 = vmatpush1.msra.mxu0 %v207
    %519 = vmatprep.subr.mxu0 0.0
    %520 = vmatpush1.msra.mxu0 0.0
    %521 = vmatprep.subr.mxu0 0.0
    %522 = vmatpush1.msra.mxu0 0.0
    %523 = vmatprep.subr.mxu0 0.0
    %524 = vmatpush1.msra.mxu0 0.0
    %525 = vmatprep.subr.mxu0 0.0
    %526 = vmatpush1.msra.mxu0 0.0
    %527 = vmatprep.subr.mxu0 0.0
    %528 = vmatpush1.msra.mxu0 0.0
    %529 = vmatprep.subr.mxu0 0.0
    %530 = vmatpush1.msra.mxu0 0.0
    %531 = vmatprep.subr.mxu0 0.0
    %532 = vmatpush1.msra.mxu0 0.0
    %533 = vmatprep.subr.mxu0 0.0
    %534 = vmatpush1.msra.mxu0 0.0
    %535 = vmatprep.subr.mxu0 0.0
    %536 = vmatpush1.msra.mxu0 0.0
    %537 = vmatprep.subr.mxu0 0.0
    %538 = vmatpush1.msra.mxu0 0.0
    %539 = vmatprep.subr.mxu0 0.0
    %540 = vmatpush1.msra.mxu0 0.0
    %541 = vmatprep.subr.mxu0 0.0
    %542 = vmatpush1.msra.mxu0 0.0
    %543 = vmatprep.subr.mxu0 0.0
    %544 = vmatpush1.msra.mxu0 0.0
    %545 = vmatprep.subr.mxu0 0.0
    %546 = vmatpush1.msra.mxu0 0.0
    %547 = vmatprep.subr.mxu0 0.0
    %548 = vmatpush1.msra.mxu0 0.0
    %549 = vmatprep.subr.mxu0 0.0
    %550 = vmatpush1.msra.mxu0 0.0
    %551 = vmatprep.subr.mxu0 0.0
    %552 = vmatpush1.msra.mxu0 0.0
    %553 = vmatprep.subr.mxu0 0.0
    %554 = vmatpush1.msra.mxu0 0.0
    %555 = vmatprep.subr.mxu0 0.0
    %556 = vmatpush1.msra.mxu0 0.0
    %557 = vmatprep.subr.mxu0 0.0
    %558 = vmatpush1.msra.mxu0 0.0
    %559 = vmatprep.subr.mxu0 0.0
    %560 = vmatpush1.msra.mxu0 0.0
    %561 = vmatprep.subr.mxu0 0.0
    %562 = vmatpush1.msra.mxu0 0.0
    %563 = vmatprep.subr.mxu0 0.0
    %564 = vmatpush1.msra.mxu0 0.0
    %565 = vmatprep.subr.mxu0 0.0
    %566 = vmatpush1.msra.mxu0 0.0
    %567 = vmatprep.subr.mxu0 0.0
    %568 = vmatpush1.msra.mxu0 0.0
    %569 = vmatprep.subr.mxu0 0.0
    %570 = vmatpush1.msra.mxu0 0.0
    %571 = vmatprep.subr.mxu0 0.0
    %572 = vmatpush1.msra.mxu0 0.0
    %573 = vmatprep.subr.mxu0 0.0
    %574 = vmatpush1.msra.mxu0 0.0
    %575 = vmatprep.subr.mxu0 0.0
    %576 = vmatpush1.msra.mxu0 0.0
    %577 = vmatprep.subr.mxu0 0.0
    %578 = vmatpush1.msra.mxu0 0.0
    %579 = vmatprep.subr.mxu0 0.0
    %580 = vmatpush1.msra.mxu0 0.0
    %581 = vmatprep.mubr.f32.mxu0 0.0
    %582 = vmatmul.mubr.f32.gmra.mrb[0].mxu0 %v515
    %v583 = vpop.f32.mrb[0].mxu0
    %v584 = vadd.f32 %v439, %v583
    %v585 = vpop.f32.mrb[0].mxu0
    %v586 = vadd.f32 %v441, %v585
    %587 = vdwg.mxu0
    %588 = vmatprep.subr.mxu0 %v213
    %589 = vmatpush1.msra.mxu0 %v211
    %590 = vmatprep.subr.mxu0 0.0
    %591 = vmatpush1.msra.mxu0 0.0
    %592 = vmatprep.subr.mxu0 0.0
    %593 = vmatpush1.msra.mxu0 0.0
    %594 = vmatprep.subr.mxu0 0.0
    %595 = vmatpush1.msra.mxu0 0.0
    %596 = vmatprep.subr.mxu0 0.0
    %597 = vmatpush1.msra.mxu0 0.0
    %598 = vmatprep.subr.mxu0 0.0
    %599 = vmatpush1.msra.mxu0 0.0
    %600 = vmatprep.subr.mxu0 0.0
    %601 = vmatpush1.msra.mxu0 0.0
    %602 = vmatprep.subr.mxu0 0.0
    %603 = vmatpush1.msra.mxu0 0.0
    %604 = vmatprep.subr.mxu0 0.0
    %605 = vmatpush1.msra.mxu0 0.0
    %606 = vmatprep.subr.mxu0 0.0
    %607 = vmatpush1.msra.mxu0 0.0
    %608 = vmatprep.subr.mxu0 0.0
    %609 = vmatpush1.msra.mxu0 0.0
    %610 = vmatprep.subr.mxu0 0.0
    %611 = vmatpush1.msra.mxu0 0.0
    %612 = vmatprep.subr.mxu0 0.0
    %613 = vmatpush1.msra.mxu0 0.0
    %614 = vmatprep.subr.mxu0 0.0
    %615 = vmatpush1.msra.mxu0 0.0
    %616 = vmatprep.subr.mxu0 0.0
    %617 = vmatpush1.msra.mxu0 0.0
    %618 = vmatprep.subr.mxu0 0.0
    %619 = vmatpush1.msra.mxu0 0.0
    %620 = vmatprep.subr.mxu0 0.0
    %621 = vmatpush1.msra.mxu0 0.0
    %622 = vmatprep.subr.mxu0 0.0
    %623 = vmatpush1.msra.mxu0 0.0
    %624 = vmatprep.subr.mxu0 0.0
    %625 = vmatpush1.msra.mxu0 0.0
    %626 = vmatprep.subr.mxu0 0.0
    %627 = vmatpush1.msra.mxu0 0.0
    %628 = vmatprep.subr.mxu0 0.0
    %629 = vmatpush1.msra.mxu0 0.0
    %630 = vmatprep.subr.mxu0 0.0
    %631 = vmatpush1.msra.mxu0 0.0
    %632 = vmatprep.subr.mxu0 0.0
    %633 = vmatpush1.msra.mxu0 0.0
    %634 = vmatprep.subr.mxu0 0.0
    %635 = vmatpush1.msra.mxu0 0.0
    %636 = vmatprep.subr.mxu0 0.0
    %637 = vmatpush1.msra.mxu0 0.0
    %638 = vmatprep.subr.mxu0 0.0
    %639 = vmatpush1.msra.mxu0 0.0
    %640 = vmatprep.subr.mxu0 0.0
    %641 = vmatpush1.msra.mxu0 0.0
    %642 = vmatprep.subr.mxu0 0.0
    %643 = vmatpush1.msra.mxu0 0.0
    %644 = vmatprep.subr.mxu0 0.0
    %645 = vmatpush1.msra.mxu0 0.0
    %646 = vmatprep.subr.mxu0 0.0
    %647 = vmatpush1.msra.mxu0 0.0
    %648 = vmatprep.subr.mxu0 0.0
    %649 = vmatpush1.msra.mxu0 0.0
    %650 = vmatprep.subr.mxu0 0.0
    %651 = vmatpush1.msra.mxu0 0.0
    %652 = vmatprep.mubr.f32.mxu0 0.0
    %653 = vmatmul.mubr.f32.gmra.mrb[0].mxu0 %v515
    %v654 = vpop.f32.mrb[0].mxu0
    %v655 = vadd.f32 %v510, %v654
    %v656 = vpop.f32.mrb[0].mxu0
    %v657 = vadd.f32 %v512, %v656
    %658 = vdwg.mxu0
    %v659 = vld [vmem:[%s7] sm:$0xf]
    %661 = vset.pattern.permute.xlu0 0
    %662 = vperm.xlu0 %661, %v659
    %v663 = vpop.permute.xlu0 %662
    %v665 = vadd.f32 %v584, %v663
    %v666 = vadd.f32 %v586, %v663
    %v667 = vadd.f32 %v655, %v663
    %v668 = vadd.f32 %v657, %v663
    %v673 = vcombine.low %v363, %v364
    %v674 = vcombine.low %v365, %v366
    %v677 = vadd.f32 %v35, %v673
    %v678 = vadd.f32 %v36, %v674
    %v679 = vmul.f32 %v665, 0.5
    %v680 = vmul.f32 %v666, 0.5
    %v681 = vmul.f32 %v667, 0.5
    %v682 = vmul.f32 %v668, 0.5
    %v683 = vmul.f32 %v679, 1.442695
    %v684 = vpow.pop %v683
    %v685 = vmul.f32 %v680, 1.442695
    %v686 = vpow.pop %v685
    %v687 = vmul.f32 %v681, 1.442695
    %v688 = vpow.pop %v687
    %v689 = vmul.f32 %v682, 1.442695
    %v690 = vpow.pop %v689
    %v691 = vld [vmem:[%s8] sm:$0xff]
    %v692 = vld [vmem:[%s8 + $0x8] sm:$0xff]
    %v695 = vcombine.high %v691, %v691
    %v696 = vcombine.high %v692, %v692
    %v699 = vmul.f32 %v684, %v691
    %v700 = vmul.f32 %v686, %v695
    %v701 = vmul.f32 %v688, %v692
    %v702 = vmul.f32 %v690, %v696
    %v707 = vcombine.low %v699, %v700
    %v708 = vcombine.low %v701, %v702
    %v711 = vadd.f32 %v677, %v707
    %v712 = vadd.f32 %v678, %v708
    %713 = vst [vmem:[%s9] sm:$0xff] %v711
    %714 = vst [vmem:[%s9 + $0x8] sm:$0xff] %v712
    %v715 = vadd.f32 %v665, 1.0
    %v716 = vadd.f32 %v666, 1.0
    %v717 = vadd.f32 %v667, 1.0
    %v718 = vadd.f32 %v668, 1.0
    %v719 = vmul.f32 %v363, %v363
    %v720 = vmul.f32 %v364, %v364
    %v721 = vmul.f32 %v365, %v365
    %v722 = vmul.f32 %v366, %v366
    %v723 = vsub.f32 %v715, %v719
    %v724 = vsub.f32 %v716, %v720
    %v725 = vsub.f32 %v717, %v721
    %v726 = vsub.f32 %v718, %v722
    %v727 = vmul.f32 %v665, 1.442695
    %v728 = vpow.pop %v727
    %v729 = vmul.f32 %v666, 1.442695
    %v730 = vpow.pop %v729
    %v731 = vmul.f32 %v667, 1.442695
    %v732 = vpow.pop %v731
    %v733 = vmul.f32 %v668, 1.442695
    %v734 = vpow.pop %v733
    %v735 = vsub.f32 %v723, %v728
    %v736 = vsub.f32 %v724, %v730
    %v737 = vsub.f32 %v725, %v732
    %v738 = vsub.f32 %v726, %v734
    %v739 = vsel %vm49, %v735, 0.0
    %v740 = vsel %vm49, %v736, 0.0
    %v741 = vadd.f32 %v739, %v740
    %v742 = vsel %vm49, %v737, 0.0
    %v743 = vadd.f32 %v741, %v742
    %v744 = vsel %vm49, %v738, 0.0
    %v745 = vadd.f32 %v743, %v744
    %746 = vadd.xlane.f32.xlu0 %v745
    %v747 = vpop.xlane.xlu0 %746
    %v748 = vrot.slane %v747, 4
    %v749 = vadd.f32 %v747, %v748
    %v750 = vrot.slane %v749, 2
    %v751 = vadd.f32 %v749, %v750
    %v752 = vrot.slane %v751, 1
    %v753 = vadd.f32 %v751, %v752
    %s754 = vtos %v753
    %s755 = smul.f32 %s754, -0.5
    %v756 = vrcp.pop 2.0
    %s757 = vtos %v756
    %s758 = smul.f32 %s755, %s757
    %s759 = scalar_lea.smem [#allocation2], 0
    %760 = sst [smem:[%s759]] %s758
    // Predicated region
    $region38: #{nvae_forward.26} parent=1 // pred_check
      _
    $region39: #{nvae_forward.26} parent=1 // pred_check_branch
      %762 = sbr.rel (0) target = $region41
    $region40: #{nvae_forward.26} parent=1 // pred_region
      _
    $region41: #{nvae_forward.26} parent=1 // pred_fallthru
      _
    // Predicated region
    $region42: #{nvae_forward.26} parent=1 // pred_check
      _
    $region43: #{nvae_forward.26} parent=1 // pred_check_branch
      %764 = sbr.rel (0) target = $region45
    $region44: #{nvae_forward.26} parent=1 // pred_region
      %s766 = ssub.s32 16, 16
      %767 = vsyncadd [#allocation3], %s766
      %770 = dma.smem_to_hbm [#allocation2], 16, %s10, [#allocation3]
    $region45: #{nvae_forward.26} parent=1 // pred_fallthru
      _
    // Predicated region
    $region46: #{nvae_forward.26} parent=1 // pred_check
      _
    $region47: #{nvae_forward.26} parent=1 // pred_check_branch
      %772 = sbr.rel (0) target = $region49
    $region48: #{nvae_forward.26} parent=1 // pred_region
      _
    $region49: #{nvae_forward.26} parent=1 // pred_fallthru
      _
    // Predicated region
    $region50: #{nvae_forward.26} parent=1 // pred_check
      _
    $region51: #{nvae_forward.26} parent=1 // pred_check_branch
      %774 = sbr.rel (0) target = $region53
    $region52: #{nvae_forward.26} parent=1 // pred_region
      %775 = dma.done [#allocation3], 16
    $region53: #{nvae_forward.26} parent=1 // pred_fallthru
      _
    %776 = sfence
    %777 = vsyncpa [#allocation3], 1

// kernel: nvae_forward.27
$region0: #{nvae_forward.27}
  #allocation0 [shape = 'u32[]', space=smem, size = 0x4, offset = 0x4, fixed_abs, tag = 'smem constant byte address 0x4 - core index']
  #allocation1 [shape = 'u32[144,128]{1,0:T(1,128)}', space=vmem, size = 0x12000, scoped, tag = 'internal scratch']
  %s0 = inlined_call_operand.vmem [shape: bf16[4,36], index: 0, kind: input, shape index: {}]
  %s1 = inlined_call_operand.vmem [shape: bf16[36,2048], index: 1, kind: input, shape index: {}]
  %s2 = inlined_call_operand.vmem [shape: f32[4,1], index: 2, kind: input, shape index: {}]
  %s3 = inlined_call_operand.vmem [shape: f32[4,2048], index: 3, kind: output, shape index: {}]
  %s4 = sld [smem:[#allocation0]]
  $region68: #{nvae_forward.27} parent=0
    _
  %s6 = ssub.s32 1, %s4
  %s7 = scalar_select 0, %s6, %s4
  $region1: #{nvae_forward.27} parent=0
    #allocation2 [shape = 'u8[163840]{0}', space=vmem, size = 0x28000, scoped, tag = 'input window, operand 1']
    loop: start=0, step=1, limit=4
    $region2: #{nvae_forward.27} parent=1 // loop_pre_header
      _
    $region3: #{nvae_forward.27} parent=1 // loop_header
      %s9 = sphi 0, %s13
      %p10 = scmp.ge.s32.totalorder %s9, 4
      %s17 = sphi 0, %s17
      %s19 = sphi 0, %s17
      %s20 = sphi 0, %s19
      %s34 = sphi 0, %s20
      %s40 = sphi 0, %s42
      %s43 = sphi 0, %s40
      %s44 = sphi 0, %s43
      %s60 = sphi 0, %s44
      %s64 = sphi 0, %s64
      %s66 = sphi 0, %s64
      %s67 = sphi 0, %s66
      %s81 = sphi 0, %s67
      %s87 = sphi 0, %s89
      %s90 = sphi 0, %s87
      %s91 = sphi 0, %s90
      %s107 = sphi 0, %s91
    $region4: #{nvae_forward.27} parent=1 // loop_header_branch
      %12 = sbr.rel (%p10) target = $region8
    $region5: #{nvae_forward.27} parent=1 // loop_body
      %s14 = ssub.s32 %s9, 1
      %s15 = ssub.s32 %s9, 2
      %s16 = sadd.s32 %s9, 1
      %s18 = sadd.s32 %s17, 1
      %p21 = scmp.eq.s32.totalorder %s9, 1
      %p22 = scmp.ne.s32.totalorder %s17, %s19
      %p23 = scmp.eq.s32.totalorder %s9, 0
      %p24 = por %p22, %p23
      %p25 = scmp.ne.s32.totalorder %s17, %s19
      %p26 = scmp.eq.s32.totalorder %s14, 1
      %p27 = por %p25, %p26
      %p28 = scmp.ne.s32.totalorder %s19, %s20
      %p29 = scmp.eq.s32.totalorder %s14, 0
      %p30 = por %p28, %p29
      %p31 = scmp.ne.s32.totalorder %s19, %s20
      %p32 = scmp.eq.s32.totalorder %s15, 1
      %p33 = por %p31, %p32
      %p35 = scmp.ne.s32.totalorder %s20, %s34
      %p36 = scmp.eq.s32.totalorder %s15, 0
      %p37 = por %p35, %p36
      %s38 = ssub.s32 %s9, %s16
      %p39 = scmp.eq.s32.totalorder %s38, 0
      %s41 = sadd.s32 %s40, 1
      %s42 = scalar_select %p39, %s40, %s41
      %p45 = pneg %p39
      %p46 = scmp.eq.s32.totalorder %s9, 1
      %p47 = por %p45, %p46
      %p48 = scmp.ne.s32.totalorder %s40, %s43
      %p49 = scmp.eq.s32.totalorder %s9, 0
      %p50 = por %p48, %p49
      %p51 = scmp.ne.s32.totalorder %s40, %s43
      %p52 = scmp.eq.s32.totalorder %s14, 1
      %p53 = por %p51, %p52
      %p54 = scmp.ne.s32.totalorder %s43, %s44
      %p55 = scmp.eq.s32.totalorder %s14, 0
      %p56 = por %p54, %p55
      %p57 = scmp.ne.s32.totalorder %s43, %s44
      %p58 = scmp.eq.s32.totalorder %s15, 1
      %p59 = por %p57, %p58
      %p61 = scmp.ne.s32.totalorder %s44, %s60
      %p62 = scmp.eq.s32.totalorder %s15, 0
      %p63 = por %p61, %p62
      %s65 = sadd.s32 %s64, 1
      %p68 = scmp.eq.s32.totalorder %s9, 1
      %p69 = scmp.ne.s32.totalorder %s64, %s66
      %p70 = scmp.eq.s32.totalorder %s9, 0
      %p71 = por %p69, %p70
      %p72 = scmp.ne.s32.totalorder %s64, %s66
      %p73 = scmp.eq.s32.totalorder %s14, 1
      %p74 = por %p72, %p73
      %p75 = scmp.ne.s32.totalorder %s66, %s67
      %p76 = scmp.eq.s32.totalorder %s14, 0
      %p77 = por %p75, %p76
      %p78 = scmp.ne.s32.totalorder %s66, %s67
      %p79 = scmp.eq.s32.totalorder %s15, 1
      %p80 = por %p78, %p79
      %p82 = scmp.ne.s32.totalorder %s67, %s81
      %p83 = scmp.eq.s32.totalorder %s15, 0
      %p84 = por %p82, %p83
      %s85 = ssub.s32 %s9, %s16
      %p86 = scmp.eq.s32.totalorder %s85, 0
      %s88 = sadd.s32 %s87, 1
      %s89 = scalar_select %p86, %s87, %s88
      %p92 = pneg %p86
      %p93 = scmp.eq.s32.totalorder %s9, 1
      %p94 = por %p92, %p93
      %p95 = scmp.ne.s32.totalorder %s87, %s90
      %p96 = scmp.eq.s32.totalorder %s9, 0
      %p97 = por %p95, %p96
      %p98 = scmp.ne.s32.totalorder %s87, %s90
      %p99 = scmp.eq.s32.totalorder %s14, 1
      %p100 = por %p98, %p99
      %p101 = scmp.ne.s32.totalorder %s90, %s91
      %p102 = scmp.eq.s32.totalorder %s14, 0
      %p103 = por %p101, %p102
      %p104 = scmp.ne.s32.totalorder %s90, %s91
      %p105 = scmp.eq.s32.totalorder %s15, 1
      %p106 = por %p104, %p105
      %p108 = scmp.ne.s32.totalorder %s91, %s107
      %p109 = scmp.eq.s32.totalorder %s15, 0
      %p110 = por %p108, %p109
      %p111 = scmp.le.s32.totalorder 1, %s9
      %p112 = scmp.lt.s32.totalorder %s9, 3
      %p113 = pnand %p111, %p112
      %p114 = pneg %p113
      // Predicated region
      $region9: #{nvae_forward.27} parent=5 // pred_check
        _
      $region10: #{nvae_forward.27} parent=5 // pred_check_branch
        %116 = sbr.rel (%p113) target = $region12
      $region11: #{nvae_forward.27} parent=5 // pred_region
        %s117 = ssub.s32 %s9, 1
        // Predicated region
        $region13: #{nvae_forward.27} parent=11 // pred_check
          %p118 = pneg %p30
        $region14: #{nvae_forward.27} parent=11 // pred_check_branch
          %120 = sbr.rel (%p118) target = $region16
        $region15: #{nvae_forward.27} parent=11 // pred_region
          _
        $region16: #{nvae_forward.27} parent=11 // pred_fallthru
          _
        // Predicated region
        $region17: #{nvae_forward.27} parent=11 // pred_check
          %p121 = pneg %p77
        $region18: #{nvae_forward.27} parent=11 // pred_check_branch
          %123 = sbr.rel (%p121) target = $region20
        $region19: #{nvae_forward.27} parent=11 // pred_region
          _
        $region20: #{nvae_forward.27} parent=11 // pred_fallthru
          _
      $region12: #{nvae_forward.27} parent=5 // pred_fallthru
        _
      %p124 = scmp.lt.s32.totalorder %s9, 2
      // Predicated region
      $region21: #{nvae_forward.27} parent=5 // pred_check
        %p125 = pneg %p124
      $region22: #{nvae_forward.27} parent=5 // pred_check_branch
        %127 = sbr.rel (%p125) target = $region24
      $region23: #{nvae_forward.27} parent=5 // pred_region
        // Predicated region
        $region25: #{nvae_forward.27} parent=23 // pred_check
          %p128 = pneg %p50
        $region26: #{nvae_forward.27} parent=23 // pred_check_branch
          %130 = sbr.rel (%p128) target = $region28
        $region27: #{nvae_forward.27} parent=23 // pred_region
          %s131 = sand.u32 %s40, 1
          %s132 = sand.u32 %s40, 1
          %s133 = smul.addr %s132, 160
          %s134 = scalar_lea.vmem [#allocation2], %s133
          %s135 = smul.u32 8, %s9
          %s136 = smul.addr %s135, 4
          %s137 = scalar_lea.vmem %s1, %s136
          // Predicated region
          $region29: #{nvae_forward.27} parent=27 // pred_check
            _
          $region30: #{nvae_forward.27} parent=27 // pred_check_branch
            %139 = sbr.rel (0) target = $region32
          $region31: #{nvae_forward.27} parent=27 // pred_region
            // Predicated region
            $region33: #{nvae_forward.27} parent=31 // pred_check
              _
            $region34: #{nvae_forward.27} parent=31 // pred_check_branch
              %141 = sbr.rel (0) target = $region36
            $region35: #{nvae_forward.27} parent=31 // pred_region
              loop: start=0, step=1, limit=1
              $region37: #{nvae_forward.27} parent=35 // loop_pre_header
                _
              $region38: #{nvae_forward.27} parent=35 // loop_header
                %s143 = sphi 0, %s147
                %p144 = scmp.ge.s32.totalorder %s143, 1
                %s148 = sphi %s137, %s137
                %s149 = sphi %s134, %s134
              $region39: #{nvae_forward.27} parent=35 // loop_header_branch
                %146 = sbr.rel (%p144) target = $region43
              $region40: #{nvae_forward.27} parent=35 // loop_body
                %v150 = vld [vmem:[%s148] sm:$0xff]
                %151 = vst [vmem:[%s149] sm:$0xff] %v150
                %v152 = vld [vmem:[%s148 + $0x8] sm:$0xff]
                %153 = vst [vmem:[%s149 + $0x8] sm:$0xff] %v152
                %v154 = vld [vmem:[%s148 + $0x10] sm:$0xff]
                %155 = vst [vmem:[%s149 + $0x10] sm:$0xff] %v154
                %v156 = vld [vmem:[%s148 + $0x18] sm:$0xff]
                %157 = vst [vmem:[%s149 + $0x18] sm:$0xff] %v156
                %v158 = vld [vmem:[%s148 + $0x40] sm:$0xff]
                %159 = vst [vmem:[%s149 + $0x20] sm:$0xff] %v158
                %v160 = vld [vmem:[%s148 + $0x48] sm:$0xff]
                %161 = vst [vmem:[%s149 + $0x28] sm:$0xff] %v160
                %v162 = vld [vmem:[%s148 + $0x50] sm:$0xff]
                %163 = vst [vmem:[%s149 + $0x30] sm:$0xff] %v162
                %v164 = vld [vmem:[%s148 + $0x58] sm:$0xff]
                %165 = vst [vmem:[%s149 + $0x38] sm:$0xff] %v164
                %v166 = vld [vmem:[%s148 + $0x80] sm:$0xff]
                %167 = vst [vmem:[%s149 + $0x40] sm:$0xff] %v166
                %v168 = vld [vmem:[%s148 + $0x88] sm:$0xff]
                %169 = vst [vmem:[%s149 + $0x48] sm:$0xff] %v168
                %v170 = vld [vmem:[%s148 + $0x90] sm:$0xff]
                %171 = vst [vmem:[%s149 + $0x50] sm:$0xff] %v170
                %v172 = vld [vmem:[%s148 + $0x98] sm:$0xff]
                %173 = vst [vmem:[%s149 + $0x58] sm:$0xff] %v172
                %v174 = vld [vmem:[%s148 + $0xc0] sm:$0xff]
                %175 = vst [vmem:[%s149 + $0x60] sm:$0xff] %v174
                %v176 = vld [vmem:[%s148 + $0xc8] sm:$0xff]
                %177 = vst [vmem:[%s149 + $0x68] sm:$0xff] %v176
                %v178 = vld [vmem:[%s148 + $0xd0] sm:$0xff]
                %179 = vst [vmem:[%s149 + $0x70] sm:$0xff] %v178
                %v180 = vld [vmem:[%s148 + $0xd8] sm:$0xff]
                %181 = vst [vmem:[%s149 + $0x78] sm:$0xff] %v180
                %v182 = vld [vmem:[%s148 + $0x100] sm:$0xff]
                %183 = vst [vmem:[%s149 + $0x80] sm:$0xff] %v182
                %v184 = vld [vmem:[%s148 + $0x108] sm:$0xff]
                %185 = vst [vmem:[%s149 + $0x88] sm:$0xff] %v184
                %v186 = vld [vmem:[%s148 + $0x110] sm:$0xff]
                %187 = vst [vmem:[%s149 + $0x90] sm:$0xff] %v186
                %v188 = vld [vmem:[%s148 + $0x118] sm:$0xff]
                %189 = vst [vmem:[%s149 + $0x98] sm:$0xff] %v188
              $region41: #{nvae_forward.27} parent=35 // loop_footer
                %s147 = sadd.s32 1, %s143
              $region42: #{nvae_forward.27} parent=35 // loop_footer_branch
                %142 = sbr.rel target = $region38
              $region43: #{nvae_forward.27} parent=35 // loop_exit
                _
            $region36: #{nvae_forward.27} parent=31 // pred_fallthru
              _
            // Predicated region
            $region44: #{nvae_forward.27} parent=31 // pred_check
              _
            $region45: #{nvae_forward.27} parent=31 // pred_check_branch
              %191 = sbr.rel target = $region47
            $region46: #{nvae_forward.27} parent=31 // pred_region
              _
            $region47: #{nvae_forward.27} parent=31 // pred_fallthru
              _
          $region32: #{nvae_forward.27} parent=27 // pred_fallthru
            _
          %192 = vnop
        $region28: #{nvae_forward.27} parent=23 // pred_fallthru
          _
      $region24: #{nvae_forward.27} parent=5 // pred_fallthru
        _
      %p193 = scmp.le.s32.totalorder 1, %s9
      %p194 = scmp.lt.s32.totalorder %s9, 3
      %p195 = pnand %p193, %p194
      %p196 = pneg %p195
      // Predicated region
      $region48: #{nvae_forward.27} parent=5 // pred_check
        _
      $region49: #{nvae_forward.27} parent=5 // pred_check_branch
        %198 = sbr.rel (%p195) target = $region51
      $region50: #{nvae_forward.27} parent=5 // pred_region
        %s199 = ssub.s32 %s9, 1
        %s200 = sand.u32 %s43, 1
        %s201 = sand.u32 %s43, 1
        %s202 = smul.addr %s201, 160
        %s203 = scalar_lea.vmem [#allocation2], %s202
        // Predicated region
        $region52: #{nvae_forward.27} parent=50 // pred_check
          %p204 = pneg %p56
        $region53: #{nvae_forward.27} parent=50 // pred_check_branch
          %206 = sbr.rel (%p204) target = $region55
        $region54: #{nvae_forward.27} parent=50 // pred_region
          _
        $region55: #{nvae_forward.27} parent=50 // pred_fallthru
          _
        %p207 = pneg %p30
        %p208 = pneg %p27
        %s209 = sand.u32 %s43, 1
        %s210 = sand.u32 %s43, 1
        %s211 = smul.addr %s210, 160
        %s212 = scalar_lea.vmem [#allocation2], %s211
        %p213 = pneg %p56
        %p214 = pneg %p53
        %p215 = pneg %p77
        %p216 = pneg %p74
        %p217 = pneg %p103
        %p218 = pneg %p100
        %s219 = smul.u32 8, %s14
        %p220 = scmp.lt.s32.totalorder %s219, 15
        %s221 = scalar_select %p220, %s219, 15
        %s222 = smul.addr %s221, 4
        %s223 = scalar_lea.vmem %s3, %s222
        %s224 = smul.u32 8, %s14
        %s225 = smul.u32 8, %s14
        %p226 = scmp.lt.s32.totalorder %s225, 15
        %s227 = scalar_select %p226, %s225, 15
        %s228 = smul.addr %s227, 4
        %s229 = scalar_lea.vmem %s3, %s228
        %s230 = smul.u32 8, %s14
        %v232 = vld [vmem:[%s0] sm:$0x3]
        %v233 = vld [vmem:[%s203] sm:$0xff]
        %v234 = vld [vmem:[%s203 + $0x8] sm:$0xff]
        %v235 = vld [vmem:[%s203 + $0x10] sm:$0xff]
        %v236 = vld [vmem:[%s203 + $0x18] sm:$0xff]
        %v237 = vld [vmem:[%s203 + $0x20] sm:$0xff]
        %v238 = vld [vmem:[%s203 + $0x28] sm:$0xff]
        %v239 = vld [vmem:[%s203 + $0x30] sm:$0xff]
        %v240 = vld [vmem:[%s203 + $0x38] sm:$0xff]
        %v241 = vld [vmem:[%s203 + $0x40] sm:$0xff]
        %v242 = vld [vmem:[%s203 + $0x48] sm:$0xff]
        %v243 = vld [vmem:[%s203 + $0x50] sm:$0xff]
        %v244 = vld [vmem:[%s203 + $0x58] sm:$0xff]
        %v245 = vld [vmem:[%s203 + $0x60] sm:$0xff]
        %v246 = vld [vmem:[%s203 + $0x68] sm:$0xff]
        %v247 = vld [vmem:[%s203 + $0x70] sm:$0xff]
        %v248 = vld [vmem:[%s203 + $0x78] sm:$0xff]
        %v249 = vld [vmem:[%s203 + $0x80] sm:$0x33]
        %v250 = vld [vmem:[%s203 + $0x88] sm:$0x33]
        %v251 = vld [vmem:[%s203 + $0x90] sm:$0x33]
        %v252 = vld [vmem:[%s203 + $0x98] sm:$0x33]
        %v253 = vld [vmem:[%s2] sm:$0xf]
        %255 = vset.pattern.permute.xlu0 0
        %256 = vperm.xlu0 %255, %v253
        %v257 = vpop.permute.xlu0 %256
        %v279 = vunpack.c.l.b16 %v233
        %v280 = vunpack.c.h.b16 %v233
        %v281 = vunpack.c.l.b16 %v234
        %v282 = vunpack.c.h.b16 %v234
        %v283 = vunpack.c.l.b16 %v235
        %v284 = vunpack.c.h.b16 %v235
        %v285 = vunpack.c.l.b16 %v236
        %v286 = vunpack.c.h.b16 %v236
        %v287 = vunpack.c.l.b16 %v237
        %v288 = vunpack.c.h.b16 %v237
        %v289 = vunpack.c.l.b16 %v238
        %v290 = vunpack.c.h.b16 %v238
        %v291 = vunpack.c.l.b16 %v239
        %v292 = vunpack.c.h.b16 %v239
        %v293 = vunpack.c.l.b16 %v240
        %v294 = vunpack.c.h.b16 %v240
        %v295 = vunpack.c.l.b16 %v241
        %v296 = vunpack.c.h.b16 %v241
        %v297 = vunpack.c.l.b16 %v242
        %v298 = vunpack.c.h.b16 %v242
        %v299 = vunpack.c.l.b16 %v243
        %v300 = vunpack.c.h.b16 %v243
        %v301 = vunpack.c.l.b16 %v244
        %v302 = vunpack.c.h.b16 %v244
        %v303 = vunpack.c.l.b16 %v245
        %v304 = vunpack.c.h.b16 %v245
        %v305 = vunpack.c.l.b16 %v246
        %v306 = vunpack.c.h.b16 %v246
        %v307 = vunpack.c.l.b16 %v247
        %v308 = vunpack.c.h.b16 %v247
        %v309 = vunpack.c.l.b16 %v248
        %v310 = vunpack.c.h.b16 %v248
        %v311 = vunpack.c.l.b16 %v249
        %v312 = vunpack.c.h.b16 %v249
        %v313 = vunpack.c.l.b16 %v250
        %v314 = vunpack.c.h.b16 %v250
        %v315 = vunpack.c.l.b16 %v251
        %v316 = vunpack.c.h.b16 %v251
        %v317 = vunpack.c.l.b16 %v252
        %v318 = vunpack.c.h.b16 %v252
        %v319 = vpack.c.b16 %v287, %v279
        %v320 = vpack.c.b16 %v288, %v280
        %v321 = vpack.c.b16 %v289, %v281
        %v322 = vpack.c.b16 %v290, %v282
        %v323 = vpack.c.b16 %v291, %v283
        %v324 = vpack.c.b16 %v292, %v284
        %v325 = vpack.c.b16 %v293, %v285
        %v326 = vpack.c.b16 %v294, %v286
        %v327 = vpack.c.b16 %v303, %v295
        %v328 = vpack.c.b16 %v304, %v296
        %v329 = vpack.c.b16 %v305, %v297
        %v330 = vpack.c.b16 %v306, %v298
        %v331 = vpack.c.b16 %v307, %v299
        %v332 = vpack.c.b16 %v308, %v300
        %v333 = vpack.c.b16 %v309, %v301
        %v334 = vpack.c.b16 %v310, %v302
        %v335 = vpack.c.b16 %v311, %v311
        %v336 = vpack.c.b16 %v312, %v312
        %v337 = vpack.c.b16 %v313, %v313
        %v338 = vpack.c.b16 %v314, %v314
        %v339 = vpack.c.b16 %v315, %v315
        %v340 = vpack.c.b16 %v316, %v316
        %v341 = vpack.c.b16 %v317, %v317
        %v342 = vpack.c.b16 %v318, %v318
        %vm359 = vcmask 293888
        %v361 = vsel %vm359, %v232, 0
        %vm363 = vcmask 1041408
        %v365 = vsel %vm363, %v335, 0
        %v368 = vsel %vm363, %v336, 0
        %v371 = vsel %vm363, %v337, 0
        %v374 = vsel %vm363, %v338, 0
        %v377 = vsel %vm363, %v339, 0
        %v380 = vsel %vm363, %v340, 0
        %v383 = vsel %vm363, %v341, 0
        %v386 = vsel %vm363, %v342, 0
        %388 = vmatprep.subr.bf16.mxu0 %v320
        %389 = vmatpush1.bf16.msra.mxu0 %v319
        %390 = vmatprep.subr.bf16.mxu0 %v328
        %391 = vmatpush1.bf16.msra.mxu0 %v327
        %392 = vmatprep.subr.bf16.mxu0 %v368
        %393 = vmatpush1.bf16.msra.mxu0 %v365
        %394 = vmatprep.subr.bf16.mxu0 0
        %395 = vmatpush1.bf16.msra.mxu0 0
        %396 = vmatprep.subr.bf16.mxu0 0
        %397 = vmatpush1.bf16.msra.mxu0 0
        %398 = vmatprep.subr.bf16.mxu0 0
        %399 = vmatpush1.bf16.msra.mxu0 0
        %400 = vmatprep.subr.bf16.mxu0 0
        %401 = vmatpush1.bf16.msra.mxu0 0
        %402 = vmatprep.subr.bf16.mxu0 0
        %403 = vmatpush1.bf16.msra.mxu0 0
        %404 = vmatprep.subr.bf16.mxu0 0
        %405 = vmatpush1.bf16.msra.mxu0 0
        %406 = vmatprep.subr.bf16.mxu0 0
        %407 = vmatpush1.bf16.msra.mxu0 0
        %408 = vmatprep.subr.bf16.mxu0 0
        %409 = vmatpush1.bf16.msra.mxu0 0
        %410 = vmatprep.subr.bf16.mxu0 0
        %411 = vmatpush1.bf16.msra.mxu0 0
        %412 = vmatprep.subr.bf16.mxu0 0
        %413 = vmatpush1.bf16.msra.mxu0 0
        %414 = vmatprep.subr.bf16.mxu0 0
        %415 = vmatpush1.bf16.msra.mxu0 0
        %416 = vmatprep.subr.bf16.mxu0 0
        %417 = vmatpush1.bf16.msra.mxu0 0
        %418 = vmatprep.subr.bf16.mxu0 0
        %419 = vmatpush1.bf16.msra.mxu0 0
        %420 = vmatprep.mubr.bf16.mxu0 0
        %421 = vmatmul.mubr.bf16.gmra.mrb[0].mxu0 %v361
        %v422 = vpop.f32.mrb[0].mxu0
        %v423 = vadd.f32 %v257, %v422
        %v424 = vpop.f32.mrb[0].mxu0
        %v425 = vadd.f32 %v257, %v424
        %v426 = vpop.f32.mrb[0].mxu0
        %v427 = vpop.f32.mrb[0].mxu0
        %428 = vdwg.mxu0
        %429 = vmatprep.subr.bf16.mxu0 %v322
        %430 = vmatpush1.bf16.msra.mxu0 %v321
        %431 = vmatprep.subr.bf16.mxu0 %v330
        %432 = vmatpush1.bf16.msra.mxu0 %v329
        %433 = vmatprep.subr.bf16.mxu0 %v374
        %434 = vmatpush1.bf16.msra.mxu0 %v371
        %435 = vmatprep.subr.bf16.mxu0 0
        %436 = vmatpush1.bf16.msra.mxu0 0
        %437 = vmatprep.subr.bf16.mxu0 0
        %438 = vmatpush1.bf16.msra.mxu0 0
        %439 = vmatprep.subr.bf16.mxu0 0
        %440 = vmatpush1.bf16.msra.mxu0 0
        %441 = vmatprep.subr.bf16.mxu0 0
        %442 = vmatpush1.bf16.msra.mxu0 0
        %443 = vmatprep.subr.bf16.mxu0 0
        %444 = vmatpush1.bf16.msra.mxu0 0
        %445 = vmatprep.subr.bf16.mxu0 0
        %446 = vmatpush1.bf16.msra.mxu0 0
        %447 = vmatprep.subr.bf16.mxu0 0
        %448 = vmatpush1.bf16.msra.mxu0 0
        %449 = vmatprep.subr.bf16.mxu0 0
        %450 = vmatpush1.bf16.msra.mxu0 0
        %451 = vmatprep.subr.bf16.mxu0 0
        %452 = vmatpush1.bf16.msra.mxu0 0
        %453 = vmatprep.subr.bf16.mxu0 0
        %454 = vmatpush1.bf16.msra.mxu0 0
        %455 = vmatprep.subr.bf16.mxu0 0
        %456 = vmatpush1.bf16.msra.mxu0 0
        %457 = vmatprep.subr.bf16.mxu0 0
        %458 = vmatpush1.bf16.msra.mxu0 0
        %459 = vmatprep.subr.bf16.mxu0 0
        %460 = vmatpush1.bf16.msra.mxu0 0
        %461 = vmatprep.mubr.bf16.mxu0 0
        %462 = vmatmul.mubr.bf16.gmra.mrb[0].mxu0 %v361
        %v463 = vpop.f32.mrb[0].mxu0
        %v464 = vadd.f32 %v257, %v463
        %v465 = vpop.f32.mrb[0].mxu0
        %v466 = vadd.f32 %v257, %v465
        %v467 = vpop.f32.mrb[0].mxu0
        %v468 = vpop.f32.mrb[0].mxu0
        %469 = vdwg.mxu0
        %470 = vmatprep.subr.bf16.mxu0 %v324
        %471 = vmatpush1.bf16.msra.mxu0 %v323
        %472 = vmatprep.subr.bf16.mxu0 %v332
        %473 = vmatpush1.bf16.msra.mxu0 %v331
        %474 = vmatprep.subr.bf16.mxu0 %v380
        %475 = vmatpush1.bf16.msra.mxu0 %v377
        %476 = vmatprep.subr.bf16.mxu0 0
        %477 = vmatpush1.bf16.msra.mxu0 0
        %478 = vmatprep.subr.bf16.mxu0 0
        %479 = vmatpush1.bf16.msra.mxu0 0
        %480 = vmatprep.subr.bf16.mxu0 0
        %481 = vmatpush1.bf16.msra.mxu0 0
        %482 = vmatprep.subr.bf16.mxu0 0
        %483 = vmatpush1.bf16.msra.mxu0 0
        %484 = vmatprep.subr.bf16.mxu0 0
        %485 = vmatpush1.bf16.msra.mxu0 0
        %486 = vmatprep.subr.bf16.mxu0 0
        %487 = vmatpush1.bf16.msra.mxu0 0
        %488 = vmatprep.subr.bf16.mxu0 0
        %489 = vmatpush1.bf16.msra.mxu0 0
        %490 = vmatprep.subr.bf16.mxu0 0
        %491 = vmatpush1.bf16.msra.mxu0 0
        %492 = vmatprep.subr.bf16.mxu0 0
        %493 = vmatpush1.bf16.msra.mxu0 0
        %494 = vmatprep.subr.bf16.mxu0 0
        %495 = vmatpush1.bf16.msra.mxu0 0
        %496 = vmatprep.subr.bf16.mxu0 0
        %497 = vmatpush1.bf16.msra.mxu0 0
        %498 = vmatprep.subr.bf16.mxu0 0
        %499 = vmatpush1.bf16.msra.mxu0 0
        %500 = vmatprep.subr.bf16.mxu0 0
        %501 = vmatpush1.bf16.msra.mxu0 0
        %502 = vmatprep.mubr.bf16.mxu0 0
        %503 = vmatmul.mubr.bf16.gmra.mrb[0].mxu0 %v361
        %v504 = vpop.f32.mrb[0].mxu0
        %v505 = vadd.f32 %v257, %v504
        %v506 = vpop.f32.mrb[0].mxu0
        %v507 = vadd.f32 %v257, %v506
        %v508 = vpop.f32.mrb[0].mxu0
        %v509 = vpop.f32.mrb[0].mxu0
        %510 = vdwg.mxu0
        %511 = vmatprep.subr.bf16.mxu0 %v326
        %512 = vmatpush1.bf16.msra.mxu0 %v325
        %513 = vmatprep.subr.bf16.mxu0 %v334
        %514 = vmatpush1.bf16.msra.mxu0 %v333
        %515 = vmatprep.subr.bf16.mxu0 %v386
        %516 = vmatpush1.bf16.msra.mxu0 %v383
        %517 = vmatprep.subr.bf16.mxu0 0
        %518 = vmatpush1.bf16.msra.mxu0 0
        %519 = vmatprep.subr.bf16.mxu0 0
        %520 = vmatpush1.bf16.msra.mxu0 0
        %521 = vmatprep.subr.bf16.mxu0 0
        %522 = vmatpush1.bf16.msra.mxu0 0
        %523 = vmatprep.subr.bf16.mxu0 0
        %524 = vmatpush1.bf16.msra.mxu0 0
        %525 = vmatprep.subr.bf16.mxu0 0
        %526 = vmatpush1.bf16.msra.mxu0 0
        %527 = vmatprep.subr.bf16.mxu0 0
        %528 = vmatpush1.bf16.msra.mxu0 0
        %529 = vmatprep.subr.bf16.mxu0 0
        %530 = vmatpush1.bf16.msra.mxu0 0
        %531 = vmatprep.subr.bf16.mxu0 0
        %532 = vmatpush1.bf16.msra.mxu0 0
        %533 = vmatprep.subr.bf16.mxu0 0
        %534 = vmatpush1.bf16.msra.mxu0 0
        %535 = vmatprep.subr.bf16.mxu0 0
        %536 = vmatpush1.bf16.msra.mxu0 0
        %537 = vmatprep.subr.bf16.mxu0 0
        %538 = vmatpush1.bf16.msra.mxu0 0
        %539 = vmatprep.subr.bf16.mxu0 0
        %540 = vmatpush1.bf16.msra.mxu0 0
        %541 = vmatprep.subr.bf16.mxu0 0
        %542 = vmatpush1.bf16.msra.mxu0 0
        %543 = vmatprep.mubr.bf16.mxu0 0
        %544 = vmatmul.mubr.bf16.gmra.mrb[0].mxu0 %v361
        %v545 = vpop.f32.mrb[0].mxu0
        %v546 = vadd.f32 %v257, %v545
        %v547 = vpop.f32.mrb[0].mxu0
        %v548 = vadd.f32 %v257, %v547
        %v549 = vpop.f32.mrb[0].mxu0
        %v550 = vpop.f32.mrb[0].mxu0
        %551 = vdwg.mxu0
        %v552 = vxor.u32 %v423, 2147483648
        %v553 = vxor.u32 %v425, 2147483648
        %v554 = vxor.u32 %v464, 2147483648
        %v555 = vxor.u32 %v466, 2147483648
        %v556 = vxor.u32 %v505, 2147483648
        %v557 = vxor.u32 %v507, 2147483648
        %v558 = vxor.u32 %v546, 2147483648
        %v559 = vxor.u32 %v548, 2147483648
        %v560 = vmul.f32 %v552, 1.442695
        %v561 = vpow.pop %v560
        %v562 = vmul.f32 %v553, 1.442695
        %v563 = vpow.pop %v562
        %v564 = vmul.f32 %v554, 1.442695
        %v565 = vpow.pop %v564
        %v566 = vmul.f32 %v555, 1.442695
        %v567 = vpow.pop %v566
        %v568 = vmul.f32 %v556, 1.442695
        %v569 = vpow.pop %v568
        %v570 = vmul.f32 %v557, 1.442695
        %v571 = vpow.pop %v570
        %v572 = vmul.f32 %v558, 1.442695
        %v573 = vpow.pop %v572
        %v574 = vmul.f32 %v559, 1.442695
        %v575 = vpow.pop %v574
        %v576 = vadd.f32 %v561, 1.0
        %v577 = vadd.f32 %v563, 1.0
        %v578 = vadd.f32 %v565, 1.0
        %v579 = vadd.f32 %v567, 1.0
        %v580 = vadd.f32 %v569, 1.0
        %v581 = vadd.f32 %v571, 1.0
        %v582 = vadd.f32 %v573, 1.0
        %v583 = vadd.f32 %v575, 1.0
        %v584 = vrcp.pop %v576
        %v585 = vmul.f32 1.0, %v584
        %v586 = vrcp.pop %v577
        %v587 = vmul.f32 1.0, %v586
        %v588 = vrcp.pop %v578
        %v589 = vmul.f32 1.0, %v588
        %v590 = vrcp.pop %v579
        %v591 = vmul.f32 1.0, %v590
        %v592 = vrcp.pop %v580
        %v593 = vmul.f32 1.0, %v592
        %v594 = vrcp.pop %v581
        %v595 = vmul.f32 1.0, %v594
        %v596 = vrcp.pop %v582
        %v597 = vmul.f32 1.0, %v596
        %v598 = vrcp.pop %v583
        %v599 = vmul.f32 1.0, %v598
        %v600 = vmul.f32 %v423, %v585
        %v601 = vmul.f32 %v425, %v587
        %v602 = vmul.f32 %v464, %v589
        %v603 = vmul.f32 %v466, %v591
        %v604 = vmul.f32 %v505, %v593
        %v605 = vmul.f32 %v507, %v595
        %v606 = vmul.f32 %v546, %v597
        %v607 = vmul.f32 %v548, %v599
        %v616 = vcombine.low %v600, %v601
        %v617 = vcombine.low %v602, %v603
        %v618 = vcombine.low %v604, %v605
        %v619 = vcombine.low %v606, %v607
        %624 = vst [vmem:[%s229] sm:$0xff] %v616
        %625 = vst [vmem:[%s229 + $0x8] sm:$0xff] %v617
        %626 = vst [vmem:[%s229 + $0x10] sm:$0xff] %v618
        %627 = vst [vmem:[%s229 + $0x18] sm:$0xff] %v619
        %s628 = smul.u32 8, %s14
        %p629 = scmp.lt.s32.totalorder %s628, 15
        %s630 = scalar_select %p629, %s628, 15
        %s631 = smul.addr %s630, 4
        %s632 = scalar_lea.vmem %s3, %s631
        // Predicated region
        $region56: #{nvae_forward.27} parent=50 // pred_check
          %p633 = pneg %p100
        $region57: #{nvae_forward.27} parent=50 // pred_check_branch
          %635 = sbr.rel (%p633) target = $region59
        $region58: #{nvae_forward.27} parent=50 // pred_region
          %s636 = smul.u32 8, %s14
        $region59: #{nvae_forward.27} parent=50 // pred_fallthru
          _
      $region51: #{nvae_forward.27} parent=5 // pred_fallthru
        _
      %p637 = scmp.le.s32.totalorder 2, %s9
      // Predicated region
      $region60: #{nvae_forward.27} parent=5 // pred_check
        %p638 = pneg %p637
      $region61: #{nvae_forward.27} parent=5 // pred_check_branch
        %640 = sbr.rel (%p638) target = $region63
      $region62: #{nvae_forward.27} parent=5 // pred_region
        %s641 = ssub.s32 %s9, 2
        // Predicated region
        $region64: #{nvae_forward.27} parent=62 // pred_check
          %p642 = pneg %p106
        $region65: #{nvae_forward.27} parent=62 // pred_check_branch
          %644 = sbr.rel (%p642) target = $region67
        $region66: #{nvae_forward.27} parent=62 // pred_region
          %s645 = smul.u32 8, %s15
          %p646 = scmp.lt.s32.totalorder %s645, 15
          %s647 = scalar_select %p646, %s645, 15
          %s648 = smul.addr %s647, 4
          %s649 = scalar_lea.vmem %s3, %s648
        $region67: #{nvae_forward.27} parent=62 // pred_fallthru
          _
      $region63: #{nvae_forward.27} parent=5 // pred_fallthru
        _
    $region6: #{nvae_forward.27} parent=1 // loop_footer
      %s13 = sadd.s32 1, %s9
    $region7: #{nvae_forward.27} parent=1 // loop_footer_branch
      %8 = sbr.rel target = $region3
    $region8: #{nvae_forward.27} parent=1 // loop_exit
      _

// kernel: nvae_forward.28
$region0: #{nvae_forward.28}
  #allocation0 [shape = 'u32[]', space=smem, size = 0x4, offset = 0x4, fixed_abs, tag = 'smem constant byte address 0x4 - core index']
  #allocation1 [shape = 'u32[144,128]{1,0:T(1,128)}', space=vmem, size = 0x12000, scoped, tag = 'internal scratch']
  %s0 = inlined_call_operand.vmem [shape: bf16[3,36], index: 0, kind: input, shape index: {}]
  %s1 = inlined_call_operand.vmem [shape: bf16[36,2048], index: 1, kind: input, shape index: {}]
  %s2 = inlined_call_operand.vmem [shape: f32[3,1], index: 2, kind: input, shape index: {}]
  %s3 = inlined_call_operand.vmem [shape: f32[3,2048], index: 3, kind: output, shape index: {}]
  %s4 = sld [smem:[#allocation0]]
  $region68: #{nvae_forward.28} parent=0
    _
  %s6 = ssub.s32 1, %s4
  %s7 = scalar_select 0, %s6, %s4
  $region1: #{nvae_forward.28} parent=0
    #allocation2 [shape = 'u8[163840]{0}', space=vmem, size = 0x28000, scoped, tag = 'input window, operand 1']
    loop: start=0, step=1, limit=4
    $region2: #{nvae_forward.28} parent=1 // loop_pre_header
      _
    $region3: #{nvae_forward.28} parent=1 // loop_header
      %s9 = sphi 0, %s13
      %p10 = scmp.ge.s32.totalorder %s9, 4
      %s17 = sphi 0, %s17
      %s19 = sphi 0, %s17
      %s20 = sphi 0, %s19
      %s34 = sphi 0, %s20
      %s40 = sphi 0, %s42
      %s43 = sphi 0, %s40
      %s44 = sphi 0, %s43
      %s60 = sphi 0, %s44
      %s64 = sphi 0, %s64
      %s66 = sphi 0, %s64
      %s67 = sphi 0, %s66
      %s81 = sphi 0, %s67
      %s87 = sphi 0, %s89
      %s90 = sphi 0, %s87
      %s91 = sphi 0, %s90
      %s107 = sphi 0, %s91
    $region4: #{nvae_forward.28} parent=1 // loop_header_branch
      %12 = sbr.rel (%p10) target = $region8
    $region5: #{nvae_forward.28} parent=1 // loop_body
      %s14 = ssub.s32 %s9, 1
      %s15 = ssub.s32 %s9, 2
      %s16 = sadd.s32 %s9, 1
      %s18 = sadd.s32 %s17, 1
      %p21 = scmp.eq.s32.totalorder %s9, 1
      %p22 = scmp.ne.s32.totalorder %s17, %s19
      %p23 = scmp.eq.s32.totalorder %s9, 0
      %p24 = por %p22, %p23
      %p25 = scmp.ne.s32.totalorder %s17, %s19
      %p26 = scmp.eq.s32.totalorder %s14, 1
      %p27 = por %p25, %p26
      %p28 = scmp.ne.s32.totalorder %s19, %s20
      %p29 = scmp.eq.s32.totalorder %s14, 0
      %p30 = por %p28, %p29
      %p31 = scmp.ne.s32.totalorder %s19, %s20
      %p32 = scmp.eq.s32.totalorder %s15, 1
      %p33 = por %p31, %p32
      %p35 = scmp.ne.s32.totalorder %s20, %s34
      %p36 = scmp.eq.s32.totalorder %s15, 0
      %p37 = por %p35, %p36
      %s38 = ssub.s32 %s9, %s16
      %p39 = scmp.eq.s32.totalorder %s38, 0
      %s41 = sadd.s32 %s40, 1
      %s42 = scalar_select %p39, %s40, %s41
      %p45 = pneg %p39
      %p46 = scmp.eq.s32.totalorder %s9, 1
      %p47 = por %p45, %p46
      %p48 = scmp.ne.s32.totalorder %s40, %s43
      %p49 = scmp.eq.s32.totalorder %s9, 0
      %p50 = por %p48, %p49
      %p51 = scmp.ne.s32.totalorder %s40, %s43
      %p52 = scmp.eq.s32.totalorder %s14, 1
      %p53 = por %p51, %p52
      %p54 = scmp.ne.s32.totalorder %s43, %s44
      %p55 = scmp.eq.s32.totalorder %s14, 0
      %p56 = por %p54, %p55
      %p57 = scmp.ne.s32.totalorder %s43, %s44
      %p58 = scmp.eq.s32.totalorder %s15, 1
      %p59 = por %p57, %p58
      %p61 = scmp.ne.s32.totalorder %s44, %s60
      %p62 = scmp.eq.s32.totalorder %s15, 0
      %p63 = por %p61, %p62
      %s65 = sadd.s32 %s64, 1
      %p68 = scmp.eq.s32.totalorder %s9, 1
      %p69 = scmp.ne.s32.totalorder %s64, %s66
      %p70 = scmp.eq.s32.totalorder %s9, 0
      %p71 = por %p69, %p70
      %p72 = scmp.ne.s32.totalorder %s64, %s66
      %p73 = scmp.eq.s32.totalorder %s14, 1
      %p74 = por %p72, %p73
      %p75 = scmp.ne.s32.totalorder %s66, %s67
      %p76 = scmp.eq.s32.totalorder %s14, 0
      %p77 = por %p75, %p76
      %p78 = scmp.ne.s32.totalorder %s66, %s67
      %p79 = scmp.eq.s32.totalorder %s15, 1
      %p80 = por %p78, %p79
      %p82 = scmp.ne.s32.totalorder %s67, %s81
      %p83 = scmp.eq.s32.totalorder %s15, 0
      %p84 = por %p82, %p83
      %s85 = ssub.s32 %s9, %s16
      %p86 = scmp.eq.s32.totalorder %s85, 0
      %s88 = sadd.s32 %s87, 1
      %s89 = scalar_select %p86, %s87, %s88
      %p92 = pneg %p86
      %p93 = scmp.eq.s32.totalorder %s9, 1
      %p94 = por %p92, %p93
      %p95 = scmp.ne.s32.totalorder %s87, %s90
      %p96 = scmp.eq.s32.totalorder %s9, 0
      %p97 = por %p95, %p96
      %p98 = scmp.ne.s32.totalorder %s87, %s90
      %p99 = scmp.eq.s32.totalorder %s14, 1
      %p100 = por %p98, %p99
      %p101 = scmp.ne.s32.totalorder %s90, %s91
      %p102 = scmp.eq.s32.totalorder %s14, 0
      %p103 = por %p101, %p102
      %p104 = scmp.ne.s32.totalorder %s90, %s91
      %p105 = scmp.eq.s32.totalorder %s15, 1
      %p106 = por %p104, %p105
      %p108 = scmp.ne.s32.totalorder %s91, %s107
      %p109 = scmp.eq.s32.totalorder %s15, 0
      %p110 = por %p108, %p109
      %p111 = scmp.le.s32.totalorder 1, %s9
      %p112 = scmp.lt.s32.totalorder %s9, 3
      %p113 = pnand %p111, %p112
      %p114 = pneg %p113
      // Predicated region
      $region9: #{nvae_forward.28} parent=5 // pred_check
        _
      $region10: #{nvae_forward.28} parent=5 // pred_check_branch
        %116 = sbr.rel (%p113) target = $region12
      $region11: #{nvae_forward.28} parent=5 // pred_region
        %s117 = ssub.s32 %s9, 1
        // Predicated region
        $region13: #{nvae_forward.28} parent=11 // pred_check
          %p118 = pneg %p30
        $region14: #{nvae_forward.28} parent=11 // pred_check_branch
          %120 = sbr.rel (%p118) target = $region16
        $region15: #{nvae_forward.28} parent=11 // pred_region
          _
        $region16: #{nvae_forward.28} parent=11 // pred_fallthru
          _
        // Predicated region
        $region17: #{nvae_forward.28} parent=11 // pred_check
          %p121 = pneg %p77
        $region18: #{nvae_forward.28} parent=11 // pred_check_branch
          %123 = sbr.rel (%p121) target = $region20
        $region19: #{nvae_forward.28} parent=11 // pred_region
          _
        $region20: #{nvae_forward.28} parent=11 // pred_fallthru
          _
      $region12: #{nvae_forward.28} parent=5 // pred_fallthru
        _
      %p124 = scmp.lt.s32.totalorder %s9, 2
      // Predicated region
      $region21: #{nvae_forward.28} parent=5 // pred_check
        %p125 = pneg %p124
      $region22: #{nvae_forward.28} parent=5 // pred_check_branch
        %127 = sbr.rel (%p125) target = $region24
      $region23: #{nvae_forward.28} parent=5 // pred_region
        // Predicated region
        $region25: #{nvae_forward.28} parent=23 // pred_check
          %p128 = pneg %p50
        $region26: #{nvae_forward.28} parent=23 // pred_check_branch
          %130 = sbr.rel (%p128) target = $region28
        $region27: #{nvae_forward.28} parent=23 // pred_region
          %s131 = sand.u32 %s40, 1
          %s132 = sand.u32 %s40, 1
          %s133 = smul.addr %s132, 160
          %s134 = scalar_lea.vmem [#allocation2], %s133
          %s135 = smul.u32 8, %s9
          %s136 = smul.addr %s135, 4
          %s137 = scalar_lea.vmem %s1, %s136
          // Predicated region
          $region29: #{nvae_forward.28} parent=27 // pred_check
            _
          $region30: #{nvae_forward.28} parent=27 // pred_check_branch
            %139 = sbr.rel (0) target = $region32
          $region31: #{nvae_forward.28} parent=27 // pred_region
            // Predicated region
            $region33: #{nvae_forward.28} parent=31 // pred_check
              _
            $region34: #{nvae_forward.28} parent=31 // pred_check_branch
              %141 = sbr.rel (0) target = $region36
            $region35: #{nvae_forward.28} parent=31 // pred_region
              loop: start=0, step=1, limit=1
              $region37: #{nvae_forward.28} parent=35 // loop_pre_header
                _
              $region38: #{nvae_forward.28} parent=35 // loop_header
                %s143 = sphi 0, %s147
                %p144 = scmp.ge.s32.totalorder %s143, 1
                %s148 = sphi %s137, %s137
                %s149 = sphi %s134, %s134
              $region39: #{nvae_forward.28} parent=35 // loop_header_branch
                %146 = sbr.rel (%p144) target = $region43
              $region40: #{nvae_forward.28} parent=35 // loop_body
                %v150 = vld [vmem:[%s148] sm:$0xff]
                %151 = vst [vmem:[%s149] sm:$0xff] %v150
                %v152 = vld [vmem:[%s148 + $0x8] sm:$0xff]
                %153 = vst [vmem:[%s149 + $0x8] sm:$0xff] %v152
                %v154 = vld [vmem:[%s148 + $0x10] sm:$0xff]
                %155 = vst [vmem:[%s149 + $0x10] sm:$0xff] %v154
                %v156 = vld [vmem:[%s148 + $0x18] sm:$0xff]
                %157 = vst [vmem:[%s149 + $0x18] sm:$0xff] %v156
                %v158 = vld [vmem:[%s148 + $0x40] sm:$0xff]
                %159 = vst [vmem:[%s149 + $0x20] sm:$0xff] %v158
                %v160 = vld [vmem:[%s148 + $0x48] sm:$0xff]
                %161 = vst [vmem:[%s149 + $0x28] sm:$0xff] %v160
                %v162 = vld [vmem:[%s148 + $0x50] sm:$0xff]
                %163 = vst [vmem:[%s149 + $0x30] sm:$0xff] %v162
                %v164 = vld [vmem:[%s148 + $0x58] sm:$0xff]
                %165 = vst [vmem:[%s149 + $0x38] sm:$0xff] %v164
                %v166 = vld [vmem:[%s148 + $0x80] sm:$0xff]
                %167 = vst [vmem:[%s149 + $0x40] sm:$0xff] %v166
                %v168 = vld [vmem:[%s148 + $0x88] sm:$0xff]
                %169 = vst [vmem:[%s149 + $0x48] sm:$0xff] %v168
                %v170 = vld [vmem:[%s148 + $0x90] sm:$0xff]
                %171 = vst [vmem:[%s149 + $0x50] sm:$0xff] %v170
                %v172 = vld [vmem:[%s148 + $0x98] sm:$0xff]
                %173 = vst [vmem:[%s149 + $0x58] sm:$0xff] %v172
                %v174 = vld [vmem:[%s148 + $0xc0] sm:$0xff]
                %175 = vst [vmem:[%s149 + $0x60] sm:$0xff] %v174
                %v176 = vld [vmem:[%s148 + $0xc8] sm:$0xff]
                %177 = vst [vmem:[%s149 + $0x68] sm:$0xff] %v176
                %v178 = vld [vmem:[%s148 + $0xd0] sm:$0xff]
                %179 = vst [vmem:[%s149 + $0x70] sm:$0xff] %v178
                %v180 = vld [vmem:[%s148 + $0xd8] sm:$0xff]
                %181 = vst [vmem:[%s149 + $0x78] sm:$0xff] %v180
                %v182 = vld [vmem:[%s148 + $0x100] sm:$0xff]
                %183 = vst [vmem:[%s149 + $0x80] sm:$0xff] %v182
                %v184 = vld [vmem:[%s148 + $0x108] sm:$0xff]
                %185 = vst [vmem:[%s149 + $0x88] sm:$0xff] %v184
                %v186 = vld [vmem:[%s148 + $0x110] sm:$0xff]
                %187 = vst [vmem:[%s149 + $0x90] sm:$0xff] %v186
                %v188 = vld [vmem:[%s148 + $0x118] sm:$0xff]
                %189 = vst [vmem:[%s149 + $0x98] sm:$0xff] %v188
              $region41: #{nvae_forward.28} parent=35 // loop_footer
                %s147 = sadd.s32 1, %s143
              $region42: #{nvae_forward.28} parent=35 // loop_footer_branch
                %142 = sbr.rel target = $region38
              $region43: #{nvae_forward.28} parent=35 // loop_exit
                _
            $region36: #{nvae_forward.28} parent=31 // pred_fallthru
              _
            // Predicated region
            $region44: #{nvae_forward.28} parent=31 // pred_check
              _
            $region45: #{nvae_forward.28} parent=31 // pred_check_branch
              %191 = sbr.rel target = $region47
            $region46: #{nvae_forward.28} parent=31 // pred_region
              _
            $region47: #{nvae_forward.28} parent=31 // pred_fallthru
              _
          $region32: #{nvae_forward.28} parent=27 // pred_fallthru
            _
          %192 = vnop
        $region28: #{nvae_forward.28} parent=23 // pred_fallthru
          _
      $region24: #{nvae_forward.28} parent=5 // pred_fallthru
        _
      %p193 = scmp.le.s32.totalorder 1, %s9
      %p194 = scmp.lt.s32.totalorder %s9, 3
      %p195 = pnand %p193, %p194
      %p196 = pneg %p195
      // Predicated region
      $region48: #{nvae_forward.28} parent=5 // pred_check
        _
      $region49: #{nvae_forward.28} parent=5 // pred_check_branch
        %198 = sbr.rel (%p195) target = $region51
      $region50: #{nvae_forward.28} parent=5 // pred_region
        %s199 = ssub.s32 %s9, 1
        %s200 = sand.u32 %s43, 1
        %s201 = sand.u32 %s43, 1
        %s202 = smul.addr %s201, 160
        %s203 = scalar_lea.vmem [#allocation2], %s202
        // Predicated region
        $region52: #{nvae_forward.28} parent=50 // pred_check
          %p204 = pneg %p56
        $region53: #{nvae_forward.28} parent=50 // pred_check_branch
          %206 = sbr.rel (%p204) target = $region55
        $region54: #{nvae_forward.28} parent=50 // pred_region
          _
        $region55: #{nvae_forward.28} parent=50 // pred_fallthru
          _
        %p207 = pneg %p30
        %p208 = pneg %p27
        %s209 = sand.u32 %s43, 1
        %s210 = sand.u32 %s43, 1
        %s211 = smul.addr %s210, 160
        %s212 = scalar_lea.vmem [#allocation2], %s211
        %p213 = pneg %p56
        %p214 = pneg %p53
        %p215 = pneg %p77
        %p216 = pneg %p74
        %p217 = pneg %p103
        %p218 = pneg %p100
        %s219 = smul.u32 8, %s14
        %p220 = scmp.lt.s32.totalorder %s219, 15
        %s221 = scalar_select %p220, %s219, 15
        %s222 = smul.addr %s221, 4
        %s223 = scalar_lea.vmem %s3, %s222
        %s224 = smul.u32 8, %s14
        %s225 = smul.u32 8, %s14
        %p226 = scmp.lt.s32.totalorder %s225, 15
        %s227 = scalar_select %p226, %s225, 15
        %s228 = smul.addr %s227, 4
        %s229 = scalar_lea.vmem %s3, %s228
        %s230 = smul.u32 8, %s14
        %v232 = vld [vmem:[%s0] sm:$0x3]
        %v233 = vld [vmem:[%s203] sm:$0xff]
        %v234 = vld [vmem:[%s203 + $0x8] sm:$0xff]
        %v235 = vld [vmem:[%s203 + $0x10] sm:$0xff]
        %v236 = vld [vmem:[%s203 + $0x18] sm:$0xff]
        %v237 = vld [vmem:[%s203 + $0x20] sm:$0xff]
        %v238 = vld [vmem:[%s203 + $0x28] sm:$0xff]
        %v239 = vld [vmem:[%s203 + $0x30] sm:$0xff]
        %v240 = vld [vmem:[%s203 + $0x38] sm:$0xff]
        %v241 = vld [vmem:[%s203 + $0x40] sm:$0xff]
        %v242 = vld [vmem:[%s203 + $0x48] sm:$0xff]
        %v243 = vld [vmem:[%s203 + $0x50] sm:$0xff]
        %v244 = vld [vmem:[%s203 + $0x58] sm:$0xff]
        %v245 = vld [vmem:[%s203 + $0x60] sm:$0xff]
        %v246 = vld [vmem:[%s203 + $0x68] sm:$0xff]
        %v247 = vld [vmem:[%s203 + $0x70] sm:$0xff]
        %v248 = vld [vmem:[%s203 + $0x78] sm:$0xff]
        %v249 = vld [vmem:[%s203 + $0x80] sm:$0x33]
        %v250 = vld [vmem:[%s203 + $0x88] sm:$0x33]
        %v251 = vld [vmem:[%s203 + $0x90] sm:$0x33]
        %v252 = vld [vmem:[%s203 + $0x98] sm:$0x33]
        %v253 = vld [vmem:[%s2] sm:$0x7]
        %255 = vset.pattern.permute.xlu0 0
        %256 = vperm.xlu0 %255, %v253
        %v257 = vpop.permute.xlu0 %256
        %v279 = vunpack.c.l.b16 %v233
        %v280 = vunpack.c.h.b16 %v233
        %v281 = vunpack.c.l.b16 %v234
        %v282 = vunpack.c.h.b16 %v234
        %v283 = vunpack.c.l.b16 %v235
        %v284 = vunpack.c.h.b16 %v235
        %v285 = vunpack.c.l.b16 %v236
        %v286 = vunpack.c.h.b16 %v236
        %v287 = vunpack.c.l.b16 %v237
        %v288 = vunpack.c.h.b16 %v237
        %v289 = vunpack.c.l.b16 %v238
        %v290 = vunpack.c.h.b16 %v238
        %v291 = vunpack.c.l.b16 %v239
        %v292 = vunpack.c.h.b16 %v239
        %v293 = vunpack.c.l.b16 %v240
        %v294 = vunpack.c.h.b16 %v240
        %v295 = vunpack.c.l.b16 %v241
        %v296 = vunpack.c.h.b16 %v241
        %v297 = vunpack.c.l.b16 %v242
        %v298 = vunpack.c.h.b16 %v242
        %v299 = vunpack.c.l.b16 %v243
        %v300 = vunpack.c.h.b16 %v243
        %v301 = vunpack.c.l.b16 %v244
        %v302 = vunpack.c.h.b16 %v244
        %v303 = vunpack.c.l.b16 %v245
        %v304 = vunpack.c.h.b16 %v245
        %v305 = vunpack.c.l.b16 %v246
        %v306 = vunpack.c.h.b16 %v246
        %v307 = vunpack.c.l.b16 %v247
        %v308 = vunpack.c.h.b16 %v247
        %v309 = vunpack.c.l.b16 %v248
        %v310 = vunpack.c.h.b16 %v248
        %v311 = vunpack.c.l.b16 %v249
        %v312 = vunpack.c.h.b16 %v249
        %v313 = vunpack.c.l.b16 %v250
        %v314 = vunpack.c.h.b16 %v250
        %v315 = vunpack.c.l.b16 %v251
        %v316 = vunpack.c.h.b16 %v251
        %v317 = vunpack.c.l.b16 %v252
        %v318 = vunpack.c.h.b16 %v252
        %v319 = vpack.c.b16 %v287, %v279
        %v320 = vpack.c.b16 %v288, %v280
        %v321 = vpack.c.b16 %v289, %v281
        %v322 = vpack.c.b16 %v290, %v282
        %v323 = vpack.c.b16 %v291, %v283
        %v324 = vpack.c.b16 %v292, %v284
        %v325 = vpack.c.b16 %v293, %v285
        %v326 = vpack.c.b16 %v294, %v286
        %v327 = vpack.c.b16 %v303, %v295
        %v328 = vpack.c.b16 %v304, %v296
        %v329 = vpack.c.b16 %v305, %v297
        %v330 = vpack.c.b16 %v306, %v298
        %v331 = vpack.c.b16 %v307, %v299
        %v332 = vpack.c.b16 %v308, %v300
        %v333 = vpack.c.b16 %v309, %v301
        %v334 = vpack.c.b16 %v310, %v302
        %v335 = vpack.c.b16 %v311, %v311
        %v336 = vpack.c.b16 %v312, %v312
        %v337 = vpack.c.b16 %v313, %v313
        %v338 = vpack.c.b16 %v314, %v314
        %v339 = vpack.c.b16 %v315, %v315
        %v340 = vpack.c.b16 %v316, %v316
        %v341 = vpack.c.b16 %v317, %v317
        %v342 = vpack.c.b16 %v318, %v318
        %vm359 = vcmask 293888
        %v361 = vsel %vm359, %v232, 0
        %vm363 = vcmask 1041408
        %v365 = vsel %vm363, %v335, 0
        %v368 = vsel %vm363, %v336, 0
        %v371 = vsel %vm363, %v337, 0
        %v374 = vsel %vm363, %v338, 0
        %v377 = vsel %vm363, %v339, 0
        %v380 = vsel %vm363, %v340, 0
        %v383 = vsel %vm363, %v341, 0
        %v386 = vsel %vm363, %v342, 0
        %388 = vmatprep.subr.bf16.mxu0 %v320
        %389 = vmatpush1.bf16.msra.mxu0 %v319
        %390 = vmatprep.subr.bf16.mxu0 %v328
        %391 = vmatpush1.bf16.msra.mxu0 %v327
        %392 = vmatprep.subr.bf16.mxu0 %v368
        %393 = vmatpush1.bf16.msra.mxu0 %v365
        %394 = vmatprep.subr.bf16.mxu0 0
        %395 = vmatpush1.bf16.msra.mxu0 0
        %396 = vmatprep.subr.bf16.mxu0 0
        %397 = vmatpush1.bf16.msra.mxu0 0
        %398 = vmatprep.subr.bf16.mxu0 0
        %399 = vmatpush1.bf16.msra.mxu0 0
        %400 = vmatprep.subr.bf16.mxu0 0
        %401 = vmatpush1.bf16.msra.mxu0 0
        %402 = vmatprep.subr.bf16.mxu0 0
        %403 = vmatpush1.bf16.msra.mxu0 0
        %404 = vmatprep.subr.bf16.mxu0 0
        %405 = vmatpush1.bf16.msra.mxu0 0
        %406 = vmatprep.subr.bf16.mxu0 0
        %407 = vmatpush1.bf16.msra.mxu0 0
        %408 = vmatprep.subr.bf16.mxu0 0
        %409 = vmatpush1.bf16.msra.mxu0 0
        %410 = vmatprep.subr.bf16.mxu0 0
        %411 = vmatpush1.bf16.msra.mxu0 0
        %412 = vmatprep.subr.bf16.mxu0 0
        %413 = vmatpush1.bf16.msra.mxu0 0
        %414 = vmatprep.subr.bf16.mxu0 0
        %415 = vmatpush1.bf16.msra.mxu0 0
        %416 = vmatprep.subr.bf16.mxu0 0
        %417 = vmatpush1.bf16.msra.mxu0 0
        %418 = vmatprep.subr.bf16.mxu0 0
        %419 = vmatpush1.bf16.msra.mxu0 0
        %420 = vmatprep.mubr.bf16.mxu0 0
        %421 = vmatmul.mubr.bf16.gmra.mrb[0].mxu0 %v361
        %v422 = vpop.f32.mrb[0].mxu0
        %v423 = vadd.f32 %v257, %v422
        %v424 = vpop.f32.mrb[0].mxu0
        %v425 = vadd.f32 %v257, %v424
        %v426 = vpop.f32.mrb[0].mxu0
        %v427 = vpop.f32.mrb[0].mxu0
        %428 = vdwg.mxu0
        %429 = vmatprep.subr.bf16.mxu0 %v322
        %430 = vmatpush1.bf16.msra.mxu0 %v321
        %431 = vmatprep.subr.bf16.mxu0 %v330
        %432 = vmatpush1.bf16.msra.mxu0 %v329
        %433 = vmatprep.subr.bf16.mxu0 %v374
        %434 = vmatpush1.bf16.msra.mxu0 %v371
        %435 = vmatprep.subr.bf16.mxu0 0
        %436 = vmatpush1.bf16.msra.mxu0 0
        %437 = vmatprep.subr.bf16.mxu0 0
        %438 = vmatpush1.bf16.msra.mxu0 0
        %439 = vmatprep.subr.bf16.mxu0 0
        %440 = vmatpush1.bf16.msra.mxu0 0
        %441 = vmatprep.subr.bf16.mxu0 0
        %442 = vmatpush1.bf16.msra.mxu0 0
        %443 = vmatprep.subr.bf16.mxu0 0
        %444 = vmatpush1.bf16.msra.mxu0 0
        %445 = vmatprep.subr.bf16.mxu0 0
        %446 = vmatpush1.bf16.msra.mxu0 0
        %447 = vmatprep.subr.bf16.mxu0 0
        %448 = vmatpush1.bf16.msra.mxu0 0
        %449 = vmatprep.subr.bf16.mxu0 0
        %450 = vmatpush1.bf16.msra.mxu0 0
        %451 = vmatprep.subr.bf16.mxu0 0
        %452 = vmatpush1.bf16.msra.mxu0 0
        %453 = vmatprep.subr.bf16.mxu0 0
        %454 = vmatpush1.bf16.msra.mxu0 0
        %455 = vmatprep.subr.bf16.mxu0 0
        %456 = vmatpush1.bf16.msra.mxu0 0
        %457 = vmatprep.subr.bf16.mxu0 0
        %458 = vmatpush1.bf16.msra.mxu0 0
        %459 = vmatprep.subr.bf16.mxu0 0
        %460 = vmatpush1.bf16.msra.mxu0 0
        %461 = vmatprep.mubr.bf16.mxu0 0
        %462 = vmatmul.mubr.bf16.gmra.mrb[0].mxu0 %v361
        %v463 = vpop.f32.mrb[0].mxu0
        %v464 = vadd.f32 %v257, %v463
        %v465 = vpop.f32.mrb[0].mxu0
        %v466 = vadd.f32 %v257, %v465
        %v467 = vpop.f32.mrb[0].mxu0
        %v468 = vpop.f32.mrb[0].mxu0
        %469 = vdwg.mxu0
        %470 = vmatprep.subr.bf16.mxu0 %v324
        %471 = vmatpush1.bf16.msra.mxu0 %v323
        %472 = vmatprep.subr.bf16.mxu0 %v332
        %473 = vmatpush1.bf16.msra.mxu0 %v331
        %474 = vmatprep.subr.bf16.mxu0 %v380
        %475 = vmatpush1.bf16.msra.mxu0 %v377
        %476 = vmatprep.subr.bf16.mxu0 0
        %477 = vmatpush1.bf16.msra.mxu0 0
        %478 = vmatprep.subr.bf16.mxu0 0
        %479 = vmatpush1.bf16.msra.mxu0 0
        %480 = vmatprep.subr.bf16.mxu0 0
        %481 = vmatpush1.bf16.msra.mxu0 0
        %482 = vmatprep.subr.bf16.mxu0 0
        %483 = vmatpush1.bf16.msra.mxu0 0
        %484 = vmatprep.subr.bf16.mxu0 0
        %485 = vmatpush1.bf16.msra.mxu0 0
        %486 = vmatprep.subr.bf16.mxu0 0
        %487 = vmatpush1.bf16.msra.mxu0 0
        %488 = vmatprep.subr.bf16.mxu0 0
        %489 = vmatpush1.bf16.msra.mxu0 0
        %490 = vmatprep.subr.bf16.mxu0 0
        %491 = vmatpush1.bf16.msra.mxu0 0
        %492 = vmatprep.subr.bf16.mxu0 0
        %493 = vmatpush1.bf16.msra.mxu0 0
        %494 = vmatprep.subr.bf16.mxu0 0
        %495 = vmatpush1.bf16.msra.mxu0 0
        %496 = vmatprep.subr.bf16.mxu0 0
        %497 = vmatpush1.bf16.msra.mxu0 0
        %498 = vmatprep.subr.bf16.mxu0 0
        %499 = vmatpush1.bf16.msra.mxu0 0
        %500 = vmatprep.subr.bf16.mxu0 0
        %501 = vmatpush1.bf16.msra.mxu0 0
        %502 = vmatprep.mubr.bf16.mxu0 0
        %503 = vmatmul.mubr.bf16.gmra.mrb[0].mxu0 %v361
        %v504 = vpop.f32.mrb[0].mxu0
        %v505 = vadd.f32 %v257, %v504
        %v506 = vpop.f32.mrb[0].mxu0
        %v507 = vadd.f32 %v257, %v506
        %v508 = vpop.f32.mrb[0].mxu0
        %v509 = vpop.f32.mrb[0].mxu0
        %510 = vdwg.mxu0
        %511 = vmatprep.subr.bf16.mxu0 %v326
        %512 = vmatpush1.bf16.msra.mxu0 %v325
        %513 = vmatprep.subr.bf16.mxu0 %v334
        %514 = vmatpush1.bf16.msra.mxu0 %v333
        %515 = vmatprep.subr.bf16.mxu0 %v386
        %516 = vmatpush1.bf16.msra.mxu0 %v383
        %517 = vmatprep.subr.bf16.mxu0 0
        %518 = vmatpush1.bf16.msra.mxu0 0
        %519 = vmatprep.subr.bf16.mxu0 0
        %520 = vmatpush1.bf16.msra.mxu0 0
        %521 = vmatprep.subr.bf16.mxu0 0
        %522 = vmatpush1.bf16.msra.mxu0 0
        %523 = vmatprep.subr.bf16.mxu0 0
        %524 = vmatpush1.bf16.msra.mxu0 0
        %525 = vmatprep.subr.bf16.mxu0 0
        %526 = vmatpush1.bf16.msra.mxu0 0
        %527 = vmatprep.subr.bf16.mxu0 0
        %528 = vmatpush1.bf16.msra.mxu0 0
        %529 = vmatprep.subr.bf16.mxu0 0
        %530 = vmatpush1.bf16.msra.mxu0 0
        %531 = vmatprep.subr.bf16.mxu0 0
        %532 = vmatpush1.bf16.msra.mxu0 0
        %533 = vmatprep.subr.bf16.mxu0 0
        %534 = vmatpush1.bf16.msra.mxu0 0
        %535 = vmatprep.subr.bf16.mxu0 0
        %536 = vmatpush1.bf16.msra.mxu0 0
        %537 = vmatprep.subr.bf16.mxu0 0
        %538 = vmatpush1.bf16.msra.mxu0 0
        %539 = vmatprep.subr.bf16.mxu0 0
        %540 = vmatpush1.bf16.msra.mxu0 0
        %541 = vmatprep.subr.bf16.mxu0 0
        %542 = vmatpush1.bf16.msra.mxu0 0
        %543 = vmatprep.mubr.bf16.mxu0 0
        %544 = vmatmul.mubr.bf16.gmra.mrb[0].mxu0 %v361
        %v545 = vpop.f32.mrb[0].mxu0
        %v546 = vadd.f32 %v257, %v545
        %v547 = vpop.f32.mrb[0].mxu0
        %v548 = vadd.f32 %v257, %v547
        %v549 = vpop.f32.mrb[0].mxu0
        %v550 = vpop.f32.mrb[0].mxu0
        %551 = vdwg.mxu0
        %v552 = vxor.u32 %v423, 2147483648
        %v553 = vxor.u32 %v425, 2147483648
        %v554 = vxor.u32 %v464, 2147483648
        %v555 = vxor.u32 %v466, 2147483648
        %v556 = vxor.u32 %v505, 2147483648
        %v557 = vxor.u32 %v507, 2147483648
        %v558 = vxor.u32 %v546, 2147483648
        %v559 = vxor.u32 %v548, 2147483648
        %v560 = vmul.f32 %v552, 1.442695
        %v561 = vpow.pop %v560
        %v562 = vmul.f32 %v553, 1.442695
        %v563 = vpow.pop %v562
        %v564 = vmul.f32 %v554, 1.442695
        %v565 = vpow.pop %v564
        %v566 = vmul.f32 %v555, 1.442695
        %v567 = vpow.pop %v566
        %v568 = vmul.f32 %v556, 1.442695
        %v569 = vpow.pop %v568
        %v570 = vmul.f32 %v557, 1.442695
        %v571 = vpow.pop %v570
        %v572 = vmul.f32 %v558, 1.442695
        %v573 = vpow.pop %v572
        %v574 = vmul.f32 %v559, 1.442695
        %v575 = vpow.pop %v574
        %v576 = vadd.f32 %v561, 1.0
        %v577 = vadd.f32 %v563, 1.0
        %v578 = vadd.f32 %v565, 1.0
        %v579 = vadd.f32 %v567, 1.0
        %v580 = vadd.f32 %v569, 1.0
        %v581 = vadd.f32 %v571, 1.0
        %v582 = vadd.f32 %v573, 1.0
        %v583 = vadd.f32 %v575, 1.0
        %v584 = vrcp.pop %v576
        %v585 = vmul.f32 1.0, %v584
        %v586 = vrcp.pop %v577
        %v587 = vmul.f32 1.0, %v586
        %v588 = vrcp.pop %v578
        %v589 = vmul.f32 1.0, %v588
        %v590 = vrcp.pop %v579
        %v591 = vmul.f32 1.0, %v590
        %v592 = vrcp.pop %v580
        %v593 = vmul.f32 1.0, %v592
        %v594 = vrcp.pop %v581
        %v595 = vmul.f32 1.0, %v594
        %v596 = vrcp.pop %v582
        %v597 = vmul.f32 1.0, %v596
        %v598 = vrcp.pop %v583
        %v599 = vmul.f32 1.0, %v598
        %v608 = vcombine.low %v585, %v587
        %v609 = vcombine.low %v589, %v591
        %v610 = vcombine.low %v593, %v595
        %v611 = vcombine.low %v597, %v599
        %616 = vst [vmem:[%s229] sm:$0x77] %v608
        %617 = vst [vmem:[%s229 + $0x8] sm:$0x77] %v609
        %618 = vst [vmem:[%s229 + $0x10] sm:$0x77] %v610
        %619 = vst [vmem:[%s229 + $0x18] sm:$0x77] %v611
        %s620 = smul.u32 8, %s14
        %p621 = scmp.lt.s32.totalorder %s620, 15
        %s622 = scalar_select %p621, %s620, 15
        %s623 = smul.addr %s622, 4
        %s624 = scalar_lea.vmem %s3, %s623
        // Predicated region
        $region56: #{nvae_forward.28} parent=50 // pred_check
          %p625 = pneg %p100
        $region57: #{nvae_forward.28} parent=50 // pred_check_branch
          %627 = sbr.rel (%p625) target = $region59
        $region58: #{nvae_forward.28} parent=50 // pred_region
          %s628 = smul.u32 8, %s14
        $region59: #{nvae_forward.28} parent=50 // pred_fallthru
          _
      $region51: #{nvae_forward.28} parent=5 // pred_fallthru
        _
      %p629 = scmp.le.s32.totalorder 2, %s9
      // Predicated region
      $region60: #{nvae_forward.28} parent=5 // pred_check
        %p630 = pneg %p629
      $region61: #{nvae_forward.28} parent=5 // pred_check_branch
        %632 = sbr.rel (%p630) target = $region63
      $region62: #{nvae_forward.28} parent=5 // pred_region
        %s633 = ssub.s32 %s9, 2
        // Predicated region
        $region64: #{nvae_forward.28} parent=62 // pred_check
          %p634 = pneg %p106
        $region65: #{nvae_forward.28} parent=62 // pred_check_branch
          %636 = sbr.rel (%p634) target = $region67
        $region66: #{nvae_forward.28} parent=62 // pred_region
          %s637 = smul.u32 8, %s15
          %p638 = scmp.lt.s32.totalorder %s637, 15
          %s639 = scalar_select %p638, %s637, 15
          %s640 = smul.addr %s639, 4
          %s641 = scalar_lea.vmem %s3, %s640
        $region67: #{nvae_forward.28} parent=62 // pred_fallthru
          _
      $region63: #{nvae_forward.28} parent=5 // pred_fallthru
        _
    $region6: #{nvae_forward.28} parent=1 // loop_footer
      %s13 = sadd.s32 1, %s9
    $region7: #{nvae_forward.28} parent=1 // loop_footer_branch
      %8 = sbr.rel target = $region3
    $region8: #{nvae_forward.28} parent=1 // loop_exit
      _

// kernel: nvae_forward.29
$region0: #{nvae_forward.29}
  #allocation0 [shape = 'u32[]', space=smem, size = 0x4, offset = 0x4, fixed_abs, tag = 'smem constant byte address 0x4 - core index']
  #allocation1 [shape = 'u32[144,128]{1,0:T(1,128)}', space=vmem, size = 0x12000, scoped, tag = 'internal scratch']
  %s0 = inlined_call_operand.vmem [shape: f32[2,3072], index: 0, kind: input, shape index: {}]
  %s1 = inlined_call_operand.vmem [shape: f32[2,3072], index: 1, kind: input, shape index: {}]
  %s2 = inlined_call_operand.hbm [shape: f32[1,1], index: 2, kind: output, shape index: {}]
  %s3 = sld [smem:[#allocation0]]
  $region18: #{nvae_forward.29} parent=0
    _
  %s5 = ssub.s32 1, %s3
  %s6 = scalar_select 0, %s5, %s3
  $region1: #{nvae_forward.29} parent=0
    #allocation2 [shape = 'u8[512]{0}', space=smem, size = 0x200, scoped, tag = 'output window, operand 0, single buffered']
    #allocation3 [shape = 's32[1]{0}', space=sflag, size = 0x4, scoped, tag = 'scoped memory for nvae_forward.29']
    %7 = vsyncpa [#allocation3], 0
    // Predicated region
    $region2: #{nvae_forward.29} parent=1 // pred_check
      _
    $region3: #{nvae_forward.29} parent=1 // pred_check_branch
      %9 = sbr.rel (0) target = $region5
    $region4: #{nvae_forward.29} parent=1 // pred_region
      _
    $region5: #{nvae_forward.29} parent=1 // pred_fallthru
      _
    // Predicated region
    $region6: #{nvae_forward.29} parent=1 // pred_check
      _
    $region7: #{nvae_forward.29} parent=1 // pred_check_branch
      %11 = sbr.rel (0) target = $region9
    $region8: #{nvae_forward.29} parent=1 // pred_region
      _
    $region9: #{nvae_forward.29} parent=1 // pred_fallthru
      _
    %v12 = vld [vmem:[%s0] sm:$0xff]
    %v13 = vld [vmem:[%s0 + $0x8] sm:$0xff]
    %v14 = vld [vmem:[%s0 + $0x10] sm:$0xff]
    %v15 = vld [vmem:[%s0 + $0x18] sm:$0xff]
    %v16 = vld [vmem:[%s0 + $0x20] sm:$0xff]
    %v17 = vld [vmem:[%s0 + $0x28] sm:$0xff]
    %v18 = vld [vmem:[%s1] sm:$0xff]
    %v19 = vld [vmem:[%s1 + $0x8] sm:$0xff]
    %v20 = vld [vmem:[%s1 + $0x10] sm:$0xff]
    %v21 = vld [vmem:[%s1 + $0x18] sm:$0xff]
    %v22 = vld [vmem:[%s1 + $0x20] sm:$0xff]
    %v23 = vld [vmem:[%s1 + $0x28] sm:$0xff]
    %v24 = vlog2.pop %v12
    %v25 = vmul.f32 %v24, 0.6931472
    %v26 = vlog2.pop %v13
    %v27 = vmul.f32 %v26, 0.6931472
    %v28 = vlog2.pop %v14
    %v29 = vmul.f32 %v28, 0.6931472
    %v30 = vlog2.pop %v15
    %v31 = vmul.f32 %v30, 0.6931472
    %v32 = vlog2.pop %v16
    %v33 = vmul.f32 %v32, 0.6931472
    %v34 = vlog2.pop %v17
    %v35 = vmul.f32 %v34, 0.6931472
    %v36 = vmax.f32 %v25, -100.0
    %v37 = vmax.f32 %v27, -100.0
    %v38 = vmax.f32 %v29, -100.0
    %v39 = vmax.f32 %v31, -100.0
    %v40 = vmax.f32 %v33, -100.0
    %v41 = vmax.f32 %v35, -100.0
    %v42 = vsub.f32 1.0, %v12
    %v43 = vsub.f32 1.0, %v13
    %v44 = vsub.f32 1.0, %v14
    %v45 = vsub.f32 1.0, %v15
    %v46 = vsub.f32 1.0, %v16
    %v47 = vsub.f32 1.0, %v17
    %v48 = vlog2.pop %v42
    %v49 = vmul.f32 %v48, 0.6931472
    %v50 = vlog2.pop %v43
    %v51 = vmul.f32 %v50, 0.6931472
    %v52 = vlog2.pop %v44
    %v53 = vmul.f32 %v52, 0.6931472
    %v54 = vlog2.pop %v45
    %v55 = vmul.f32 %v54, 0.6931472
    %v56 = vlog2.pop %v46
    %v57 = vmul.f32 %v56, 0.6931472
    %v58 = vlog2.pop %v47
    %v59 = vmul.f32 %v58, 0.6931472
    %v60 = vmax.f32 %v49, -100.0
    %v61 = vmax.f32 %v51, -100.0
    %v62 = vmax.f32 %v53, -100.0
    %v63 = vmax.f32 %v55, -100.0
    %v64 = vmax.f32 %v57, -100.0
    %v65 = vmax.f32 %v59, -100.0
    %v66 = vmul.f32 %v18, %v36
    %v67 = vmul.f32 %v19, %v37
    %v68 = vmul.f32 %v20, %v38
    %v69 = vmul.f32 %v21, %v39
    %v70 = vmul.f32 %v22, %v40
    %v71 = vmul.f32 %v23, %v41
    %v72 = vsub.f32 1.0, %v18
    %v73 = vsub.f32 1.0, %v19
    %v74 = vsub.f32 1.0, %v20
    %v75 = vsub.f32 1.0, %v21
    %v76 = vsub.f32 1.0, %v22
    %v77 = vsub.f32 1.0, %v23
    %v78 = vmul.f32 %v72, %v60
    %v79 = vmul.f32 %v73, %v61
    %v80 = vmul.f32 %v74, %v62
    %v81 = vmul.f32 %v75, %v63
    %v82 = vmul.f32 %v76, %v64
    %v83 = vmul.f32 %v77, %v65
    %v84 = vadd.f32 %v66, %v78
    %v85 = vadd.f32 %v67, %v79
    %v86 = vadd.f32 %v68, %v80
    %v87 = vadd.f32 %v69, %v81
    %v88 = vadd.f32 %v70, %v82
    %v89 = vadd.f32 %v71, %v83
    %v90 = vsub.f32 0.0, %v84
    %v91 = vsub.f32 0.0, %v85
    %v92 = vsub.f32 0.0, %v86
    %v93 = vsub.f32 0.0, %v87
    %v94 = vsub.f32 0.0, %v88
    %v95 = vsub.f32 0.0, %v89
    %v102 = vcombine.high %v90, %v90
    %v104 = vunpack.c.l.s4 1983009808
    %v105 = vunpack.c.0.s8 %v104
    %v106 = vlaneseq
    %v107 = vshrl.u32 %v106, 7
    %v108 = vsub.s32 %v105, %v107
    %v109 = vrot.slane %v90, %v108
    %v111 = vunpack.c.l.s4 1983009808
    %v112 = vunpack.c.0.s8 %v111
    %v113 = vlaneseq
    %v114 = vshrl.u32 %v113, 7
    %v115 = vsub.s32 %v112, %v114
    %v116 = vrot.slane %v102, %v115
    %v117 = vcombine.high %v109, %v109
    %v118 = vcombine.high %v116, %v116
    %v119 = vcombine.high %v91, %v91
    %v121 = vunpack.c.l.s4 1983009808
    %v122 = vunpack.c.0.s8 %v121
    %v123 = vlaneseq
    %v124 = vshrl.u32 %v123, 7
    %v125 = vsub.s32 %v122, %v124
    %v126 = vrot.slane %v91, %v125
    %v128 = vunpack.c.l.s4 1983009808
    %v129 = vunpack.c.0.s8 %v128
    %v130 = vlaneseq
    %v131 = vshrl.u32 %v130, 7
    %v132 = vsub.s32 %v129, %v131
    %v133 = vrot.slane %v119, %v132
    %v134 = vcombine.high %v126, %v126
    %v135 = vcombine.high %v133, %v133
    %v136 = vcombine.high %v92, %v92
    %v138 = vunpack.c.l.s4 1983009808
    %v139 = vunpack.c.0.s8 %v138
    %v140 = vlaneseq
    %v141 = vshrl.u32 %v140, 7
    %v142 = vsub.s32 %v139, %v141
    %v143 = vrot.slane %v92, %v142
    %v145 = vunpack.c.l.s4 1983009808
    %v146 = vunpack.c.0.s8 %v145
    %v147 = vlaneseq
    %v148 = vshrl.u32 %v147, 7
    %v149 = vsub.s32 %v146, %v148
    %v150 = vrot.slane %v136, %v149
    %v151 = vcombine.high %v143, %v143
    %v152 = vcombine.high %v150, %v150
    %v153 = vcombine.high %v93, %v93
    %v155 = vunpack.c.l.s4 1983009808
    %v156 = vunpack.c.0.s8 %v155
    %v157 = vlaneseq
    %v158 = vshrl.u32 %v157, 7
    %v159 = vsub.s32 %v156, %v158
    %v160 = vrot.slane %v93, %v159
    %v162 = vunpack.c.l.s4 1983009808
    %v163 = vunpack.c.0.s8 %v162
    %v164 = vlaneseq
    %v165 = vshrl.u32 %v164, 7
    %v166 = vsub.s32 %v163, %v165
    %v167 = vrot.slane %v153, %v166
    %v168 = vcombine.high %v160, %v160
    %v169 = vcombine.high %v167, %v167
    %v170 = vcombine.high %v94, %v94
    %v172 = vunpack.c.l.s4 1983009808
    %v173 = vunpack.c.0.s8 %v172
    %v174 = vlaneseq
    %v175 = vshrl.u32 %v174, 7
    %v176 = vsub.s32 %v173, %v175
    %v177 = vrot.slane %v94, %v176
    %v179 = vunpack.c.l.s4 1983009808
    %v180 = vunpack.c.0.s8 %v179
    %v181 = vlaneseq
    %v182 = vshrl.u32 %v181, 7
    %v183 = vsub.s32 %v180, %v182
    %v184 = vrot.slane %v170, %v183
    %v185 = vcombine.high %v177, %v177
    %v186 = vcombine.high %v184, %v184
    %v187 = vcombine.high %v95, %v95
    %v189 = vunpack.c.l.s4 1983009808
    %v190 = vunpack.c.0.s8 %v189
    %v191 = vlaneseq
    %v192 = vshrl.u32 %v191, 7
    %v193 = vsub.s32 %v190, %v192
    %v194 = vrot.slane %v95, %v193
    %v196 = vunpack.c.l.s4 1983009808
    %v197 = vunpack.c.0.s8 %v196
    %v198 = vlaneseq
    %v199 = vshrl.u32 %v198, 7
    %v200 = vsub.s32 %v197, %v199
    %v201 = vrot.slane %v187, %v200
    %v202 = vcombine.high %v194, %v194
    %v203 = vcombine.high %v201, %v201
    %vm228 = vcmask 1041408
    %v229 = vsel %vm228, %v109, 0.0
    %v230 = vsel %vm228, %v117, 0.0
    %v231 = vadd.f32 %v229, %v230
    %v232 = vsel %vm228, %v116, 0.0
    %v233 = vadd.f32 %v231, %v232
    %v234 = vsel %vm228, %v118, 0.0
    %v235 = vadd.f32 %v233, %v234
    %v236 = vsel %vm228, %v126, 0.0
    %v237 = vadd.f32 %v235, %v236
    %v238 = vsel %vm228, %v134, 0.0
    %v239 = vadd.f32 %v237, %v238
    %v240 = vsel %vm228, %v133, 0.0
    %v241 = vadd.f32 %v239, %v240
    %v242 = vsel %vm228, %v135, 0.0
    %v243 = vadd.f32 %v241, %v242
    %v244 = vsel %vm228, %v143, 0.0
    %v245 = vadd.f32 %v243, %v244
    %v246 = vsel %vm228, %v151, 0.0
    %v247 = vadd.f32 %v245, %v246
    %v248 = vsel %vm228, %v150, 0.0
    %v249 = vadd.f32 %v247, %v248
    %v250 = vsel %vm228, %v152, 0.0
    %v251 = vadd.f32 %v249, %v250
    %v252 = vsel %vm228, %v160, 0.0
    %v253 = vadd.f32 %v251, %v252
    %v254 = vsel %vm228, %v168, 0.0
    %v255 = vadd.f32 %v253, %v254
    %v256 = vsel %vm228, %v167, 0.0
    %v257 = vadd.f32 %v255, %v256
    %v258 = vsel %vm228, %v169, 0.0
    %v259 = vadd.f32 %v257, %v258
    %v260 = vsel %vm228, %v177, 0.0
    %v261 = vadd.f32 %v259, %v260
    %v262 = vsel %vm228, %v185, 0.0
    %v263 = vadd.f32 %v261, %v262
    %v264 = vsel %vm228, %v184, 0.0
    %v265 = vadd.f32 %v263, %v264
    %v266 = vsel %vm228, %v186, 0.0
    %v267 = vadd.f32 %v265, %v266
    %v268 = vsel %vm228, %v194, 0.0
    %v269 = vadd.f32 %v267, %v268
    %v270 = vsel %vm228, %v202, 0.0
    %v271 = vadd.f32 %v269, %v270
    %v272 = vsel %vm228, %v201, 0.0
    %v273 = vadd.f32 %v271, %v272
    %v274 = vsel %vm228, %v203, 0.0
    %v275 = vadd.f32 %v273, %v274
    %276 = vadd.xlane.f32.xlu0 %v275
    %v277 = vpop.xlane.xlu0 %276
    %v278 = vrcp.pop 3072.0
    %v279 = vmul.f32 %v277, %v278
    %v280 = vmul.f32 %v279, %v279
    %v281 = vadd.f32 %v280, 1.0
    %v282 = vrsqrt.pop %v281
    %v283 = vmul.f32 %v281, %v282
    %vm284 = vcmp.eq.f32.partialorder %v281, inf
    %v285 = vsel %vm284, %v281, %v283
    %vm286 = vcmp.eq.f32.partialorder %v281, 0.0
    %v287 = vand.u32 %v281, 2147483648
    %v288 = vsel %vm286, %v287, %v285
    %v289 = vsub.f32 %v288, 1.0
    %vm290 = vcmask 1024
    %v291 = vsel %vm290, %v289, 0.0
    %292 = vadd.xlane.f32.xlu0 %v291
    %v293 = vpop.xlane.xlu0 %292
    %v294 = vrot.slane %v293, 4
    %v295 = vadd.f32 %v293, %v294
    %v296 = vrot.slane %v295, 2
    %v297 = vadd.f32 %v295, %v296
    %v298 = vrot.slane %v297, 1
    %v299 = vadd.f32 %v297, %v298
    %s300 = vtos %v299
    %v301 = vrcp.pop 2.0
    %s302 = vtos %v301
    %s303 = smul.f32 %s300, %s302
    %s304 = scalar_lea.smem [#allocation2], 0
    %305 = sst [smem:[%s304]] %s303
    // Predicated region
    $region10: #{nvae_forward.29} parent=1 // pred_check
      _
    $region11: #{nvae_forward.29} parent=1 // pred_check_branch
      %307 = sbr.rel (0) target = $region13
    $region12: #{nvae_forward.29} parent=1 // pred_region
      %s309 = ssub.s32 16, 16
      %310 = vsyncadd [#allocation3], %s309
      %313 = dma.smem_to_hbm [#allocation2], 16, %s2, [#allocation3]
    $region13: #{nvae_forward.29} parent=1 // pred_fallthru
      _
    // Predicated region
    $region14: #{nvae_forward.29} parent=1 // pred_check
      _
    $region15: #{nvae_forward.29} parent=1 // pred_check_branch
      %315 = sbr.rel (0) target = $region17
    $region16: #{nvae_forward.29} parent=1 // pred_region
      %316 = dma.done [#allocation3], 16
    $region17: #{nvae_forward.29} parent=1 // pred_fallthru
      _
    %317 = sfence
    %318 = vsyncpa [#allocation3], 1

</llo_original>
